<compile_context>
chip_gen: v6e
topology: v6e:2x2x1
jax: 0.10.0
libtpu: 0.0.40
codegen_flags: <defaults>
</compile_context>

<pallas_src>
import math
import functools

import jax
import jax.numpy as jnp
from jax import lax
from jax.experimental import pallas as pl
from jax.experimental.pallas import tpu as pltpu


VMEM_LIMIT = 48 * 1024 * 1024  # fits v7x (64 MiB physical) and v5e/v6e (128 MiB)


def _cp(sems):
    return pltpu.CompilerParams(dimension_semantics=sems,
                                vmem_limit_bytes=VMEM_LIMIT)


def _row_tile(M, tm=256):
    # full-extent block when small (legal), 8-divisible tile otherwise
    return M if M <= tm else tm


def _col_tile(N, tn=512):
    # full-extent block when small (legal), 128-multiple tile otherwise
    return N if N <= tn else tn


# --------------------------------------------------------------------------
# Pallas kernels
# --------------------------------------------------------------------------

def _linear_kernel(x_ref, w_ref, b_ref, o_ref, *, activation):
    y = jnp.dot(x_ref[...].astype(jnp.bfloat16), w_ref[...].astype(jnp.bfloat16),
                preferred_element_type=jnp.float32)
    y = y + b_ref[...]
    if activation == "relu":
        y = jnp.maximum(y, 0.0)
    o_ref[...] = y.astype(o_ref.dtype)


def linear(x2d, w, b, activation=None, out_dtype=jnp.float32):
    """x2d: (M, K), w: (K, N), b: (N,) -> (M, N). Tiled over M and N."""
    M, K = x2d.shape
    N = w.shape[1]
    tm, tn = _row_tile(M), _col_tile(N)
    return pl.pallas_call(
        functools.partial(_linear_kernel, activation=activation),
        out_shape=jax.ShapeDtypeStruct((M, N), out_dtype),
        grid=(pl.cdiv(M, tm), pl.cdiv(N, tn)),
        in_specs=[pl.BlockSpec((tm, K), lambda i, j: (i, 0)),
                  pl.BlockSpec((K, tn), lambda i, j: (0, j)),
                  pl.BlockSpec((1, tn), lambda i, j: (0, j))],
        out_specs=pl.BlockSpec((tm, tn), lambda i, j: (i, j)),
        compiler_params=_cp(("parallel", "parallel")),
    )(x2d, w, b.reshape(1, N))


def _layernorm_kernel(x_ref, g_ref, b_ref, o_ref):
    x = x_ref[...]
    mu = jnp.mean(x, axis=-1, keepdims=True)
    xc = x - mu
    var = jnp.mean(xc * xc, axis=-1, keepdims=True)
    o_ref[...] = xc * lax.rsqrt(var + 1e-5) * g_ref[...] + b_ref[...]


def layer_norm(x2d, gamma, beta):
    M, E = x2d.shape
    tm = _row_tile(M)
    return pl.pallas_call(
        _layernorm_kernel,
        out_shape=jax.ShapeDtypeStruct((M, E), jnp.float32),
        grid=(pl.cdiv(M, tm),),
        in_specs=[pl.BlockSpec((tm, E), lambda i: (i, 0)),
                  pl.BlockSpec((1, E), lambda i: (0, 0)),
                  pl.BlockSpec((1, E), lambda i: (0, 0))],
        out_specs=pl.BlockSpec((tm, E), lambda i: (i, 0)),
        compiler_params=_cp(("parallel",)),
    )(x2d, gamma.reshape(1, E), beta.reshape(1, E))


def _proj_residual_ln_kernel(y_ref, x_ref, w_ref, b_ref, g_ref, bb_ref, o_ref):
    # LN(x + y @ w + b) -- fused attention output-projection + residual + LN.
    y = jnp.dot(y_ref[...].astype(jnp.bfloat16), w_ref[...].astype(jnp.bfloat16),
                preferred_element_type=jnp.float32) + b_ref[...]
    z = x_ref[...] + y
    mu = jnp.mean(z, axis=-1, keepdims=True)
    zc = z - mu
    var = jnp.mean(zc * zc, axis=-1, keepdims=True)
    o_ref[...] = zc * lax.rsqrt(var + 1e-5) * g_ref[...] + bb_ref[...]


def proj_residual_ln(y2d, x2d, w, b, gamma, beta):
    M, K = y2d.shape
    E = w.shape[1]
    tm = _row_tile(M)
    return pl.pallas_call(
        _proj_residual_ln_kernel,
        out_shape=jax.ShapeDtypeStruct((M, E), jnp.float32),
        grid=(pl.cdiv(M, tm),),
        in_specs=[pl.BlockSpec((tm, K), lambda i: (i, 0)),
                  pl.BlockSpec((tm, E), lambda i: (i, 0)),
                  pl.BlockSpec((K, E), lambda i: (0, 0)),
                  pl.BlockSpec((1, E), lambda i: (0, 0)),
                  pl.BlockSpec((1, E), lambda i: (0, 0)),
                  pl.BlockSpec((1, E), lambda i: (0, 0))],
        out_specs=pl.BlockSpec((tm, E), lambda i: (i, 0)),
        compiler_params=_cp(("parallel",)),
    )(y2d, x2d, w, b.reshape(1, E), gamma.reshape(1, E), beta.reshape(1, E))


def _ffn_residual_ln_kernel(x_ref, w1_ref, b1_ref, w2_ref, b2_ref,
                            g_ref, bb_ref, o_ref):
    # LN(x + relu(x@w1+b1)@w2 + b2) -- whole FFN sublayer in one kernel.
    x = x_ref[...]
    h = jnp.dot(x.astype(jnp.bfloat16), w1_ref[...].astype(jnp.bfloat16),
                preferred_element_type=jnp.float32) + b1_ref[...]
    h = jnp.maximum(h, 0.0)
    y = jnp.dot(h.astype(jnp.bfloat16), w2_ref[...].astype(jnp.bfloat16),
                preferred_element_type=jnp.float32) + b2_ref[...]
    z = x + y
    mu = jnp.mean(z, axis=-1, keepdims=True)
    zc = z - mu
    var = jnp.mean(zc * zc, axis=-1, keepdims=True)
    o_ref[...] = zc * lax.rsqrt(var + 1e-5) * g_ref[...] + bb_ref[...]


def ffn_residual_ln(x2d, w1, b1, w2, b2, gamma, beta):
    M, E = x2d.shape
    F = w1.shape[1]
    tm = _row_tile(M)
    return pl.pallas_call(
        _ffn_residual_ln_kernel,
        out_shape=jax.ShapeDtypeStruct((M, E), jnp.float32),
        grid=(pl.cdiv(M, tm),),
        in_specs=[pl.BlockSpec((tm, E), lambda i: (i, 0)),
                  pl.BlockSpec((E, F), lambda i: (0, 0)),
                  pl.BlockSpec((1, F), lambda i: (0, 0)),
                  pl.BlockSpec((F, E), lambda i: (0, 0)),
                  pl.BlockSpec((1, E), lambda i: (0, 0)),
                  pl.BlockSpec((1, E), lambda i: (0, 0)),
                  pl.BlockSpec((1, E), lambda i: (0, 0))],
        out_specs=pl.BlockSpec((tm, E), lambda i: (i, 0)),
        compiler_params=_cp(("parallel",)),
    )(x2d, w1, b1.reshape(1, F), w2, b2.reshape(1, E),
      gamma.reshape(1, E), beta.reshape(1, E))


def _scale_add_kernel(x_ref, pe_ref, o_ref, *, scale):
    o_ref[...] = x_ref[...] * scale + pe_ref[...]


def scale_add_pe(x2d, pe_row, scale):
    """x2d * embed_scale + pe_row (single PE row broadcast over all rows)."""
    M, E = x2d.shape
    tm = _row_tile(M)
    return pl.pallas_call(
        functools.partial(_scale_add_kernel, scale=scale),
        out_shape=jax.ShapeDtypeStruct((M, E), jnp.float32),
        grid=(pl.cdiv(M, tm),),
        in_specs=[pl.BlockSpec((tm, E), lambda i: (i, 0)),
                  pl.BlockSpec((1, E), lambda i: (0, 0))],
        out_specs=pl.BlockSpec((tm, E), lambda i: (i, 0)),
        compiler_params=_cp(("parallel",)),
    )(x2d, pe_row.reshape(1, E))


def _mha_kernel(q_ref, k_ref, v_ref, pad_ref, o_ref, *, scale, causal):
    # One batch element per grid step; all heads at once via batched einsum.
    q = q_ref[...]                # (H, Sq, Dh) bf16
    k = k_ref[...]                # (H, Sk, Dh) bf16
    v = v_ref[...]                # (H, Sk, Dh) bf16
    s = jnp.einsum('hqd,hkd->hqk', q, k,
                   preferred_element_type=jnp.float32)          # (H, Sq, Sk) f32
    s = s * scale + pad_ref[...][None]                          # pad bias (1,1,Sk)
    if causal:
        Sq, Sk = s.shape[1], s.shape[2]
        rows = lax.broadcasted_iota(jnp.int32, (Sq, Sk), 0)
        cols = lax.broadcasted_iota(jnp.int32, (Sq, Sk), 1)
        s = jnp.where((cols <= rows)[None], s, -jnp.inf)
    m = jnp.max(s, axis=-1, keepdims=True)
    p = jnp.exp(s - m)
    denom = jnp.sum(p, axis=-1, keepdims=True)
    o = jnp.einsum('hqk,hkd->hqd', p.astype(v.dtype), v,
                   preferred_element_type=jnp.float32)          # (H, Sq, Dh)
    o = o * pl.reciprocal(denom, approx=True)
    o_ref[...] = o.astype(o_ref.dtype)


def mha(q, k, v, pad_bias, scale, causal):
    """q: (B,H,Sq,Dh) bf16, k/v: (B,H,Sk,Dh) bf16, pad_bias: (B,1,Sk) f32."""
    B, H, Sq, Dh = q.shape
    Sk = k.shape[2]
    return pl.pallas_call(
        functools.partial(_mha_kernel, scale=scale, causal=causal),
        out_shape=jax.ShapeDtypeStruct((B, H, Sq, Dh), jnp.bfloat16),
        grid=(B,),
        in_specs=[pl.BlockSpec((None, H, Sq, Dh), lambda b: (b, 0, 0, 0)),
                  pl.BlockSpec((None, H, Sk, Dh), lambda b: (b, 0, 0, 0)),
                  pl.BlockSpec((None, H, Sk, Dh), lambda b: (b, 0, 0, 0)),
                  pl.BlockSpec((None, 1, Sk), lambda b: (b, 0, 0))],
        out_specs=pl.BlockSpec((None, H, Sq, Dh), lambda b: (b, 0, 0, 0)),
        compiler_params=_cp(("parallel",)),
    )(q, k, v, pad_bias)


# --------------------------------------------------------------------------
# Model assembly (glue in plain JAX, compute in the kernels above)
# --------------------------------------------------------------------------

def self_attention(x2d, B, S, pad_bias, p, nhead, causal):
    E = x2d.shape[1]
    Dh = E // nhead
    qkv = linear(x2d, p["wqkv"], p["bqkv"], out_dtype=jnp.bfloat16)   # (B*S, 3E)
    qkv = qkv.reshape(B, S, 3, nhead, Dh).transpose(2, 0, 3, 1, 4)    # (3,B,H,S,Dh)
    q, k, v = qkv[0], qkv[1], qkv[2]
    o = mha(q, k, v, pad_bias, 1.0 / math.sqrt(Dh), causal)           # (B,H,S,Dh)
    return o.transpose(0, 2, 1, 3).reshape(B * S, E)                  # bf16


def cross_attention(y2d, mem2d, B, St, Ss, pad_bias, p, nhead):
    E = y2d.shape[1]
    Dh = E // nhead
    q = linear(y2d, p["wq"], p["bq"], out_dtype=jnp.bfloat16)         # (B*St, E)
    kv = linear(mem2d, p["wkv"], p["bkv"], out_dtype=jnp.bfloat16)    # (B*Ss, 2E)
    q = q.reshape(B, St, nhead, Dh).transpose(0, 2, 1, 3)
    kv = kv.reshape(B, Ss, 2, nhead, Dh).transpose(2, 0, 3, 1, 4)
    k, v = kv[0], kv[1]
    o = mha(q, k, v, pad_bias, 1.0 / math.sqrt(Dh), False)
    return o.transpose(0, 2, 1, 3).reshape(B * St, E)


def encoder_layer(x2d, B, S, pad_bias, p, nhead):
    # post-norm (norm_first=False), relu FFN, eps=1e-5 -- PyTorch defaults.
    o = self_attention(x2d, B, S, pad_bias, p["self_attn"], nhead, causal=False)
    x2d = proj_residual_ln(o, x2d, p["self_attn"]["wo"], p["self_attn"]["bo"],
                           p["ln1_g"], p["ln1_b"])
    x2d = ffn_residual_ln(x2d, p["w1"], p["b1"], p["w2"], p["b2"],
                          p["ln2_g"], p["ln2_b"])
    return x2d


def decoder_layer(y2d, mem2d, B, St, Ss, tgt_pad_bias, src_pad_bias, p, nhead):
    o = self_attention(y2d, B, St, tgt_pad_bias, p["self_attn"], nhead, causal=True)
    y2d = proj_residual_ln(o, y2d, p["self_attn"]["wo"], p["self_attn"]["bo"],
                           p["ln1_g"], p["ln1_b"])
    o = cross_attention(y2d, mem2d, B, St, Ss, src_pad_bias, p["cross_attn"], nhead)
    y2d = proj_residual_ln(o, y2d, p["cross_attn"]["wo"], p["cross_attn"]["bo"],
                           p["ln2_g"], p["ln2_b"])
    y2d = ffn_residual_ln(y2d, p["w1"], p["b1"], p["w2"], p["b2"],
                          p["ln3_g"], p["ln3_b"])
    return y2d


def transformer_forward(params, src_tokens, tgt_inputs, pad_id, nhead):
    E = params["src_embed"].shape[1]
    embed_scale = math.sqrt(E)
    B, Ss = src_tokens.shape
    St = tgt_inputs.shape[1]

    # Embedding lookup (gather is glue) + scale + positional encoding (Pallas).
    src_emb = jnp.take(params["src_embed"], src_tokens, axis=0)
    tgt_emb = jnp.take(params["tgt_embed"], tgt_inputs, axis=0)
    pe = params["pe"]
    src2d = scale_add_pe(src_emb.reshape(B * Ss, E), pe[Ss], embed_scale)
    tgt2d = scale_add_pe(tgt_emb.reshape(B * St, E), pe[St], embed_scale)

    # Slim (B,1,Sk) additive key-padding biases; causal mask is built in-kernel.
    # (all-zero bias is numerically identical to mask=None in the reference)
    neg_inf = jnp.float32(-jnp.inf)
    src_pad_bias = jnp.where((src_tokens == pad_id)[:, None, :],
                             neg_inf, 0.0).astype(jnp.float32)        # (B,1,Ss)
    tgt_pad_bias = jnp.where((tgt_inputs == pad_id)[:, None, :],
                             neg_inf, 0.0).astype(jnp.float32)        # (B,1,St)

    # Encoder stack + final LayerNorm (nn.Transformer adds encoder_norm).
    x2d = src2d
    for p in params["enc"]:
        x2d = encoder_layer(x2d, B, Ss, src_pad_bias, p, nhead)
    mem2d = layer_norm(x2d, params["enc_ln_g"], params["enc_ln_b"])

    # Decoder stack + final LayerNorm.
    y2d = tgt2d
    for p in params["dec"]:
        y2d = decoder_layer(y2d, mem2d, B, St, Ss, tgt_pad_bias, src_pad_bias,
                            p, nhead)
    y2d = layer_norm(y2d, params["dec_ln_g"], params["dec_ln_b"])

    # Final projection to target vocab (M/N tiled for large vocabularies).
    out = linear(y2d, params["wproj"], params["bproj"])
    return out.reshape(B, St, -1)


# --------------------------------------------------------------------------
# Deterministic parameter init (fused QKV / KV weights)
# --------------------------------------------------------------------------

def build_pe(max_pe, E):
    position = jnp.arange(max_pe, dtype=jnp.float32)[:, None]
    div_term = jnp.exp(jnp.arange(0, E, 2, dtype=jnp.float32)
                       * (-math.log(10000.0) / E))
    pe = jnp.zeros((max_pe, E), jnp.float32)
    pe = pe.at[:, 0::2].set(jnp.sin(position * div_term))
    pe = pe.at[:, 1::2].set(jnp.cos(position * div_term))
    return pe


def init_params(key, cfg):
    E, F = cfg["embed_dim"], cfg["ffn_embed_dim"]
    Vs, Vt, pad = cfg["src_vocab_size"], cfg["tgt_vocab_size"], cfg["pad_id"]
    keys = iter(jax.random.split(key, 4096))

    def w(shape, scale=0.05):
        return (scale * jax.random.normal(next(keys), shape)).astype(jnp.float32)

    def zeros(shape):
        return jnp.zeros(shape, jnp.float32)

    def ones(shape):
        return jnp.ones(shape, jnp.float32)

    def mha_self():
        return dict(wqkv=w((E, 3 * E)), bqkv=zeros((3 * E,)),
                    wo=w((E, E)), bo=zeros((E,)))

    def mha_cross():
        return dict(wq=w((E, E)), bq=zeros((E,)),
                    wkv=w((E, 2 * E)), bkv=zeros((2 * E,)),
                    wo=w((E, E)), bo=zeros((E,)))

    def enc_layer_p():
        return dict(self_attn=mha_self(),
                    ln1_g=ones((E,)), ln1_b=zeros((E,)),
                    w1=w((E, F)), b1=zeros((F,)),
                    w2=w((F, E)), b2=zeros((E,)),
                    ln2_g=ones((E,)), ln2_b=zeros((E,)))

    def dec_layer_p():
        return dict(self_attn=mha_self(), cross_attn=mha_cross(),
                    ln1_g=ones((E,)), ln1_b=zeros((E,)),
                    ln2_g=ones((E,)), ln2_b=zeros((E,)),
                    w1=w((E, F)), b1=zeros((F,)),
                    w2=w((F, E)), b2=zeros((E,)),
                    ln3_g=ones((E,)), ln3_b=zeros((E,)))

    src_embed = w((Vs, E), scale=1.0).at[pad].set(0.0)   # padding_idx row zeroed
    tgt_embed = w((Vt, E), scale=1.0).at[pad].set(0.0)
    max_pe = cfg["max_positions"] + pad + 1
    return dict(
        src_embed=src_embed, tgt_embed=tgt_embed, pe=build_pe(max_pe, E),
        enc=[enc_layer_p() for _ in range(cfg["num_encoder_layers"])],
        dec=[dec_layer_p() for _ in range(cfg["num_decoder_layers"])],
        enc_ln_g=ones((E,)), enc_ln_b=zeros((E,)),
        dec_ln_g=ones((E,)), dec_ln_b=zeros((E,)),
        wproj=w((E, Vt)), bproj=zeros((Vt,)),
    )


# --------------------------------------------------------------------------

if __name__ == "__main__":
    cfg = dict(src_vocab_size=40, tgt_vocab_size=48, pad_id=1,
               embed_dim=32, nhead=4, num_encoder_layers=2,
               num_decoder_layers=2, ffn_embed_dim=64,
               dropout=0.0, max_positions=16)

    key = jax.random.PRNGKey(0)
    kp, ks, kt = jax.random.split(key, 3)
    params = init_params(kp, cfg)

    B, Ss, St = 2, 10, 8
    src_tokens = jax.random.randint(ks, (B, Ss), 2, cfg["src_vocab_size"],
                                    dtype=jnp.int32)
    tgt_inputs = jax.random.randint(kt, (B, St), 2, cfg["tgt_vocab_size"],
                                    dtype=jnp.int32)
    # trailing padding on the first sequence to exercise key-padding masks
    src_tokens = src_tokens.at[0, -2:].set(cfg["pad_id"])
    tgt_inputs = tgt_inputs.at[0, -1:].set(cfg["pad_id"])

    fwd = jax.jit(transformer_forward, static_argnums=(3, 4))
    out = fwd(params, src_tokens, tgt_inputs, cfg["pad_id"], cfg["nhead"])
    out = jax.block_until_ready(out)

    assert out.shape == (B, St, cfg["tgt_vocab_size"]), out.shape
    assert bool(jnp.all(jnp.isfinite(out)))
    print("KERNEL_OK")
</pallas_src>

<mosaic_0001>
module attributes {stable_mosaic.version = 11 : i64} {
  func.func @_scale_add_kernel(%arg0: i32, %arg1: memref<20x32xf32, #tpu.memory_space<vmem>>, %arg2: memref<1x32xf32, #tpu.memory_space<vmem>>, %arg3: memref<20x32xf32, #tpu.memory_space<vmem>>) attributes {dimension_semantics = [#tpu.dimension_semantics<parallel>], iteration_bounds = array<i64: 1>, scalar_prefetch = 0 : i64, scratch_operands = 0 : i64, tpu.core_type = #tpu.core_type<tc>, window_params = [{transform_indices = @transform_0, window_bounds = array<i64: 20, 32>}, {pipeline_mode = #tpu.pipeline_mode<synchronous>, transform_indices = @transform_1, window_bounds = array<i64: 1, 32>}, {transform_indices = @transform_2, window_bounds = array<i64: 20, 32>}]} {
    %c0 = arith.constant 0 : index
    %c0_0 = arith.constant 0 : index
    %0 = vector.load %arg1[%c0, %c0_0] : memref<20x32xf32, #tpu.memory_space<vmem>>, vector<20x32xf32>
    %cst = arith.constant 5.65685415 : f32
    %1 = vector.broadcast %cst : f32 to vector<20x32xf32>
    %2 = arith.mulf %0, %1 : vector<20x32xf32>
    %c0_1 = arith.constant 0 : index
    %c0_2 = arith.constant 0 : index
    %3 = vector.load %arg2[%c0_1, %c0_2] : memref<1x32xf32, #tpu.memory_space<vmem>>, vector<1x32xf32>
    %4 = vector.broadcast %3 : vector<1x32xf32> to vector<20x32xf32>
    %5 = arith.addf %2, %4 : vector<20x32xf32>
    %c0_3 = arith.constant 0 : index
    %c0_4 = arith.constant 0 : index
    %6 = vector.load %arg3[%c0_3, %c0_4] : memref<20x32xf32, #tpu.memory_space<vmem>>, vector<20x32xf32>
    tpu.vector_store %arg3[%c0_3, %c0_4], %5 {strides = array<i32>} : memref<20x32xf32, #tpu.memory_space<vmem>>, vector<20x32xf32>,
    return
  }
  func.func @transform_0(%arg0: i32) -> (i32, i32) {
    %c0_i32 = arith.constant 0 : i32
    %c0_i32_0 = arith.constant 0 : i32
    return %arg0, %c0_i32 : i32, i32
  }
  func.func @transform_1(%arg0: i32) -> (i32, i32) {
    %c0_i32 = arith.constant 0 : i32
    %c0_i32_0 = arith.constant 0 : i32
    %c0_i32_1 = arith.constant 0 : i32
    return %c0_i32, %c0_i32_0 : i32, i32
  }
  func.func @transform_2(%arg0: i32) -> (i32, i32) {
    %c0_i32 = arith.constant 0 : i32
    %c0_i32_0 = arith.constant 0 : i32
    return %arg0, %c0_i32 : i32, i32
  }
}

module attributes {stable_mosaic.version = 11 : i64} {
  func.func @_linear_kernel(%arg0: i32, %arg1: i32, %arg2: memref<20x32xf32, #tpu.memory_space<vmem>>, %arg3: memref<32x96xf32, #tpu.memory_space<vmem>>, %arg4: memref<1x96xf32, #tpu.memory_space<vmem>>, %arg5: memref<20x96xbf16, #tpu.memory_space<vmem>>) attributes {dimension_semantics = [#tpu.dimension_semantics<parallel>, #tpu.dimension_semantics<parallel>], iteration_bounds = array<i64: 1, 1>, scalar_prefetch = 0 : i64, scratch_operands = 0 : i64, tpu.core_type = #tpu.core_type<tc>, window_params = [{transform_indices = @transform_0, window_bounds = array<i64: 20, 32>}, {transform_indices = @transform_1, window_bounds = array<i64: 32, 96>}, {transform_indices = @transform_2, window_bounds = array<i64: 1, 96>}, {transform_indices = @transform_3, window_bounds = array<i64: 20, 96>}]} {
    %c0 = arith.constant 0 : index
    %c0_0 = arith.constant 0 : index
    %0 = vector.load %arg2[%c0, %c0_0] : memref<20x32xf32, #tpu.memory_space<vmem>>, vector<20x32xf32>
    %1 = arith.truncf %0 : vector<20x32xf32> to vector<20x32xbf16>
    %c0_1 = arith.constant 0 : index
    %c0_2 = arith.constant 0 : index
    %2 = vector.load %arg3[%c0_1, %c0_2] : memref<32x96xf32, #tpu.memory_space<vmem>>, vector<32x96xf32>
    %3 = arith.truncf %2 : vector<32x96xf32> to vector<32x96xbf16>
    %cst = arith.constant dense<0.000000e+00> : vector<20x96xf32>
    %4 = tpu.matmul %1, %3, %cst {dimension_numbers = #tpu.dot_dimension_numbers<[1], [0], [0], [1], [0, 0, 1, 1], [], []>} : vector<20x32xbf16>, vector<32x96xbf16>, vector<20x96xf32> -> vector<20x96xf32>
    %c0_3 = arith.constant 0 : index
    %c0_4 = arith.constant 0 : index
    %5 = vector.load %arg4[%c0_3, %c0_4] : memref<1x96xf32, #tpu.memory_space<vmem>>, vector<1x96xf32>
    %6 = vector.broadcast %5 : vector<1x96xf32> to vector<20x96xf32>
    %7 = arith.addf %4, %6 : vector<20x96xf32>
    %8 = arith.truncf %7 : vector<20x96xf32> to vector<20x96xbf16>
    %c0_5 = arith.constant 0 : index
    %c0_6 = arith.constant 0 : index
    %9 = vector.load %arg5[%c0_5, %c0_6] : memref<20x96xbf16, #tpu.memory_space<vmem>>, vector<20x96xbf16>
    tpu.vector_store %arg5[%c0_5, %c0_6], %8 {strides = array<i32>} : memref<20x96xbf16, #tpu.memory_space<vmem>>, vector<20x96xbf16>,
    return
  }
  func.func @transform_0(%arg0: i32, %arg1: i32) -> (i32, i32) {
    %c0_i32 = arith.constant 0 : i32
    %c0_i32_0 = arith.constant 0 : i32
    return %arg0, %c0_i32 : i32, i32
  }
  func.func @transform_1(%arg0: i32, %arg1: i32) -> (i32, i32) {
    %c0_i32 = arith.constant 0 : i32
    %c0_i32_0 = arith.constant 0 : i32
    return %c0_i32, %arg1 : i32, i32
  }
  func.func @transform_2(%arg0: i32, %arg1: i32) -> (i32, i32) {
    %c0_i32 = arith.constant 0 : i32
    %c0_i32_0 = arith.constant 0 : i32
    return %c0_i32, %arg1 : i32, i32
  }
  func.func @transform_3(%arg0: i32, %arg1: i32) -> (i32, i32) {
    %c0_i32 = arith.constant 0 : i32
    return %arg0, %arg1 : i32, i32
  }
}

module attributes {stable_mosaic.version = 11 : i64} {
  func.func @_mha_kernel(%arg0: i32, %arg1: memref<1x4x10x8xbf16, #tpu.memory_space<vmem>>, %arg2: memref<1x4x10x8xbf16, #tpu.memory_space<vmem>>, %arg3: memref<1x4x10x8xbf16, #tpu.memory_space<vmem>>, %arg4: memref<1x1x10xf32, #tpu.memory_space<vmem>>, %arg5: memref<1x4x10x8xbf16, #tpu.memory_space<vmem>>) attributes {dimension_semantics = [#tpu.dimension_semantics<parallel>], iteration_bounds = array<i64: 2>, scalar_prefetch = 0 : i64, scratch_operands = 0 : i64, tpu.core_type = #tpu.core_type<tc>, window_params = [{transform_indices = @transform_0, window_bounds = array<i64: 1, 4, 10, 8>}, {transform_indices = @transform_1, window_bounds = array<i64: 1, 4, 10, 8>}, {transform_indices = @transform_2, window_bounds = array<i64: 1, 4, 10, 8>}, {transform_indices = @transform_3, window_bounds = array<i64: 1, 1, 10>}, {transform_indices = @transform_4, window_bounds = array<i64: 1, 4, 10, 8>}]} {
    %c0 = arith.constant 0 : index
    %c0_0 = arith.constant 0 : index
    %c0_1 = arith.constant 0 : index
    %c0_2 = arith.constant 0 : index
    %0 = vector.load %arg1[%c0, %c0_0, %c0_1, %c0_2] : memref<1x4x10x8xbf16, #tpu.memory_space<vmem>>, vector<1x4x10x8xbf16>
    %1 = vector.shape_cast %0 : vector<1x4x10x8xbf16> to vector<4x10x8xbf16>
    %c0_3 = arith.constant 0 : index
    %c0_4 = arith.constant 0 : index
    %c0_5 = arith.constant 0 : index
    %c0_6 = arith.constant 0 : index
    %2 = vector.load %arg2[%c0_3, %c0_4, %c0_5, %c0_6] : memref<1x4x10x8xbf16, #tpu.memory_space<vmem>>, vector<1x4x10x8xbf16>
    %3 = vector.shape_cast %2 : vector<1x4x10x8xbf16> to vector<4x10x8xbf16>
    %c0_7 = arith.constant 0 : index
    %c0_8 = arith.constant 0 : index
    %c0_9 = arith.constant 0 : index
    %c0_10 = arith.constant 0 : index
    %4 = vector.load %arg3[%c0_7, %c0_8, %c0_9, %c0_10] : memref<1x4x10x8xbf16, #tpu.memory_space<vmem>>, vector<1x4x10x8xbf16>
    %5 = vector.shape_cast %4 : vector<1x4x10x8xbf16> to vector<4x10x8xbf16>
    "tpu.trace_start"() <{level = 10 : i32, message = "hqd,hkd->hqk"}> : () -> ()
    %cst = arith.constant dense<0.000000e+00> : vector<4x10x10xf32>
    %6 = tpu.matmul %1, %3, %cst {dimension_numbers = #tpu.dot_dimension_numbers<[2], [2], [1], [1], [0, 0, 0, 1, 1, 1], [0], [0]>} : vector<4x10x8xbf16>, vector<4x10x8xbf16>, vector<4x10x10xf32> -> vector<4x10x10xf32>
    "tpu.trace_stop"() : () -> ()
    %cst_11 = arith.constant 0.353553385 : f32
    %7 = vector.broadcast %cst_11 : f32 to vector<4x10x10xf32>
    %8 = arith.mulf %6, %7 : vector<4x10x10xf32>
    %c0_12 = arith.constant 0 : index
    %c0_13 = arith.constant 0 : index
    %c0_14 = arith.constant 0 : index
    %9 = vector.load %arg4[%c0_12, %c0_13, %c0_14] : memref<1x1x10xf32, #tpu.memory_space<vmem>>, vector<1x1x10xf32>
    %10 = vector.shape_cast %9 : vector<1x1x10xf32> to vector<1x10xf32>
    %11 = vector.shape_cast %10 : vector<1x10xf32> to vector<1x1x10xf32>
    %12 = vector.broadcast %11 : vector<1x1x10xf32> to vector<4x10x10xf32>
    %13 = arith.addf %8, %12 : vector<4x10x10xf32>
    %cst_15 = arith.constant dense<0xFF800000> : vector<4x10xf32>
    %14 = vector.multi_reduction <maximumf>, %13, %cst_15 [2] : vector<4x10x10xf32> to vector<4x10xf32>
    %15 = vector.shape_cast %14 : vector<4x10xf32> to vector<4x10x1xf32>
    %16 = vector.broadcast %15 : vector<4x10x1xf32> to vector<4x10x10xf32>
    %17 = arith.subf %13, %16 : vector<4x10x10xf32>
    %18 = math.exp %17 : vector<4x10x10xf32>
    %cst_16 = arith.constant dense<0.000000e+00> : vector<4x10xf32>
    %19 = vector.multi_reduction <add>, %18, %cst_16 [2] : vector<4x10x10xf32> to vector<4x10xf32>
    %20 = vector.shape_cast %19 : vector<4x10xf32> to vector<4x10x1xf32>
    %21 = arith.truncf %18 : vector<4x10x10xf32> to vector<4x10x10xbf16>
    "tpu.trace_start"() <{level = 10 : i32, message = "hqk,hkd->hqd"}> : () -> ()
    %cst_17 = arith.constant dense<0.000000e+00> : vector<4x10x8xf32>
    %22 = tpu.matmul %21, %5, %cst_17 {dimension_numbers = #tpu.dot_dimension_numbers<[2], [1], [1], [2], [0, 0, 0, 1, 1, 2], [0], [0]>} : vector<4x10x10xbf16>, vector<4x10x8xbf16>, vector<4x10x8xf32> -> vector<4x10x8xf32>
    "tpu.trace_stop"() : () -> ()
    %23 = tpu.reciprocal %20 {approx = true} : vector<4x10x1xf32> -> vector<4x10x1xf32>
    %24 = vector.broadcast %23 : vector<4x10x1xf32> to vector<4x10x8xf32>
    %25 = arith.mulf %22, %24 : vector<4x10x8xf32>
    %26 = arith.truncf %25 : vector<4x10x8xf32> to vector<4x10x8xbf16>
    %c0_18 = arith.constant 0 : index
    %c0_19 = arith.constant 0 : index
    %c0_20 = arith.constant 0 : index
    %c0_21 = arith.constant 0 : index
    %27 = vector.load %arg5[%c0_18, %c0_19, %c0_20, %c0_21] : memref<1x4x10x8xbf16, #tpu.memory_space<vmem>>, vector<1x4x10x8xbf16>
    %28 = vector.shape_cast %27 : vector<1x4x10x8xbf16> to vector<4x10x8xbf16>
    %29 = vector.shape_cast %26 : vector<4x10x8xbf16> to vector<1x4x10x8xbf16>
    tpu.vector_store %arg5[%c0_18, %c0_19, %c0_20, %c0_21], %29 {strides = array<i32>} : memref<1x4x10x8xbf16, #tpu.memory_space<vmem>>, vector<1x4x10x8xbf16>,
    return
  }
  func.func @transform_0(%arg0: i32) -> (i32, i32, i32, i32) {
    %c0_i32 = arith.constant 0 : i32
    %c0_i32_0 = arith.constant 0 : i32
    %c0_i32_1 = arith.constant 0 : i32
    %c0_i32_2 = arith.constant 0 : i32
    return %arg0, %c0_i32, %c0_i32_0, %c0_i32_1 : i32, i32, i32, i32
  }
  func.func @transform_1(%arg0: i32) -> (i32, i32, i32, i32) {
    %c0_i32 = arith.constant 0 : i32
    %c0_i32_0 = arith.constant 0 : i32
    %c0_i32_1 = arith.constant 0 : i32
    %c0_i32_2 = arith.constant 0 : i32
    return %arg0, %c0_i32, %c0_i32_0, %c0_i32_1 : i32, i32, i32, i32
  }
  func.func @transform_2(%arg0: i32) -> (i32, i32, i32, i32) {
    %c0_i32 = arith.constant 0 : i32
    %c0_i32_0 = arith.constant 0 : i32
    %c0_i32_1 = arith.constant 0 : i32
    %c0_i32_2 = arith.constant 0 : i32
    return %arg0, %c0_i32, %c0_i32_0, %c0_i32_1 : i32, i32, i32, i32
  }
  func.func @transform_3(%arg0: i32) -> (i32, i32, i32) {
    %c0_i32 = arith.constant 0 : i32
    %c0_i32_0 = arith.constant 0 : i32
    %c0_i32_1 = arith.constant 0 : i32
    return %arg0, %c0_i32, %c0_i32_0 : i32, i32, i32
  }
  func.func @transform_4(%arg0: i32) -> (i32, i32, i32, i32) {
    %c0_i32 = arith.constant 0 : i32
    %c0_i32_0 = arith.constant 0 : i32
    %c0_i32_1 = arith.constant 0 : i32
    %c0_i32_2 = arith.constant 0 : i32
    return %arg0, %c0_i32, %c0_i32_0, %c0_i32_1 : i32, i32, i32, i32
  }
}

module attributes {stable_mosaic.version = 11 : i64} {
  func.func @_layernorm_kernel(%arg0: i32, %arg1: memref<20x32xf32, #tpu.memory_space<vmem>>, %arg2: memref<1x32xf32, #tpu.memory_space<vmem>>, %arg3: memref<1x32xf32, #tpu.memory_space<vmem>>, %arg4: memref<20x32xf32, #tpu.memory_space<vmem>>) attributes {dimension_semantics = [#tpu.dimension_semantics<parallel>], iteration_bounds = array<i64: 1>, scalar_prefetch = 0 : i64, scratch_operands = 0 : i64, tpu.core_type = #tpu.core_type<tc>, window_params = [{transform_indices = @transform_0, window_bounds = array<i64: 20, 32>}, {pipeline_mode = #tpu.pipeline_mode<synchronous>, transform_indices = @transform_1, window_bounds = array<i64: 1, 32>}, {pipeline_mode = #tpu.pipeline_mode<synchronous>, transform_indices = @transform_2, window_bounds = array<i64: 1, 32>}, {transform_indices = @transform_3, window_bounds = array<i64: 20, 32>}]} {
    %c0 = arith.constant 0 : index
    %c0_0 = arith.constant 0 : index
    %0 = vector.load %arg1[%c0, %c0_0] : memref<20x32xf32, #tpu.memory_space<vmem>>, vector<20x32xf32>
    %cst = arith.constant dense<0.000000e+00> : vector<20xf32>
    %1 = vector.multi_reduction <add>, %0, %cst [1] : vector<20x32xf32> to vector<20xf32>
    %2 = vector.shape_cast %1 : vector<20xf32> to vector<20x1xf32>
    %cst_1 = arith.constant 3.200000e+01 : f32
    %3 = vector.broadcast %cst_1 : f32 to vector<20x1xf32>
    %4 = arith.divf %2, %3 : vector<20x1xf32>
    %5 = vector.broadcast %4 : vector<20x1xf32> to vector<20x32xf32>
    %6 = arith.subf %0, %5 : vector<20x32xf32>
    %7 = arith.mulf %6, %6 : vector<20x32xf32>
    %cst_2 = arith.constant dense<0.000000e+00> : vector<20xf32>
    %8 = vector.multi_reduction <add>, %7, %cst_2 [1] : vector<20x32xf32> to vector<20xf32>
    %9 = vector.shape_cast %8 : vector<20xf32> to vector<20x1xf32>
    %cst_3 = arith.constant 3.200000e+01 : f32
    %10 = vector.broadcast %cst_3 : f32 to vector<20x1xf32>
    %11 = arith.divf %9, %10 : vector<20x1xf32>
    %cst_4 = arith.constant 9.99999974E-6 : f32
    %12 = vector.broadcast %cst_4 : f32 to vector<20x1xf32>
    %13 = arith.addf %11, %12 : vector<20x1xf32>
    %14 = math.rsqrt %13 : vector<20x1xf32>
    %15 = vector.broadcast %14 : vector<20x1xf32> to vector<20x32xf32>
    %16 = arith.mulf %6, %15 : vector<20x32xf32>
    %c0_5 = arith.constant 0 : index
    %c0_6 = arith.constant 0 : index
    %17 = vector.load %arg2[%c0_5, %c0_6] : memref<1x32xf32, #tpu.memory_space<vmem>>, vector<1x32xf32>
    %18 = vector.broadcast %17 : vector<1x32xf32> to vector<20x32xf32>
    %19 = arith.mulf %16, %18 : vector<20x32xf32>
    %c0_7 = arith.constant 0 : index
    %c0_8 = arith.constant 0 : index
    %20 = vector.load %arg3[%c0_7, %c0_8] : memref<1x32xf32, #tpu.memory_space<vmem>>, vector<1x32xf32>
    %21 = vector.broadcast %20 : vector<1x32xf32> to vector<20x32xf32>
    %22 = arith.addf %19, %21 : vector<20x32xf32>
    %c0_9 = arith.constant 0 : index
    %c0_10 = arith.constant 0 : index
    %23 = vector.load %arg4[%c0_9, %c0_10] : memref<20x32xf32, #tpu.memory_space<vmem>>, vector<20x32xf32>
    tpu.vector_store %arg4[%c0_9, %c0_10], %22 {strides = array<i32>} : memref<20x32xf32, #tpu.memory_space<vmem>>, vector<20x32xf32>,
    return
  }
  func.func @transform_0(%arg0: i32) -> (i32, i32) {
    %c0_i32 = arith.constant 0 : i32
    %c0_i32_0 = arith.constant 0 : i32
    return %arg0, %c0_i32 : i32, i32
  }
  func.func @transform_1(%arg0: i32) -> (i32, i32) {
    %c0_i32 = arith.constant 0 : i32
    %c0_i32_0 = arith.constant 0 : i32
    %c0_i32_1 = arith.constant 0 : i32
    return %c0_i32, %c0_i32_0 : i32, i32
  }
  func.func @transform_2(%arg0: i32) -> (i32, i32) {
    %c0_i32 = arith.constant 0 : i32
    %c0_i32_0 = arith.constant 0 : i32
    %c0_i32_1 = arith.constant 0 : i32
    return %c0_i32, %c0_i32_0 : i32, i32
  }
  func.func @transform_3(%arg0: i32) -> (i32, i32) {
    %c0_i32 = arith.constant 0 : i32
    %c0_i32_0 = arith.constant 0 : i32
    return %arg0, %c0_i32 : i32, i32
  }
}

module attributes {stable_mosaic.version = 11 : i64} {
  func.func @_proj_residual_ln_kernel(%arg0: i32, %arg1: memref<20x32xbf16, #tpu.memory_space<vmem>>, %arg2: memref<20x32xf32, #tpu.memory_space<vmem>>, %arg3: memref<32x32xf32, #tpu.memory_space<vmem>>, %arg4: memref<1x32xf32, #tpu.memory_space<vmem>>, %arg5: memref<1x32xf32, #tpu.memory_space<vmem>>, %arg6: memref<1x32xf32, #tpu.memory_space<vmem>>, %arg7: memref<20x32xf32, #tpu.memory_space<vmem>>) attributes {dimension_semantics = [#tpu.dimension_semantics<parallel>], iteration_bounds = array<i64: 1>, scalar_prefetch = 0 : i64, scratch_operands = 0 : i64, tpu.core_type = #tpu.core_type<tc>, window_params = [{transform_indices = @transform_0, window_bounds = array<i64: 20, 32>}, {transform_indices = @transform_1, window_bounds = array<i64: 20, 32>}, {pipeline_mode = #tpu.pipeline_mode<synchronous>, transform_indices = @transform_2, window_bounds = array<i64: 32, 32>}, {pipeline_mode = #tpu.pipeline_mode<synchronous>, transform_indices = @transform_3, window_bounds = array<i64: 1, 32>}, {pipeline_mode = #tpu.pipeline_mode<synchronous>, transform_indices = @transform_4, window_bounds = array<i64: 1, 32>}, {pipeline_mode = #tpu.pipeline_mode<synchronous>, transform_indices = @transform_5, window_bounds = array<i64: 1, 32>}, {transform_indices = @transform_6, window_bounds = array<i64: 20, 32>}]} {
    %c0 = arith.constant 0 : index
    %c0_0 = arith.constant 0 : index
    %0 = vector.load %arg1[%c0, %c0_0] : memref<20x32xbf16, #tpu.memory_space<vmem>>, vector<20x32xbf16>
    %c0_1 = arith.constant 0 : index
    %c0_2 = arith.constant 0 : index
    %1 = vector.load %arg3[%c0_1, %c0_2] : memref<32x32xf32, #tpu.memory_space<vmem>>, vector<32x32xf32>
    %2 = arith.truncf %1 : vector<32x32xf32> to vector<32x32xbf16>
    %cst = arith.constant dense<0.000000e+00> : vector<20x32xf32>
    %3 = tpu.matmul %0, %2, %cst {dimension_numbers = #tpu.dot_dimension_numbers<[1], [0], [0], [1], [0, 0, 1, 1], [], []>} : vector<20x32xbf16>, vector<32x32xbf16>, vector<20x32xf32> -> vector<20x32xf32>
    %c0_3 = arith.constant 0 : index
    %c0_4 = arith.constant 0 : index
    %4 = vector.load %arg4[%c0_3, %c0_4] : memref<1x32xf32, #tpu.memory_space<vmem>>, vector<1x32xf32>
    %5 = vector.broadcast %4 : vector<1x32xf32> to vector<20x32xf32>
    %6 = arith.addf %3, %5 : vector<20x32xf32>
    %c0_5 = arith.constant 0 : index
    %c0_6 = arith.constant 0 : index
    %7 = vector.load %arg2[%c0_5, %c0_6] : memref<20x32xf32, #tpu.memory_space<vmem>>, vector<20x32xf32>
    %8 = arith.addf %7, %6 : vector<20x32xf32>
    %cst_7 = arith.constant dense<0.000000e+00> : vector<20xf32>
    %9 = vector.multi_reduction <add>, %8, %cst_7 [1] : vector<20x32xf32> to vector<20xf32>
    %10 = vector.shape_cast %9 : vector<20xf32> to vector<20x1xf32>
    %cst_8 = arith.constant 3.200000e+01 : f32
    %11 = vector.broadcast %cst_8 : f32 to vector<20x1xf32>
    %12 = arith.divf %10, %11 : vector<20x1xf32>
    %13 = vector.broadcast %12 : vector<20x1xf32> to vector<20x32xf32>
    %14 = arith.subf %8, %13 : vector<20x32xf32>
    %15 = arith.mulf %14, %14 : vector<20x32xf32>
    %cst_9 = arith.constant dense<0.000000e+00> : vector<20xf32>
    %16 = vector.multi_reduction <add>, %15, %cst_9 [1] : vector<20x32xf32> to vector<20xf32>
    %17 = vector.shape_cast %16 : vector<20xf32> to vector<20x1xf32>
    %cst_10 = arith.constant 3.200000e+01 : f32
    %18 = vector.broadcast %cst_10 : f32 to vector<20x1xf32>
    %19 = arith.divf %17, %18 : vector<20x1xf32>
    %cst_11 = arith.constant 9.99999974E-6 : f32
    %20 = vector.broadcast %cst_11 : f32 to vector<20x1xf32>
    %21 = arith.addf %19, %20 : vector<20x1xf32>
    %22 = math.rsqrt %21 : vector<20x1xf32>
    %23 = vector.broadcast %22 : vector<20x1xf32> to vector<20x32xf32>
    %24 = arith.mulf %14, %23 : vector<20x32xf32>
    %c0_12 = arith.constant 0 : index
    %c0_13 = arith.constant 0 : index
    %25 = vector.load %arg5[%c0_12, %c0_13] : memref<1x32xf32, #tpu.memory_space<vmem>>, vector<1x32xf32>
    %26 = vector.broadcast %25 : vector<1x32xf32> to vector<20x32xf32>
    %27 = arith.mulf %24, %26 : vector<20x32xf32>
    %c0_14 = arith.constant 0 : index
    %c0_15 = arith.constant 0 : index
    %28 = vector.load %arg6[%c0_14, %c0_15] : memref<1x32xf32, #tpu.memory_space<vmem>>, vector<1x32xf32>
    %29 = vector.broadcast %28 : vector<1x32xf32> to vector<20x32xf32>
    %30 = arith.addf %27, %29 : vector<20x32xf32>
    %c0_16 = arith.constant 0 : index
    %c0_17 = arith.constant 0 : index
    %31 = vector.load %arg7[%c0_16, %c0_17] : memref<20x32xf32, #tpu.memory_space<vmem>>, vector<20x32xf32>
    tpu.vector_store %arg7[%c0_16, %c0_17], %30 {strides = array<i32>} : memref<20x32xf32, #tpu.memory_space<vmem>>, vector<20x32xf32>,
    return
  }
  func.func @transform_0(%arg0: i32) -> (i32, i32) {
    %c0_i32 = arith.constant 0 : i32
    %c0_i32_0 = arith.constant 0 : i32
    return %arg0, %c0_i32 : i32, i32
  }
  func.func @transform_1(%arg0: i32) -> (i32, i32) {
    %c0_i32 = arith.constant 0 : i32
    %c0_i32_0 = arith.constant 0 : i32
    return %arg0, %c0_i32 : i32, i32
  }
  func.func @transform_2(%arg0: i32) -> (i32, i32) {
    %c0_i32 = arith.constant 0 : i32
    %c0_i32_0 = arith.constant 0 : i32
    %c0_i32_1 = arith.constant 0 : i32
    return %c0_i32, %c0_i32_0 : i32, i32
  }
  func.func @transform_3(%arg0: i32) -> (i32, i32) {
    %c0_i32 = arith.constant 0 : i32
    %c0_i32_0 = arith.constant 0 : i32
    %c0_i32_1 = arith.constant 0 : i32
    return %c0_i32, %c0_i32_0 : i32, i32
  }
  func.func @transform_4(%arg0: i32) -> (i32, i32) {
    %c0_i32 = arith.constant 0 : i32
    %c0_i32_0 = arith.constant 0 : i32
    %c0_i32_1 = arith.constant 0 : i32
    return %c0_i32, %c0_i32_0 : i32, i32
  }
  func.func @transform_5(%arg0: i32) -> (i32, i32) {
    %c0_i32 = arith.constant 0 : i32
    %c0_i32_0 = arith.constant 0 : i32
    %c0_i32_1 = arith.constant 0 : i32
    return %c0_i32, %c0_i32_0 : i32, i32
  }
  func.func @transform_6(%arg0: i32) -> (i32, i32) {
    %c0_i32 = arith.constant 0 : i32
    %c0_i32_0 = arith.constant 0 : i32
    return %arg0, %c0_i32 : i32, i32
  }
}

module attributes {stable_mosaic.version = 11 : i64} {
  func.func @_ffn_residual_ln_kernel(%arg0: i32, %arg1: memref<20x32xf32, #tpu.memory_space<vmem>>, %arg2: memref<32x64xf32, #tpu.memory_space<vmem>>, %arg3: memref<1x64xf32, #tpu.memory_space<vmem>>, %arg4: memref<64x32xf32, #tpu.memory_space<vmem>>, %arg5: memref<1x32xf32, #tpu.memory_space<vmem>>, %arg6: memref<1x32xf32, #tpu.memory_space<vmem>>, %arg7: memref<1x32xf32, #tpu.memory_space<vmem>>, %arg8: memref<20x32xf32, #tpu.memory_space<vmem>>) attributes {dimension_semantics = [#tpu.dimension_semantics<parallel>], iteration_bounds = array<i64: 1>, scalar_prefetch = 0 : i64, scratch_operands = 0 : i64, tpu.core_type = #tpu.core_type<tc>, window_params = [{transform_indices = @transform_0, window_bounds = array<i64: 20, 32>}, {pipeline_mode = #tpu.pipeline_mode<synchronous>, transform_indices = @transform_1, window_bounds = array<i64: 32, 64>}, {pipeline_mode = #tpu.pipeline_mode<synchronous>, transform_indices = @transform_2, window_bounds = array<i64: 1, 64>}, {pipeline_mode = #tpu.pipeline_mode<synchronous>, transform_indices = @transform_3, window_bounds = array<i64: 64, 32>}, {pipeline_mode = #tpu.pipeline_mode<synchronous>, transform_indices = @transform_4, window_bounds = array<i64: 1, 32>}, {pipeline_mode = #tpu.pipeline_mode<synchronous>, transform_indices = @transform_5, window_bounds = array<i64: 1, 32>}, {pipeline_mode = #tpu.pipeline_mode<synchronous>, transform_indices = @transform_6, window_bounds = array<i64: 1, 32>}, {transform_indices = @transform_7, window_bounds = array<i64: 20, 32>}]} {
    %c0 = arith.constant 0 : index
    %c0_0 = arith.constant 0 : index
    %0 = vector.load %arg1[%c0, %c0_0] : memref<20x32xf32, #tpu.memory_space<vmem>>, vector<20x32xf32>
    %1 = arith.truncf %0 : vector<20x32xf32> to vector<20x32xbf16>
    %c0_1 = arith.constant 0 : index
    %c0_2 = arith.constant 0 : index
    %2 = vector.load %arg2[%c0_1, %c0_2] : memref<32x64xf32, #tpu.memory_space<vmem>>, vector<32x64xf32>
    %3 = arith.truncf %2 : vector<32x64xf32> to vector<32x64xbf16>
    %cst = arith.constant dense<0.000000e+00> : vector<20x64xf32>
    %4 = tpu.matmul %1, %3, %cst {dimension_numbers = #tpu.dot_dimension_numbers<[1], [0], [0], [1], [0, 0, 1, 1], [], []>} : vector<20x32xbf16>, vector<32x64xbf16>, vector<20x64xf32> -> vector<20x64xf32>
    %c0_3 = arith.constant 0 : index
    %c0_4 = arith.constant 0 : index
    %5 = vector.load %arg3[%c0_3, %c0_4] : memref<1x64xf32, #tpu.memory_space<vmem>>, vector<1x64xf32>
    %6 = vector.broadcast %5 : vector<1x64xf32> to vector<20x64xf32>
    %7 = arith.addf %4, %6 : vector<20x64xf32>
    %cst_5 = arith.constant 0.000000e+00 : f32
    %8 = vector.broadcast %cst_5 : f32 to vector<20x64xf32>
    %9 = arith.maximumf %7, %8 : vector<20x64xf32>
    %10 = arith.truncf %9 : vector<20x64xf32> to vector<20x64xbf16>
    %c0_6 = arith.constant 0 : index
    %c0_7 = arith.constant 0 : index
    %11 = vector.load %arg4[%c0_6, %c0_7] : memref<64x32xf32, #tpu.memory_space<vmem>>, vector<64x32xf32>
    %12 = arith.truncf %11 : vector<64x32xf32> to vector<64x32xbf16>
    %cst_8 = arith.constant dense<0.000000e+00> : vector<20x32xf32>
    %13 = tpu.matmul %10, %12, %cst_8 {dimension_numbers = #tpu.dot_dimension_numbers<[1], [0], [0], [1], [0, 0, 1, 1], [], []>} : vector<20x64xbf16>, vector<64x32xbf16>, vector<20x32xf32> -> vector<20x32xf32>
    %c0_9 = arith.constant 0 : index
    %c0_10 = arith.constant 0 : index
    %14 = vector.load %arg5[%c0_9, %c0_10] : memref<1x32xf32, #tpu.memory_space<vmem>>, vector<1x32xf32>
    %15 = vector.broadcast %14 : vector<1x32xf32> to vector<20x32xf32>
    %16 = arith.addf %13, %15 : vector<20x32xf32>
    %17 = arith.addf %0, %16 : vector<20x32xf32>
    %cst_11 = arith.constant dense<0.000000e+00> : vector<20xf32>
    %18 = vector.multi_reduction <add>, %17, %cst_11 [1] : vector<20x32xf32> to vector<20xf32>
    %19 = vector.shape_cast %18 : vector<20xf32> to vector<20x1xf32>
    %cst_12 = arith.constant 3.200000e+01 : f32
    %20 = vector.broadcast %cst_12 : f32 to vector<20x1xf32>
    %21 = arith.divf %19, %20 : vector<20x1xf32>
    %22 = vector.broadcast %21 : vector<20x1xf32> to vector<20x32xf32>
    %23 = arith.subf %17, %22 : vector<20x32xf32>
    %24 = arith.mulf %23, %23 : vector<20x32xf32>
    %cst_13 = arith.constant dense<0.000000e+00> : vector<20xf32>
    %25 = vector.multi_reduction <add>, %24, %cst_13 [1] : vector<20x32xf32> to vector<20xf32>
    %26 = vector.shape_cast %25 : vector<20xf32> to vector<20x1xf32>
    %cst_14 = arith.constant 3.200000e+01 : f32
    %27 = vector.broadcast %cst_14 : f32 to vector<20x1xf32>
    %28 = arith.divf %26, %27 : vector<20x1xf32>
    %cst_15 = arith.constant 9.99999974E-6 : f32
    %29 = vector.broadcast %cst_15 : f32 to vector<20x1xf32>
    %30 = arith.addf %28, %29 : vector<20x1xf32>
    %31 = math.rsqrt %30 : vector<20x1xf32>
    %32 = vector.broadcast %31 : vector<20x1xf32> to vector<20x32xf32>
    %33 = arith.mulf %23, %32 : vector<20x32xf32>
    %c0_16 = arith.constant 0 : index
    %c0_17 = arith.constant 0 : index
    %34 = vector.load %arg6[%c0_16, %c0_17] : memref<1x32xf32, #tpu.memory_space<vmem>>, vector<1x32xf32>
    %35 = vector.broadcast %34 : vector<1x32xf32> to vector<20x32xf32>
    %36 = arith.mulf %33, %35 : vector<20x32xf32>
    %c0_18 = arith.constant 0 : index
    %c0_19 = arith.constant 0 : index
    %37 = vector.load %arg7[%c0_18, %c0_19] : memref<1x32xf32, #tpu.memory_space<vmem>>, vector<1x32xf32>
    %38 = vector.broadcast %37 : vector<1x32xf32> to vector<20x32xf32>
    %39 = arith.addf %36, %38 : vector<20x32xf32>
    %c0_20 = arith.constant 0 : index
    %c0_21 = arith.constant 0 : index
    %40 = vector.load %arg8[%c0_20, %c0_21] : memref<20x32xf32, #tpu.memory_space<vmem>>, vector<20x32xf32>
    tpu.vector_store %arg8[%c0_20, %c0_21], %39 {strides = array<i32>} : memref<20x32xf32, #tpu.memory_space<vmem>>, vector<20x32xf32>,
    return
  }
  func.func @transform_0(%arg0: i32) -> (i32, i32) {
    %c0_i32 = arith.constant 0 : i32
    %c0_i32_0 = arith.constant 0 : i32
    return %arg0, %c0_i32 : i32, i32
  }
  func.func @transform_1(%arg0: i32) -> (i32, i32) {
    %c0_i32 = arith.constant 0 : i32
    %c0_i32_0 = arith.constant 0 : i32
    %c0_i32_1 = arith.constant 0 : i32
    return %c0_i32, %c0_i32_0 : i32, i32
  }
  func.func @transform_2(%arg0: i32) -> (i32, i32) {
    %c0_i32 = arith.constant 0 : i32
    %c0_i32_0 = arith.constant 0 : i32
    %c0_i32_1 = arith.constant 0 : i32
    return %c0_i32, %c0_i32_0 : i32, i32
  }
  func.func @transform_3(%arg0: i32) -> (i32, i32) {
    %c0_i32 = arith.constant 0 : i32
    %c0_i32_0 = arith.constant 0 : i32
    %c0_i32_1 = arith.constant 0 : i32
    return %c0_i32, %c0_i32_0 : i32, i32
  }
  func.func @transform_4(%arg0: i32) -> (i32, i32) {
    %c0_i32 = arith.constant 0 : i32
    %c0_i32_0 = arith.constant 0 : i32
    %c0_i32_1 = arith.constant 0 : i32
    return %c0_i32, %c0_i32_0 : i32, i32
  }
  func.func @transform_5(%arg0: i32) -> (i32, i32) {
    %c0_i32 = arith.constant 0 : i32
    %c0_i32_0 = arith.constant 0 : i32
    %c0_i32_1 = arith.constant 0 : i32
    return %c0_i32, %c0_i32_0 : i32, i32
  }
  func.func @transform_6(%arg0: i32) -> (i32, i32) {
    %c0_i32 = arith.constant 0 : i32
    %c0_i32_0 = arith.constant 0 : i32
    %c0_i32_1 = arith.constant 0 : i32
    return %c0_i32, %c0_i32_0 : i32, i32
  }
  func.func @transform_7(%arg0: i32) -> (i32, i32) {
    %c0_i32 = arith.constant 0 : i32
    %c0_i32_0 = arith.constant 0 : i32
    return %arg0, %c0_i32 : i32, i32
  }
}

module attributes {stable_mosaic.version = 11 : i64} {
  func.func @_linear_kernel(%arg0: i32, %arg1: i32, %arg2: memref<20x32xf32, #tpu.memory_space<vmem>>, %arg3: memref<32x64xf32, #tpu.memory_space<vmem>>, %arg4: memref<1x64xf32, #tpu.memory_space<vmem>>, %arg5: memref<20x64xbf16, #tpu.memory_space<vmem>>) attributes {dimension_semantics = [#tpu.dimension_semantics<parallel>, #tpu.dimension_semantics<parallel>], iteration_bounds = array<i64: 1, 1>, scalar_prefetch = 0 : i64, scratch_operands = 0 : i64, tpu.core_type = #tpu.core_type<tc>, window_params = [{transform_indices = @transform_0, window_bounds = array<i64: 20, 32>}, {transform_indices = @transform_1, window_bounds = array<i64: 32, 64>}, {transform_indices = @transform_2, window_bounds = array<i64: 1, 64>}, {transform_indices = @transform_3, window_bounds = array<i64: 20, 64>}]} {
    %c0 = arith.constant 0 : index
    %c0_0 = arith.constant 0 : index
    %0 = vector.load %arg2[%c0, %c0_0] : memref<20x32xf32, #tpu.memory_space<vmem>>, vector<20x32xf32>
    %1 = arith.truncf %0 : vector<20x32xf32> to vector<20x32xbf16>
    %c0_1 = arith.constant 0 : index
    %c0_2 = arith.constant 0 : index
    %2 = vector.load %arg3[%c0_1, %c0_2] : memref<32x64xf32, #tpu.memory_space<vmem>>, vector<32x64xf32>
    %3 = arith.truncf %2 : vector<32x64xf32> to vector<32x64xbf16>
    %cst = arith.constant dense<0.000000e+00> : vector<20x64xf32>
    %4 = tpu.matmul %1, %3, %cst {dimension_numbers = #tpu.dot_dimension_numbers<[1], [0], [0], [1], [0, 0, 1, 1], [], []>} : vector<20x32xbf16>, vector<32x64xbf16>, vector<20x64xf32> -> vector<20x64xf32>
    %c0_3 = arith.constant 0 : index
    %c0_4 = arith.constant 0 : index
    %5 = vector.load %arg4[%c0_3, %c0_4] : memref<1x64xf32, #tpu.memory_space<vmem>>, vector<1x64xf32>
    %6 = vector.broadcast %5 : vector<1x64xf32> to vector<20x64xf32>
    %7 = arith.addf %4, %6 : vector<20x64xf32>
    %8 = arith.truncf %7 : vector<20x64xf32> to vector<20x64xbf16>
    %c0_5 = arith.constant 0 : index
    %c0_6 = arith.constant 0 : index
    %9 = vector.load %arg5[%c0_5, %c0_6] : memref<20x64xbf16, #tpu.memory_space<vmem>>, vector<20x64xbf16>
    tpu.vector_store %arg5[%c0_5, %c0_6], %8 {strides = array<i32>} : memref<20x64xbf16, #tpu.memory_space<vmem>>, vector<20x64xbf16>,
    return
  }
  func.func @transform_0(%arg0: i32, %arg1: i32) -> (i32, i32) {
    %c0_i32 = arith.constant 0 : i32
    %c0_i32_0 = arith.constant 0 : i32
    return %arg0, %c0_i32 : i32, i32
  }
  func.func @transform_1(%arg0: i32, %arg1: i32) -> (i32, i32) {
    %c0_i32 = arith.constant 0 : i32
    %c0_i32_0 = arith.constant 0 : i32
    return %c0_i32, %arg1 : i32, i32
  }
  func.func @transform_2(%arg0: i32, %arg1: i32) -> (i32, i32) {
    %c0_i32 = arith.constant 0 : i32
    %c0_i32_0 = arith.constant 0 : i32
    return %c0_i32, %arg1 : i32, i32
  }
  func.func @transform_3(%arg0: i32, %arg1: i32) -> (i32, i32) {
    %c0_i32 = arith.constant 0 : i32
    return %arg0, %arg1 : i32, i32
  }
}

module attributes {stable_mosaic.version = 11 : i64} {
  func.func @_scale_add_kernel(%arg0: i32, %arg1: memref<16x32xf32, #tpu.memory_space<vmem>>, %arg2: memref<1x32xf32, #tpu.memory_space<vmem>>, %arg3: memref<16x32xf32, #tpu.memory_space<vmem>>) attributes {dimension_semantics = [#tpu.dimension_semantics<parallel>], iteration_bounds = array<i64: 1>, scalar_prefetch = 0 : i64, scratch_operands = 0 : i64, tpu.core_type = #tpu.core_type<tc>, window_params = [{transform_indices = @transform_0, window_bounds = array<i64: 16, 32>}, {pipeline_mode = #tpu.pipeline_mode<synchronous>, transform_indices = @transform_1, window_bounds = array<i64: 1, 32>}, {transform_indices = @transform_2, window_bounds = array<i64: 16, 32>}]} {
    %c0 = arith.constant 0 : index
    %c0_0 = arith.constant 0 : index
    %0 = vector.load %arg1[%c0, %c0_0] : memref<16x32xf32, #tpu.memory_space<vmem>>, vector<16x32xf32>
    %cst = arith.constant 5.65685415 : f32
    %1 = vector.broadcast %cst : f32 to vector<16x32xf32>
    %2 = arith.mulf %0, %1 : vector<16x32xf32>
    %c0_1 = arith.constant 0 : index
    %c0_2 = arith.constant 0 : index
    %3 = vector.load %arg2[%c0_1, %c0_2] : memref<1x32xf32, #tpu.memory_space<vmem>>, vector<1x32xf32>
    %4 = vector.broadcast %3 : vector<1x32xf32> to vector<16x32xf32>
    %5 = arith.addf %2, %4 : vector<16x32xf32>
    %c0_3 = arith.constant 0 : index
    %c0_4 = arith.constant 0 : index
    %6 = vector.load %arg3[%c0_3, %c0_4] : memref<16x32xf32, #tpu.memory_space<vmem>>, vector<16x32xf32>
    tpu.vector_store %arg3[%c0_3, %c0_4], %5 {strides = array<i32>} : memref<16x32xf32, #tpu.memory_space<vmem>>, vector<16x32xf32>,
    return
  }
  func.func @transform_0(%arg0: i32) -> (i32, i32) {
    %c0_i32 = arith.constant 0 : i32
    %c0_i32_0 = arith.constant 0 : i32
    return %arg0, %c0_i32 : i32, i32
  }
  func.func @transform_1(%arg0: i32) -> (i32, i32) {
    %c0_i32 = arith.constant 0 : i32
    %c0_i32_0 = arith.constant 0 : i32
    %c0_i32_1 = arith.constant 0 : i32
    return %c0_i32, %c0_i32_0 : i32, i32
  }
  func.func @transform_2(%arg0: i32) -> (i32, i32) {
    %c0_i32 = arith.constant 0 : i32
    %c0_i32_0 = arith.constant 0 : i32
    return %arg0, %c0_i32 : i32, i32
  }
}

module attributes {stable_mosaic.version = 11 : i64} {
  func.func @_linear_kernel(%arg0: i32, %arg1: i32, %arg2: memref<16x32xf32, #tpu.memory_space<vmem>>, %arg3: memref<32x96xf32, #tpu.memory_space<vmem>>, %arg4: memref<1x96xf32, #tpu.memory_space<vmem>>, %arg5: memref<16x96xbf16, #tpu.memory_space<vmem>>) attributes {dimension_semantics = [#tpu.dimension_semantics<parallel>, #tpu.dimension_semantics<parallel>], iteration_bounds = array<i64: 1, 1>, scalar_prefetch = 0 : i64, scratch_operands = 0 : i64, tpu.core_type = #tpu.core_type<tc>, window_params = [{transform_indices = @transform_0, window_bounds = array<i64: 16, 32>}, {transform_indices = @transform_1, window_bounds = array<i64: 32, 96>}, {transform_indices = @transform_2, window_bounds = array<i64: 1, 96>}, {transform_indices = @transform_3, window_bounds = array<i64: 16, 96>}]} {
    %c0 = arith.constant 0 : index
    %c0_0 = arith.constant 0 : index
    %0 = vector.load %arg2[%c0, %c0_0] : memref<16x32xf32, #tpu.memory_space<vmem>>, vector<16x32xf32>
    %1 = arith.truncf %0 : vector<16x32xf32> to vector<16x32xbf16>
    %c0_1 = arith.constant 0 : index
    %c0_2 = arith.constant 0 : index
    %2 = vector.load %arg3[%c0_1, %c0_2] : memref<32x96xf32, #tpu.memory_space<vmem>>, vector<32x96xf32>
    %3 = arith.truncf %2 : vector<32x96xf32> to vector<32x96xbf16>
    %cst = arith.constant dense<0.000000e+00> : vector<16x96xf32>
    %4 = tpu.matmul %1, %3, %cst {dimension_numbers = #tpu.dot_dimension_numbers<[1], [0], [0], [1], [0, 0, 1, 1], [], []>} : vector<16x32xbf16>, vector<32x96xbf16>, vector<16x96xf32> -> vector<16x96xf32>
    %c0_3 = arith.constant 0 : index
    %c0_4 = arith.constant 0 : index
    %5 = vector.load %arg4[%c0_3, %c0_4] : memref<1x96xf32, #tpu.memory_space<vmem>>, vector<1x96xf32>
    %6 = vector.broadcast %5 : vector<1x96xf32> to vector<16x96xf32>
    %7 = arith.addf %4, %6 : vector<16x96xf32>
    %8 = arith.truncf %7 : vector<16x96xf32> to vector<16x96xbf16>
    %c0_5 = arith.constant 0 : index
    %c0_6 = arith.constant 0 : index
    %9 = vector.load %arg5[%c0_5, %c0_6] : memref<16x96xbf16, #tpu.memory_space<vmem>>, vector<16x96xbf16>
    tpu.vector_store %arg5[%c0_5, %c0_6], %8 {strides = array<i32>} : memref<16x96xbf16, #tpu.memory_space<vmem>>, vector<16x96xbf16>,
    return
  }
  func.func @transform_0(%arg0: i32, %arg1: i32) -> (i32, i32) {
    %c0_i32 = arith.constant 0 : i32
    %c0_i32_0 = arith.constant 0 : i32
    return %arg0, %c0_i32 : i32, i32
  }
  func.func @transform_1(%arg0: i32, %arg1: i32) -> (i32, i32) {
    %c0_i32 = arith.constant 0 : i32
    %c0_i32_0 = arith.constant 0 : i32
    return %c0_i32, %arg1 : i32, i32
  }
  func.func @transform_2(%arg0: i32, %arg1: i32) -> (i32, i32) {
    %c0_i32 = arith.constant 0 : i32
    %c0_i32_0 = arith.constant 0 : i32
    return %c0_i32, %arg1 : i32, i32
  }
  func.func @transform_3(%arg0: i32, %arg1: i32) -> (i32, i32) {
    %c0_i32 = arith.constant 0 : i32
    return %arg0, %arg1 : i32, i32
  }
}

module attributes {stable_mosaic.version = 11 : i64} {
  func.func @_mha_kernel(%arg0: i32, %arg1: memref<1x4x8x8xbf16, #tpu.memory_space<vmem>>, %arg2: memref<1x4x8x8xbf16, #tpu.memory_space<vmem>>, %arg3: memref<1x4x8x8xbf16, #tpu.memory_space<vmem>>, %arg4: memref<1x1x8xf32, #tpu.memory_space<vmem>>, %arg5: memref<1x4x8x8xbf16, #tpu.memory_space<vmem>>) attributes {dimension_semantics = [#tpu.dimension_semantics<parallel>], iteration_bounds = array<i64: 2>, scalar_prefetch = 0 : i64, scratch_operands = 0 : i64, tpu.core_type = #tpu.core_type<tc>, window_params = [{transform_indices = @transform_0, window_bounds = array<i64: 1, 4, 8, 8>}, {transform_indices = @transform_1, window_bounds = array<i64: 1, 4, 8, 8>}, {transform_indices = @transform_2, window_bounds = array<i64: 1, 4, 8, 8>}, {transform_indices = @transform_3, window_bounds = array<i64: 1, 1, 8>}, {transform_indices = @transform_4, window_bounds = array<i64: 1, 4, 8, 8>}]} {
    %c0 = arith.constant 0 : index
    %c0_0 = arith.constant 0 : index
    %c0_1 = arith.constant 0 : index
    %c0_2 = arith.constant 0 : index
    %0 = vector.load %arg1[%c0, %c0_0, %c0_1, %c0_2] : memref<1x4x8x8xbf16, #tpu.memory_space<vmem>>, vector<1x4x8x8xbf16>
    %1 = vector.shape_cast %0 : vector<1x4x8x8xbf16> to vector<4x8x8xbf16>
    %c0_3 = arith.constant 0 : index
    %c0_4 = arith.constant 0 : index
    %c0_5 = arith.constant 0 : index
    %c0_6 = arith.constant 0 : index
    %2 = vector.load %arg2[%c0_3, %c0_4, %c0_5, %c0_6] : memref<1x4x8x8xbf16, #tpu.memory_space<vmem>>, vector<1x4x8x8xbf16>
    %3 = vector.shape_cast %2 : vector<1x4x8x8xbf16> to vector<4x8x8xbf16>
    %c0_7 = arith.constant 0 : index
    %c0_8 = arith.constant 0 : index
    %c0_9 = arith.constant 0 : index
    %c0_10 = arith.constant 0 : index
    %4 = vector.load %arg3[%c0_7, %c0_8, %c0_9, %c0_10] : memref<1x4x8x8xbf16, #tpu.memory_space<vmem>>, vector<1x4x8x8xbf16>
    %5 = vector.shape_cast %4 : vector<1x4x8x8xbf16> to vector<4x8x8xbf16>
    "tpu.trace_start"() <{level = 10 : i32, message = "hqd,hkd->hqk"}> : () -> ()
    %cst = arith.constant dense<0.000000e+00> : vector<4x8x8xf32>
    %6 = tpu.matmul %1, %3, %cst {dimension_numbers = #tpu.dot_dimension_numbers<[2], [2], [1], [1], [0, 0, 0, 1, 1, 1], [0], [0]>} : vector<4x8x8xbf16>, vector<4x8x8xbf16>, vector<4x8x8xf32> -> vector<4x8x8xf32>
    "tpu.trace_stop"() : () -> ()
    %cst_11 = arith.constant 0.353553385 : f32
    %7 = vector.broadcast %cst_11 : f32 to vector<4x8x8xf32>
    %8 = arith.mulf %6, %7 : vector<4x8x8xf32>
    %c0_12 = arith.constant 0 : index
    %c0_13 = arith.constant 0 : index
    %c0_14 = arith.constant 0 : index
    %9 = vector.load %arg4[%c0_12, %c0_13, %c0_14] : memref<1x1x8xf32, #tpu.memory_space<vmem>>, vector<1x1x8xf32>
    %10 = vector.shape_cast %9 : vector<1x1x8xf32> to vector<1x8xf32>
    %11 = vector.shape_cast %10 : vector<1x8xf32> to vector<1x1x8xf32>
    %12 = vector.broadcast %11 : vector<1x1x8xf32> to vector<4x8x8xf32>
    %13 = arith.addf %8, %12 : vector<4x8x8xf32>
    %14 = tpu.iota {dimensions = array<i32: 0>} : vector<8x8xi32>
    %15 = tpu.iota {dimensions = array<i32: 1>} : vector<8x8xi32>
    %16 = arith.cmpi sle, %15, %14 : vector<8x8xi32>
    %17 = vector.shape_cast %16 : vector<8x8xi1> to vector<1x8x8xi1>
    %cst_15 = arith.constant 0xFF800000 : f32
    %18 = vector.shape_cast %17 : vector<1x8x8xi1> to vector<1x8x8xi1>
    %19 = vector.broadcast %18 : vector<1x8x8xi1> to vector<4x8x8xi1>
    %20 = vector.broadcast %cst_15 : f32 to vector<4x8x8xf32>
    %21 = arith.select %19, %13, %20 : vector<4x8x8xi1>, vector<4x8x8xf32>
    %cst_16 = arith.constant dense<0xFF800000> : vector<4x8xf32>
    %22 = vector.multi_reduction <maximumf>, %21, %cst_16 [2] : vector<4x8x8xf32> to vector<4x8xf32>
    %23 = vector.shape_cast %22 : vector<4x8xf32> to vector<4x8x1xf32>
    %24 = vector.broadcast %23 : vector<4x8x1xf32> to vector<4x8x8xf32>
    %25 = arith.subf %21, %24 : vector<4x8x8xf32>
    %26 = math.exp %25 : vector<4x8x8xf32>
    %cst_17 = arith.constant dense<0.000000e+00> : vector<4x8xf32>
    %27 = vector.multi_reduction <add>, %26, %cst_17 [2] : vector<4x8x8xf32> to vector<4x8xf32>
    %28 = vector.shape_cast %27 : vector<4x8xf32> to vector<4x8x1xf32>
    %29 = arith.truncf %26 : vector<4x8x8xf32> to vector<4x8x8xbf16>
    "tpu.trace_start"() <{level = 10 : i32, message = "hqk,hkd->hqd"}> : () -> ()
    %cst_18 = arith.constant dense<0.000000e+00> : vector<4x8x8xf32>
    %30 = tpu.matmul %29, %5, %cst_18 {dimension_numbers = #tpu.dot_dimension_numbers<[2], [1], [1], [2], [0, 0, 0, 1, 1, 2], [0], [0]>} : vector<4x8x8xbf16>, vector<4x8x8xbf16>, vector<4x8x8xf32> -> vector<4x8x8xf32>
    "tpu.trace_stop"() : () -> ()
    %31 = tpu.reciprocal %28 {approx = true} : vector<4x8x1xf32> -> vector<4x8x1xf32>
    %32 = vector.broadcast %31 : vector<4x8x1xf32> to vector<4x8x8xf32>
    %33 = arith.mulf %30, %32 : vector<4x8x8xf32>
    %34 = arith.truncf %33 : vector<4x8x8xf32> to vector<4x8x8xbf16>
    %c0_19 = arith.constant 0 : index
    %c0_20 = arith.constant 0 : index
    %c0_21 = arith.constant 0 : index
    %c0_22 = arith.constant 0 : index
    %35 = vector.load %arg5[%c0_19, %c0_20, %c0_21, %c0_22] : memref<1x4x8x8xbf16, #tpu.memory_space<vmem>>, vector<1x4x8x8xbf16>
    %36 = vector.shape_cast %35 : vector<1x4x8x8xbf16> to vector<4x8x8xbf16>
    %37 = vector.shape_cast %34 : vector<4x8x8xbf16> to vector<1x4x8x8xbf16>
    tpu.vector_store %arg5[%c0_19, %c0_20, %c0_21, %c0_22], %37 {strides = array<i32>} : memref<1x4x8x8xbf16, #tpu.memory_space<vmem>>, vector<1x4x8x8xbf16>,
    return
  }
  func.func @transform_0(%arg0: i32) -> (i32, i32, i32, i32) {
    %c0_i32 = arith.constant 0 : i32
    %c0_i32_0 = arith.constant 0 : i32
    %c0_i32_1 = arith.constant 0 : i32
    %c0_i32_2 = arith.constant 0 : i32
    return %arg0, %c0_i32, %c0_i32_0, %c0_i32_1 : i32, i32, i32, i32
  }
  func.func @transform_1(%arg0: i32) -> (i32, i32, i32, i32) {
    %c0_i32 = arith.constant 0 : i32
    %c0_i32_0 = arith.constant 0 : i32
    %c0_i32_1 = arith.constant 0 : i32
    %c0_i32_2 = arith.constant 0 : i32
    return %arg0, %c0_i32, %c0_i32_0, %c0_i32_1 : i32, i32, i32, i32
  }
  func.func @transform_2(%arg0: i32) -> (i32, i32, i32, i32) {
    %c0_i32 = arith.constant 0 : i32
    %c0_i32_0 = arith.constant 0 : i32
    %c0_i32_1 = arith.constant 0 : i32
    %c0_i32_2 = arith.constant 0 : i32
    return %arg0, %c0_i32, %c0_i32_0, %c0_i32_1 : i32, i32, i32, i32
  }
  func.func @transform_3(%arg0: i32) -> (i32, i32, i32) {
    %c0_i32 = arith.constant 0 : i32
    %c0_i32_0 = arith.constant 0 : i32
    %c0_i32_1 = arith.constant 0 : i32
    return %arg0, %c0_i32, %c0_i32_0 : i32, i32, i32
  }
  func.func @transform_4(%arg0: i32) -> (i32, i32, i32, i32) {
    %c0_i32 = arith.constant 0 : i32
    %c0_i32_0 = arith.constant 0 : i32
    %c0_i32_1 = arith.constant 0 : i32
    %c0_i32_2 = arith.constant 0 : i32
    return %arg0, %c0_i32, %c0_i32_0, %c0_i32_1 : i32, i32, i32, i32
  }
}

module attributes {stable_mosaic.version = 11 : i64} {
  func.func @_linear_kernel(%arg0: i32, %arg1: i32, %arg2: memref<16x32xf32, #tpu.memory_space<vmem>>, %arg3: memref<32x32xf32, #tpu.memory_space<vmem>>, %arg4: memref<1x32xf32, #tpu.memory_space<vmem>>, %arg5: memref<16x32xbf16, #tpu.memory_space<vmem>>) attributes {dimension_semantics = [#tpu.dimension_semantics<parallel>, #tpu.dimension_semantics<parallel>], iteration_bounds = array<i64: 1, 1>, scalar_prefetch = 0 : i64, scratch_operands = 0 : i64, tpu.core_type = #tpu.core_type<tc>, window_params = [{transform_indices = @transform_0, window_bounds = array<i64: 16, 32>}, {transform_indices = @transform_1, window_bounds = array<i64: 32, 32>}, {transform_indices = @transform_2, window_bounds = array<i64: 1, 32>}, {transform_indices = @transform_3, window_bounds = array<i64: 16, 32>}]} {
    %c0 = arith.constant 0 : index
    %c0_0 = arith.constant 0 : index
    %0 = vector.load %arg2[%c0, %c0_0] : memref<16x32xf32, #tpu.memory_space<vmem>>, vector<16x32xf32>
    %1 = arith.truncf %0 : vector<16x32xf32> to vector<16x32xbf16>
    %c0_1 = arith.constant 0 : index
    %c0_2 = arith.constant 0 : index
    %2 = vector.load %arg3[%c0_1, %c0_2] : memref<32x32xf32, #tpu.memory_space<vmem>>, vector<32x32xf32>
    %3 = arith.truncf %2 : vector<32x32xf32> to vector<32x32xbf16>
    %cst = arith.constant dense<0.000000e+00> : vector<16x32xf32>
    %4 = tpu.matmul %1, %3, %cst {dimension_numbers = #tpu.dot_dimension_numbers<[1], [0], [0], [1], [0, 0, 1, 1], [], []>} : vector<16x32xbf16>, vector<32x32xbf16>, vector<16x32xf32> -> vector<16x32xf32>
    %c0_3 = arith.constant 0 : index
    %c0_4 = arith.constant 0 : index
    %5 = vector.load %arg4[%c0_3, %c0_4] : memref<1x32xf32, #tpu.memory_space<vmem>>, vector<1x32xf32>
    %6 = vector.broadcast %5 : vector<1x32xf32> to vector<16x32xf32>
    %7 = arith.addf %4, %6 : vector<16x32xf32>
    %8 = arith.truncf %7 : vector<16x32xf32> to vector<16x32xbf16>
    %c0_5 = arith.constant 0 : index
    %c0_6 = arith.constant 0 : index
    %9 = vector.load %arg5[%c0_5, %c0_6] : memref<16x32xbf16, #tpu.memory_space<vmem>>, vector<16x32xbf16>
    tpu.vector_store %arg5[%c0_5, %c0_6], %8 {strides = array<i32>} : memref<16x32xbf16, #tpu.memory_space<vmem>>, vector<16x32xbf16>,
    return
  }
  func.func @transform_0(%arg0: i32, %arg1: i32) -> (i32, i32) {
    %c0_i32 = arith.constant 0 : i32
    %c0_i32_0 = arith.constant 0 : i32
    return %arg0, %c0_i32 : i32, i32
  }
  func.func @transform_1(%arg0: i32, %arg1: i32) -> (i32, i32) {
    %c0_i32 = arith.constant 0 : i32
    %c0_i32_0 = arith.constant 0 : i32
    return %c0_i32, %arg1 : i32, i32
  }
  func.func @transform_2(%arg0: i32, %arg1: i32) -> (i32, i32) {
    %c0_i32 = arith.constant 0 : i32
    %c0_i32_0 = arith.constant 0 : i32
    return %c0_i32, %arg1 : i32, i32
  }
  func.func @transform_3(%arg0: i32, %arg1: i32) -> (i32, i32) {
    %c0_i32 = arith.constant 0 : i32
    return %arg0, %arg1 : i32, i32
  }
}

module attributes {stable_mosaic.version = 11 : i64} {
  func.func @_proj_residual_ln_kernel(%arg0: i32, %arg1: memref<16x32xbf16, #tpu.memory_space<vmem>>, %arg2: memref<16x32xf32, #tpu.memory_space<vmem>>, %arg3: memref<32x32xf32, #tpu.memory_space<vmem>>, %arg4: memref<1x32xf32, #tpu.memory_space<vmem>>, %arg5: memref<1x32xf32, #tpu.memory_space<vmem>>, %arg6: memref<1x32xf32, #tpu.memory_space<vmem>>, %arg7: memref<16x32xf32, #tpu.memory_space<vmem>>) attributes {dimension_semantics = [#tpu.dimension_semantics<parallel>], iteration_bounds = array<i64: 1>, scalar_prefetch = 0 : i64, scratch_operands = 0 : i64, tpu.core_type = #tpu.core_type<tc>, window_params = [{transform_indices = @transform_0, window_bounds = array<i64: 16, 32>}, {transform_indices = @transform_1, window_bounds = array<i64: 16, 32>}, {pipeline_mode = #tpu.pipeline_mode<synchronous>, transform_indices = @transform_2, window_bounds = array<i64: 32, 32>}, {pipeline_mode = #tpu.pipeline_mode<synchronous>, transform_indices = @transform_3, window_bounds = array<i64: 1, 32>}, {pipeline_mode = #tpu.pipeline_mode<synchronous>, transform_indices = @transform_4, window_bounds = array<i64: 1, 32>}, {pipeline_mode = #tpu.pipeline_mode<synchronous>, transform_indices = @transform_5, window_bounds = array<i64: 1, 32>}, {transform_indices = @transform_6, window_bounds = array<i64: 16, 32>}]} {
    %c0 = arith.constant 0 : index
    %c0_0 = arith.constant 0 : index
    %0 = vector.load %arg1[%c0, %c0_0] : memref<16x32xbf16, #tpu.memory_space<vmem>>, vector<16x32xbf16>
    %c0_1 = arith.constant 0 : index
    %c0_2 = arith.constant 0 : index
    %1 = vector.load %arg3[%c0_1, %c0_2] : memref<32x32xf32, #tpu.memory_space<vmem>>, vector<32x32xf32>
    %2 = arith.truncf %1 : vector<32x32xf32> to vector<32x32xbf16>
    %cst = arith.constant dense<0.000000e+00> : vector<16x32xf32>
    %3 = tpu.matmul %0, %2, %cst {dimension_numbers = #tpu.dot_dimension_numbers<[1], [0], [0], [1], [0, 0, 1, 1], [], []>} : vector<16x32xbf16>, vector<32x32xbf16>, vector<16x32xf32> -> vector<16x32xf32>
    %c0_3 = arith.constant 0 : index
    %c0_4 = arith.constant 0 : index
    %4 = vector.load %arg4[%c0_3, %c0_4] : memref<1x32xf32, #tpu.memory_space<vmem>>, vector<1x32xf32>
    %5 = vector.broadcast %4 : vector<1x32xf32> to vector<16x32xf32>
    %6 = arith.addf %3, %5 : vector<16x32xf32>
    %c0_5 = arith.constant 0 : index
    %c0_6 = arith.constant 0 : index
    %7 = vector.load %arg2[%c0_5, %c0_6] : memref<16x32xf32, #tpu.memory_space<vmem>>, vector<16x32xf32>
    %8 = arith.addf %7, %6 : vector<16x32xf32>
    %cst_7 = arith.constant dense<0.000000e+00> : vector<16xf32>
    %9 = vector.multi_reduction <add>, %8, %cst_7 [1] : vector<16x32xf32> to vector<16xf32>
    %10 = vector.shape_cast %9 : vector<16xf32> to vector<16x1xf32>
    %cst_8 = arith.constant 3.200000e+01 : f32
    %11 = vector.broadcast %cst_8 : f32 to vector<16x1xf32>
    %12 = arith.divf %10, %11 : vector<16x1xf32>
    %13 = vector.broadcast %12 : vector<16x1xf32> to vector<16x32xf32>
    %14 = arith.subf %8, %13 : vector<16x32xf32>
    %15 = arith.mulf %14, %14 : vector<16x32xf32>
    %cst_9 = arith.constant dense<0.000000e+00> : vector<16xf32>
    %16 = vector.multi_reduction <add>, %15, %cst_9 [1] : vector<16x32xf32> to vector<16xf32>
    %17 = vector.shape_cast %16 : vector<16xf32> to vector<16x1xf32>
    %cst_10 = arith.constant 3.200000e+01 : f32
    %18 = vector.broadcast %cst_10 : f32 to vector<16x1xf32>
    %19 = arith.divf %17, %18 : vector<16x1xf32>
    %cst_11 = arith.constant 9.99999974E-6 : f32
    %20 = vector.broadcast %cst_11 : f32 to vector<16x1xf32>
    %21 = arith.addf %19, %20 : vector<16x1xf32>
    %22 = math.rsqrt %21 : vector<16x1xf32>
    %23 = vector.broadcast %22 : vector<16x1xf32> to vector<16x32xf32>
    %24 = arith.mulf %14, %23 : vector<16x32xf32>
    %c0_12 = arith.constant 0 : index
    %c0_13 = arith.constant 0 : index
    %25 = vector.load %arg5[%c0_12, %c0_13] : memref<1x32xf32, #tpu.memory_space<vmem>>, vector<1x32xf32>
    %26 = vector.broadcast %25 : vector<1x32xf32> to vector<16x32xf32>
    %27 = arith.mulf %24, %26 : vector<16x32xf32>
    %c0_14 = arith.constant 0 : index
    %c0_15 = arith.constant 0 : index
    %28 = vector.load %arg6[%c0_14, %c0_15] : memref<1x32xf32, #tpu.memory_space<vmem>>, vector<1x32xf32>
    %29 = vector.broadcast %28 : vector<1x32xf32> to vector<16x32xf32>
    %30 = arith.addf %27, %29 : vector<16x32xf32>
    %c0_16 = arith.constant 0 : index
    %c0_17 = arith.constant 0 : index
    %31 = vector.load %arg7[%c0_16, %c0_17] : memref<16x32xf32, #tpu.memory_space<vmem>>, vector<16x32xf32>
    tpu.vector_store %arg7[%c0_16, %c0_17], %30 {strides = array<i32>} : memref<16x32xf32, #tpu.memory_space<vmem>>, vector<16x32xf32>,
    return
  }
  func.func @transform_0(%arg0: i32) -> (i32, i32) {
    %c0_i32 = arith.constant 0 : i32
    %c0_i32_0 = arith.constant 0 : i32
    return %arg0, %c0_i32 : i32, i32
  }
  func.func @transform_1(%arg0: i32) -> (i32, i32) {
    %c0_i32 = arith.constant 0 : i32
    %c0_i32_0 = arith.constant 0 : i32
    return %arg0, %c0_i32 : i32, i32
  }
  func.func @transform_2(%arg0: i32) -> (i32, i32) {
    %c0_i32 = arith.constant 0 : i32
    %c0_i32_0 = arith.constant 0 : i32
    %c0_i32_1 = arith.constant 0 : i32
    return %c0_i32, %c0_i32_0 : i32, i32
  }
  func.func @transform_3(%arg0: i32) -> (i32, i32) {
    %c0_i32 = arith.constant 0 : i32
    %c0_i32_0 = arith.constant 0 : i32
    %c0_i32_1 = arith.constant 0 : i32
    return %c0_i32, %c0_i32_0 : i32, i32
  }
  func.func @transform_4(%arg0: i32) -> (i32, i32) {
    %c0_i32 = arith.constant 0 : i32
    %c0_i32_0 = arith.constant 0 : i32
    %c0_i32_1 = arith.constant 0 : i32
    return %c0_i32, %c0_i32_0 : i32, i32
  }
  func.func @transform_5(%arg0: i32) -> (i32, i32) {
    %c0_i32 = arith.constant 0 : i32
    %c0_i32_0 = arith.constant 0 : i32
    %c0_i32_1 = arith.constant 0 : i32
    return %c0_i32, %c0_i32_0 : i32, i32
  }
  func.func @transform_6(%arg0: i32) -> (i32, i32) {
    %c0_i32 = arith.constant 0 : i32
    %c0_i32_0 = arith.constant 0 : i32
    return %arg0, %c0_i32 : i32, i32
  }
}

module attributes {stable_mosaic.version = 11 : i64} {
  func.func @_mha_kernel(%arg0: i32, %arg1: memref<1x4x8x8xbf16, #tpu.memory_space<vmem>>, %arg2: memref<1x4x10x8xbf16, #tpu.memory_space<vmem>>, %arg3: memref<1x4x10x8xbf16, #tpu.memory_space<vmem>>, %arg4: memref<1x1x10xf32, #tpu.memory_space<vmem>>, %arg5: memref<1x4x8x8xbf16, #tpu.memory_space<vmem>>) attributes {dimension_semantics = [#tpu.dimension_semantics<parallel>], iteration_bounds = array<i64: 2>, scalar_prefetch = 0 : i64, scratch_operands = 0 : i64, tpu.core_type = #tpu.core_type<tc>, window_params = [{transform_indices = @transform_0, window_bounds = array<i64: 1, 4, 8, 8>}, {transform_indices = @transform_1, window_bounds = array<i64: 1, 4, 10, 8>}, {transform_indices = @transform_2, window_bounds = array<i64: 1, 4, 10, 8>}, {transform_indices = @transform_3, window_bounds = array<i64: 1, 1, 10>}, {transform_indices = @transform_4, window_bounds = array<i64: 1, 4, 8, 8>}]} {
    %c0 = arith.constant 0 : index
    %c0_0 = arith.constant 0 : index
    %c0_1 = arith.constant 0 : index
    %c0_2 = arith.constant 0 : index
    %0 = vector.load %arg1[%c0, %c0_0, %c0_1, %c0_2] : memref<1x4x8x8xbf16, #tpu.memory_space<vmem>>, vector<1x4x8x8xbf16>
    %1 = vector.shape_cast %0 : vector<1x4x8x8xbf16> to vector<4x8x8xbf16>
    %c0_3 = arith.constant 0 : index
    %c0_4 = arith.constant 0 : index
    %c0_5 = arith.constant 0 : index
    %c0_6 = arith.constant 0 : index
    %2 = vector.load %arg2[%c0_3, %c0_4, %c0_5, %c0_6] : memref<1x4x10x8xbf16, #tpu.memory_space<vmem>>, vector<1x4x10x8xbf16>
    %3 = vector.shape_cast %2 : vector<1x4x10x8xbf16> to vector<4x10x8xbf16>
    %c0_7 = arith.constant 0 : index
    %c0_8 = arith.constant 0 : index
    %c0_9 = arith.constant 0 : index
    %c0_10 = arith.constant 0 : index
    %4 = vector.load %arg3[%c0_7, %c0_8, %c0_9, %c0_10] : memref<1x4x10x8xbf16, #tpu.memory_space<vmem>>, vector<1x4x10x8xbf16>
    %5 = vector.shape_cast %4 : vector<1x4x10x8xbf16> to vector<4x10x8xbf16>
    "tpu.trace_start"() <{level = 10 : i32, message = "hqd,hkd->hqk"}> : () -> ()
    %cst = arith.constant dense<0.000000e+00> : vector<4x8x10xf32>
    %6 = tpu.matmul %1, %3, %cst {dimension_numbers = #tpu.dot_dimension_numbers<[2], [2], [1], [1], [0, 0, 0, 1, 1, 1], [0], [0]>} : vector<4x8x8xbf16>, vector<4x10x8xbf16>, vector<4x8x10xf32> -> vector<4x8x10xf32>
    "tpu.trace_stop"() : () -> ()
    %cst_11 = arith.constant 0.353553385 : f32
    %7 = vector.broadcast %cst_11 : f32 to vector<4x8x10xf32>
    %8 = arith.mulf %6, %7 : vector<4x8x10xf32>
    %c0_12 = arith.constant 0 : index
    %c0_13 = arith.constant 0 : index
    %c0_14 = arith.constant 0 : index
    %9 = vector.load %arg4[%c0_12, %c0_13, %c0_14] : memref<1x1x10xf32, #tpu.memory_space<vmem>>, vector<1x1x10xf32>
    %10 = vector.shape_cast %9 : vector<1x1x10xf32> to vector<1x10xf32>
    %11 = vector.shape_cast %10 : vector<1x10xf32> to vector<1x1x10xf32>
    %12 = vector.broadcast %11 : vector<1x1x10xf32> to vector<4x8x10xf32>
    %13 = arith.addf %8, %12 : vector<4x8x10xf32>
    %cst_15 = arith.constant dense<0xFF800000> : vector<4x8xf32>
    %14 = vector.multi_reduction <maximumf>, %13, %cst_15 [2] : vector<4x8x10xf32> to vector<4x8xf32>
    %15 = vector.shape_cast %14 : vector<4x8xf32> to vector<4x8x1xf32>
    %16 = vector.broadcast %15 : vector<4x8x1xf32> to vector<4x8x10xf32>
    %17 = arith.subf %13, %16 : vector<4x8x10xf32>
    %18 = math.exp %17 : vector<4x8x10xf32>
    %cst_16 = arith.constant dense<0.000000e+00> : vector<4x8xf32>
    %19 = vector.multi_reduction <add>, %18, %cst_16 [2] : vector<4x8x10xf32> to vector<4x8xf32>
    %20 = vector.shape_cast %19 : vector<4x8xf32> to vector<4x8x1xf32>
    %21 = arith.truncf %18 : vector<4x8x10xf32> to vector<4x8x10xbf16>
    "tpu.trace_start"() <{level = 10 : i32, message = "hqk,hkd->hqd"}> : () -> ()
    %cst_17 = arith.constant dense<0.000000e+00> : vector<4x8x8xf32>
    %22 = tpu.matmul %21, %5, %cst_17 {dimension_numbers = #tpu.dot_dimension_numbers<[2], [1], [1], [2], [0, 0, 0, 1, 1, 2], [0], [0]>} : vector<4x8x10xbf16>, vector<4x10x8xbf16>, vector<4x8x8xf32> -> vector<4x8x8xf32>
    "tpu.trace_stop"() : () -> ()
    %23 = tpu.reciprocal %20 {approx = true} : vector<4x8x1xf32> -> vector<4x8x1xf32>
    %24 = vector.broadcast %23 : vector<4x8x1xf32> to vector<4x8x8xf32>
    %25 = arith.mulf %22, %24 : vector<4x8x8xf32>
    %26 = arith.truncf %25 : vector<4x8x8xf32> to vector<4x8x8xbf16>
    %c0_18 = arith.constant 0 : index
    %c0_19 = arith.constant 0 : index
    %c0_20 = arith.constant 0 : index
    %c0_21 = arith.constant 0 : index
    %27 = vector.load %arg5[%c0_18, %c0_19, %c0_20, %c0_21] : memref<1x4x8x8xbf16, #tpu.memory_space<vmem>>, vector<1x4x8x8xbf16>
    %28 = vector.shape_cast %27 : vector<1x4x8x8xbf16> to vector<4x8x8xbf16>
    %29 = vector.shape_cast %26 : vector<4x8x8xbf16> to vector<1x4x8x8xbf16>
    tpu.vector_store %arg5[%c0_18, %c0_19, %c0_20, %c0_21], %29 {strides = array<i32>} : memref<1x4x8x8xbf16, #tpu.memory_space<vmem>>, vector<1x4x8x8xbf16>,
    return
  }
  func.func @transform_0(%arg0: i32) -> (i32, i32, i32, i32) {
    %c0_i32 = arith.constant 0 : i32
    %c0_i32_0 = arith.constant 0 : i32
    %c0_i32_1 = arith.constant 0 : i32
    %c0_i32_2 = arith.constant 0 : i32
    return %arg0, %c0_i32, %c0_i32_0, %c0_i32_1 : i32, i32, i32, i32
  }
  func.func @transform_1(%arg0: i32) -> (i32, i32, i32, i32) {
    %c0_i32 = arith.constant 0 : i32
    %c0_i32_0 = arith.constant 0 : i32
    %c0_i32_1 = arith.constant 0 : i32
    %c0_i32_2 = arith.constant 0 : i32
    return %arg0, %c0_i32, %c0_i32_0, %c0_i32_1 : i32, i32, i32, i32
  }
  func.func @transform_2(%arg0: i32) -> (i32, i32, i32, i32) {
    %c0_i32 = arith.constant 0 : i32
    %c0_i32_0 = arith.constant 0 : i32
    %c0_i32_1 = arith.constant 0 : i32
    %c0_i32_2 = arith.constant 0 : i32
    return %arg0, %c0_i32, %c0_i32_0, %c0_i32_1 : i32, i32, i32, i32
  }
  func.func @transform_3(%arg0: i32) -> (i32, i32, i32) {
    %c0_i32 = arith.constant 0 : i32
    %c0_i32_0 = arith.constant 0 : i32
    %c0_i32_1 = arith.constant 0 : i32
    return %arg0, %c0_i32, %c0_i32_0 : i32, i32, i32
  }
  func.func @transform_4(%arg0: i32) -> (i32, i32, i32, i32) {
    %c0_i32 = arith.constant 0 : i32
    %c0_i32_0 = arith.constant 0 : i32
    %c0_i32_1 = arith.constant 0 : i32
    %c0_i32_2 = arith.constant 0 : i32
    return %arg0, %c0_i32, %c0_i32_0, %c0_i32_1 : i32, i32, i32, i32
  }
}

module attributes {stable_mosaic.version = 11 : i64} {
  func.func @_ffn_residual_ln_kernel(%arg0: i32, %arg1: memref<16x32xf32, #tpu.memory_space<vmem>>, %arg2: memref<32x64xf32, #tpu.memory_space<vmem>>, %arg3: memref<1x64xf32, #tpu.memory_space<vmem>>, %arg4: memref<64x32xf32, #tpu.memory_space<vmem>>, %arg5: memref<1x32xf32, #tpu.memory_space<vmem>>, %arg6: memref<1x32xf32, #tpu.memory_space<vmem>>, %arg7: memref<1x32xf32, #tpu.memory_space<vmem>>, %arg8: memref<16x32xf32, #tpu.memory_space<vmem>>) attributes {dimension_semantics = [#tpu.dimension_semantics<parallel>], iteration_bounds = array<i64: 1>, scalar_prefetch = 0 : i64, scratch_operands = 0 : i64, tpu.core_type = #tpu.core_type<tc>, window_params = [{transform_indices = @transform_0, window_bounds = array<i64: 16, 32>}, {pipeline_mode = #tpu.pipeline_mode<synchronous>, transform_indices = @transform_1, window_bounds = array<i64: 32, 64>}, {pipeline_mode = #tpu.pipeline_mode<synchronous>, transform_indices = @transform_2, window_bounds = array<i64: 1, 64>}, {pipeline_mode = #tpu.pipeline_mode<synchronous>, transform_indices = @transform_3, window_bounds = array<i64: 64, 32>}, {pipeline_mode = #tpu.pipeline_mode<synchronous>, transform_indices = @transform_4, window_bounds = array<i64: 1, 32>}, {pipeline_mode = #tpu.pipeline_mode<synchronous>, transform_indices = @transform_5, window_bounds = array<i64: 1, 32>}, {pipeline_mode = #tpu.pipeline_mode<synchronous>, transform_indices = @transform_6, window_bounds = array<i64: 1, 32>}, {transform_indices = @transform_7, window_bounds = array<i64: 16, 32>}]} {
    %c0 = arith.constant 0 : index
    %c0_0 = arith.constant 0 : index
    %0 = vector.load %arg1[%c0, %c0_0] : memref<16x32xf32, #tpu.memory_space<vmem>>, vector<16x32xf32>
    %1 = arith.truncf %0 : vector<16x32xf32> to vector<16x32xbf16>
    %c0_1 = arith.constant 0 : index
    %c0_2 = arith.constant 0 : index
    %2 = vector.load %arg2[%c0_1, %c0_2] : memref<32x64xf32, #tpu.memory_space<vmem>>, vector<32x64xf32>
    %3 = arith.truncf %2 : vector<32x64xf32> to vector<32x64xbf16>
    %cst = arith.constant dense<0.000000e+00> : vector<16x64xf32>
    %4 = tpu.matmul %1, %3, %cst {dimension_numbers = #tpu.dot_dimension_numbers<[1], [0], [0], [1], [0, 0, 1, 1], [], []>} : vector<16x32xbf16>, vector<32x64xbf16>, vector<16x64xf32> -> vector<16x64xf32>
    %c0_3 = arith.constant 0 : index
    %c0_4 = arith.constant 0 : index
    %5 = vector.load %arg3[%c0_3, %c0_4] : memref<1x64xf32, #tpu.memory_space<vmem>>, vector<1x64xf32>
    %6 = vector.broadcast %5 : vector<1x64xf32> to vector<16x64xf32>
    %7 = arith.addf %4, %6 : vector<16x64xf32>
    %cst_5 = arith.constant 0.000000e+00 : f32
    %8 = vector.broadcast %cst_5 : f32 to vector<16x64xf32>
    %9 = arith.maximumf %7, %8 : vector<16x64xf32>
    %10 = arith.truncf %9 : vector<16x64xf32> to vector<16x64xbf16>
    %c0_6 = arith.constant 0 : index
    %c0_7 = arith.constant 0 : index
    %11 = vector.load %arg4[%c0_6, %c0_7] : memref<64x32xf32, #tpu.memory_space<vmem>>, vector<64x32xf32>
    %12 = arith.truncf %11 : vector<64x32xf32> to vector<64x32xbf16>
    %cst_8 = arith.constant dense<0.000000e+00> : vector<16x32xf32>
    %13 = tpu.matmul %10, %12, %cst_8 {dimension_numbers = #tpu.dot_dimension_numbers<[1], [0], [0], [1], [0, 0, 1, 1], [], []>} : vector<16x64xbf16>, vector<64x32xbf16>, vector<16x32xf32> -> vector<16x32xf32>
    %c0_9 = arith.constant 0 : index
    %c0_10 = arith.constant 0 : index
    %14 = vector.load %arg5[%c0_9, %c0_10] : memref<1x32xf32, #tpu.memory_space<vmem>>, vector<1x32xf32>
    %15 = vector.broadcast %14 : vector<1x32xf32> to vector<16x32xf32>
    %16 = arith.addf %13, %15 : vector<16x32xf32>
    %17 = arith.addf %0, %16 : vector<16x32xf32>
    %cst_11 = arith.constant dense<0.000000e+00> : vector<16xf32>
    %18 = vector.multi_reduction <add>, %17, %cst_11 [1] : vector<16x32xf32> to vector<16xf32>
    %19 = vector.shape_cast %18 : vector<16xf32> to vector<16x1xf32>
    %cst_12 = arith.constant 3.200000e+01 : f32
    %20 = vector.broadcast %cst_12 : f32 to vector<16x1xf32>
    %21 = arith.divf %19, %20 : vector<16x1xf32>
    %22 = vector.broadcast %21 : vector<16x1xf32> to vector<16x32xf32>
    %23 = arith.subf %17, %22 : vector<16x32xf32>
    %24 = arith.mulf %23, %23 : vector<16x32xf32>
    %cst_13 = arith.constant dense<0.000000e+00> : vector<16xf32>
    %25 = vector.multi_reduction <add>, %24, %cst_13 [1] : vector<16x32xf32> to vector<16xf32>
    %26 = vector.shape_cast %25 : vector<16xf32> to vector<16x1xf32>
    %cst_14 = arith.constant 3.200000e+01 : f32
    %27 = vector.broadcast %cst_14 : f32 to vector<16x1xf32>
    %28 = arith.divf %26, %27 : vector<16x1xf32>
    %cst_15 = arith.constant 9.99999974E-6 : f32
    %29 = vector.broadcast %cst_15 : f32 to vector<16x1xf32>
    %30 = arith.addf %28, %29 : vector<16x1xf32>
    %31 = math.rsqrt %30 : vector<16x1xf32>
    %32 = vector.broadcast %31 : vector<16x1xf32> to vector<16x32xf32>
    %33 = arith.mulf %23, %32 : vector<16x32xf32>
    %c0_16 = arith.constant 0 : index
    %c0_17 = arith.constant 0 : index
    %34 = vector.load %arg6[%c0_16, %c0_17] : memref<1x32xf32, #tpu.memory_space<vmem>>, vector<1x32xf32>
    %35 = vector.broadcast %34 : vector<1x32xf32> to vector<16x32xf32>
    %36 = arith.mulf %33, %35 : vector<16x32xf32>
    %c0_18 = arith.constant 0 : index
    %c0_19 = arith.constant 0 : index
    %37 = vector.load %arg7[%c0_18, %c0_19] : memref<1x32xf32, #tpu.memory_space<vmem>>, vector<1x32xf32>
    %38 = vector.broadcast %37 : vector<1x32xf32> to vector<16x32xf32>
    %39 = arith.addf %36, %38 : vector<16x32xf32>
    %c0_20 = arith.constant 0 : index
    %c0_21 = arith.constant 0 : index
    %40 = vector.load %arg8[%c0_20, %c0_21] : memref<16x32xf32, #tpu.memory_space<vmem>>, vector<16x32xf32>
    tpu.vector_store %arg8[%c0_20, %c0_21], %39 {strides = array<i32>} : memref<16x32xf32, #tpu.memory_space<vmem>>, vector<16x32xf32>,
    return
  }
  func.func @transform_0(%arg0: i32) -> (i32, i32) {
    %c0_i32 = arith.constant 0 : i32
    %c0_i32_0 = arith.constant 0 : i32
    return %arg0, %c0_i32 : i32, i32
  }
  func.func @transform_1(%arg0: i32) -> (i32, i32) {
    %c0_i32 = arith.constant 0 : i32
    %c0_i32_0 = arith.constant 0 : i32
    %c0_i32_1 = arith.constant 0 : i32
    return %c0_i32, %c0_i32_0 : i32, i32
  }
  func.func @transform_2(%arg0: i32) -> (i32, i32) {
    %c0_i32 = arith.constant 0 : i32
    %c0_i32_0 = arith.constant 0 : i32
    %c0_i32_1 = arith.constant 0 : i32
    return %c0_i32, %c0_i32_0 : i32, i32
  }
  func.func @transform_3(%arg0: i32) -> (i32, i32) {
    %c0_i32 = arith.constant 0 : i32
    %c0_i32_0 = arith.constant 0 : i32
    %c0_i32_1 = arith.constant 0 : i32
    return %c0_i32, %c0_i32_0 : i32, i32
  }
  func.func @transform_4(%arg0: i32) -> (i32, i32) {
    %c0_i32 = arith.constant 0 : i32
    %c0_i32_0 = arith.constant 0 : i32
    %c0_i32_1 = arith.constant 0 : i32
    return %c0_i32, %c0_i32_0 : i32, i32
  }
  func.func @transform_5(%arg0: i32) -> (i32, i32) {
    %c0_i32 = arith.constant 0 : i32
    %c0_i32_0 = arith.constant 0 : i32
    %c0_i32_1 = arith.constant 0 : i32
    return %c0_i32, %c0_i32_0 : i32, i32
  }
  func.func @transform_6(%arg0: i32) -> (i32, i32) {
    %c0_i32 = arith.constant 0 : i32
    %c0_i32_0 = arith.constant 0 : i32
    %c0_i32_1 = arith.constant 0 : i32
    return %c0_i32, %c0_i32_0 : i32, i32
  }
  func.func @transform_7(%arg0: i32) -> (i32, i32) {
    %c0_i32 = arith.constant 0 : i32
    %c0_i32_0 = arith.constant 0 : i32
    return %arg0, %c0_i32 : i32, i32
  }
}

module attributes {stable_mosaic.version = 11 : i64} {
  func.func @_layernorm_kernel(%arg0: i32, %arg1: memref<16x32xf32, #tpu.memory_space<vmem>>, %arg2: memref<1x32xf32, #tpu.memory_space<vmem>>, %arg3: memref<1x32xf32, #tpu.memory_space<vmem>>, %arg4: memref<16x32xf32, #tpu.memory_space<vmem>>) attributes {dimension_semantics = [#tpu.dimension_semantics<parallel>], iteration_bounds = array<i64: 1>, scalar_prefetch = 0 : i64, scratch_operands = 0 : i64, tpu.core_type = #tpu.core_type<tc>, window_params = [{transform_indices = @transform_0, window_bounds = array<i64: 16, 32>}, {pipeline_mode = #tpu.pipeline_mode<synchronous>, transform_indices = @transform_1, window_bounds = array<i64: 1, 32>}, {pipeline_mode = #tpu.pipeline_mode<synchronous>, transform_indices = @transform_2, window_bounds = array<i64: 1, 32>}, {transform_indices = @transform_3, window_bounds = array<i64: 16, 32>}]} {
    %c0 = arith.constant 0 : index
    %c0_0 = arith.constant 0 : index
    %0 = vector.load %arg1[%c0, %c0_0] : memref<16x32xf32, #tpu.memory_space<vmem>>, vector<16x32xf32>
    %cst = arith.constant dense<0.000000e+00> : vector<16xf32>
    %1 = vector.multi_reduction <add>, %0, %cst [1] : vector<16x32xf32> to vector<16xf32>
    %2 = vector.shape_cast %1 : vector<16xf32> to vector<16x1xf32>
    %cst_1 = arith.constant 3.200000e+01 : f32
    %3 = vector.broadcast %cst_1 : f32 to vector<16x1xf32>
    %4 = arith.divf %2, %3 : vector<16x1xf32>
    %5 = vector.broadcast %4 : vector<16x1xf32> to vector<16x32xf32>
    %6 = arith.subf %0, %5 : vector<16x32xf32>
    %7 = arith.mulf %6, %6 : vector<16x32xf32>
    %cst_2 = arith.constant dense<0.000000e+00> : vector<16xf32>
    %8 = vector.multi_reduction <add>, %7, %cst_2 [1] : vector<16x32xf32> to vector<16xf32>
    %9 = vector.shape_cast %8 : vector<16xf32> to vector<16x1xf32>
    %cst_3 = arith.constant 3.200000e+01 : f32
    %10 = vector.broadcast %cst_3 : f32 to vector<16x1xf32>
    %11 = arith.divf %9, %10 : vector<16x1xf32>
    %cst_4 = arith.constant 9.99999974E-6 : f32
    %12 = vector.broadcast %cst_4 : f32 to vector<16x1xf32>
    %13 = arith.addf %11, %12 : vector<16x1xf32>
    %14 = math.rsqrt %13 : vector<16x1xf32>
    %15 = vector.broadcast %14 : vector<16x1xf32> to vector<16x32xf32>
    %16 = arith.mulf %6, %15 : vector<16x32xf32>
    %c0_5 = arith.constant 0 : index
    %c0_6 = arith.constant 0 : index
    %17 = vector.load %arg2[%c0_5, %c0_6] : memref<1x32xf32, #tpu.memory_space<vmem>>, vector<1x32xf32>
    %18 = vector.broadcast %17 : vector<1x32xf32> to vector<16x32xf32>
    %19 = arith.mulf %16, %18 : vector<16x32xf32>
    %c0_7 = arith.constant 0 : index
    %c0_8 = arith.constant 0 : index
    %20 = vector.load %arg3[%c0_7, %c0_8] : memref<1x32xf32, #tpu.memory_space<vmem>>, vector<1x32xf32>
    %21 = vector.broadcast %20 : vector<1x32xf32> to vector<16x32xf32>
    %22 = arith.addf %19, %21 : vector<16x32xf32>
    %c0_9 = arith.constant 0 : index
    %c0_10 = arith.constant 0 : index
    %23 = vector.load %arg4[%c0_9, %c0_10] : memref<16x32xf32, #tpu.memory_space<vmem>>, vector<16x32xf32>
    tpu.vector_store %arg4[%c0_9, %c0_10], %22 {strides = array<i32>} : memref<16x32xf32, #tpu.memory_space<vmem>>, vector<16x32xf32>,
    return
  }
  func.func @transform_0(%arg0: i32) -> (i32, i32) {
    %c0_i32 = arith.constant 0 : i32
    %c0_i32_0 = arith.constant 0 : i32
    return %arg0, %c0_i32 : i32, i32
  }
  func.func @transform_1(%arg0: i32) -> (i32, i32) {
    %c0_i32 = arith.constant 0 : i32
    %c0_i32_0 = arith.constant 0 : i32
    %c0_i32_1 = arith.constant 0 : i32
    return %c0_i32, %c0_i32_0 : i32, i32
  }
  func.func @transform_2(%arg0: i32) -> (i32, i32) {
    %c0_i32 = arith.constant 0 : i32
    %c0_i32_0 = arith.constant 0 : i32
    %c0_i32_1 = arith.constant 0 : i32
    return %c0_i32, %c0_i32_0 : i32, i32
  }
  func.func @transform_3(%arg0: i32) -> (i32, i32) {
    %c0_i32 = arith.constant 0 : i32
    %c0_i32_0 = arith.constant 0 : i32
    return %arg0, %c0_i32 : i32, i32
  }
}

module attributes {stable_mosaic.version = 11 : i64} {
  func.func @_linear_kernel(%arg0: i32, %arg1: i32, %arg2: memref<16x32xf32, #tpu.memory_space<vmem>>, %arg3: memref<32x48xf32, #tpu.memory_space<vmem>>, %arg4: memref<1x48xf32, #tpu.memory_space<vmem>>, %arg5: memref<16x48xf32, #tpu.memory_space<vmem>>) attributes {dimension_semantics = [#tpu.dimension_semantics<parallel>, #tpu.dimension_semantics<parallel>], iteration_bounds = array<i64: 1, 1>, scalar_prefetch = 0 : i64, scratch_operands = 0 : i64, tpu.core_type = #tpu.core_type<tc>, window_params = [{transform_indices = @transform_0, window_bounds = array<i64: 16, 32>}, {transform_indices = @transform_1, window_bounds = array<i64: 32, 48>}, {transform_indices = @transform_2, window_bounds = array<i64: 1, 48>}, {transform_indices = @transform_3, window_bounds = array<i64: 16, 48>}]} {
    %c0 = arith.constant 0 : index
    %c0_0 = arith.constant 0 : index
    %0 = vector.load %arg2[%c0, %c0_0] : memref<16x32xf32, #tpu.memory_space<vmem>>, vector<16x32xf32>
    %1 = arith.truncf %0 : vector<16x32xf32> to vector<16x32xbf16>
    %c0_1 = arith.constant 0 : index
    %c0_2 = arith.constant 0 : index
    %2 = vector.load %arg3[%c0_1, %c0_2] : memref<32x48xf32, #tpu.memory_space<vmem>>, vector<32x48xf32>
    %3 = arith.truncf %2 : vector<32x48xf32> to vector<32x48xbf16>
    %cst = arith.constant dense<0.000000e+00> : vector<16x48xf32>
    %4 = tpu.matmul %1, %3, %cst {dimension_numbers = #tpu.dot_dimension_numbers<[1], [0], [0], [1], [0, 0, 1, 1], [], []>} : vector<16x32xbf16>, vector<32x48xbf16>, vector<16x48xf32> -> vector<16x48xf32>
    %c0_3 = arith.constant 0 : index
    %c0_4 = arith.constant 0 : index
    %5 = vector.load %arg4[%c0_3, %c0_4] : memref<1x48xf32, #tpu.memory_space<vmem>>, vector<1x48xf32>
    %6 = vector.broadcast %5 : vector<1x48xf32> to vector<16x48xf32>
    %7 = arith.addf %4, %6 : vector<16x48xf32>
    %c0_5 = arith.constant 0 : index
    %c0_6 = arith.constant 0 : index
    %8 = vector.load %arg5[%c0_5, %c0_6] : memref<16x48xf32, #tpu.memory_space<vmem>>, vector<16x48xf32>
    tpu.vector_store %arg5[%c0_5, %c0_6], %7 {strides = array<i32>} : memref<16x48xf32, #tpu.memory_space<vmem>>, vector<16x48xf32>,
    return
  }
  func.func @transform_0(%arg0: i32, %arg1: i32) -> (i32, i32) {
    %c0_i32 = arith.constant 0 : i32
    %c0_i32_0 = arith.constant 0 : i32
    return %arg0, %c0_i32 : i32, i32
  }
  func.func @transform_1(%arg0: i32, %arg1: i32) -> (i32, i32) {
    %c0_i32 = arith.constant 0 : i32
    %c0_i32_0 = arith.constant 0 : i32
    return %c0_i32, %arg1 : i32, i32
  }
  func.func @transform_2(%arg0: i32, %arg1: i32) -> (i32, i32) {
    %c0_i32 = arith.constant 0 : i32
    %c0_i32_0 = arith.constant 0 : i32
    return %c0_i32, %arg1 : i32, i32
  }
  func.func @transform_3(%arg0: i32, %arg1: i32) -> (i32, i32) {
    %c0_i32 = arith.constant 0 : i32
    return %arg0, %arg1 : i32, i32
  }
}

</mosaic_0001>

<llo_original>
// kernel: transformer_forward.29
$region0: #{transformer_forward.29}
  #allocation0 [shape = 'u32[]', space=smem, size = 0x4, offset = 0x4, fixed_abs, tag = 'smem constant byte address 0x4 - core index']
  #allocation1 [shape = 'u32[144,128]{1,0:T(1,128)}', space=vmem, size = 0x12000, scoped, tag = 'internal scratch']
  %s0 = inlined_call_operand.vmem [shape: f32[20,32], index: 0, kind: input, shape index: {}]
  %s1 = inlined_call_operand.vmem [shape: f32[1,32], index: 1, kind: input, shape index: {}]
  %s2 = inlined_call_operand.vmem [shape: f32[20,32], index: 2, kind: output, shape index: {}]
  %s3 = sld [smem:[#allocation0]]
  $region18: #{transformer_forward.29} parent=0
    _
  %s5 = ssub.s32 1, %s3
  %s6 = scalar_select 0, %s5, %s3
  // Predicated region
  $region2: #{transformer_forward.29} parent=0 // pred_check
    _
  $region3: #{transformer_forward.29} parent=0 // pred_check_branch
    %8 = sbr.rel (0) target = $region5
  $region4: #{transformer_forward.29} parent=0 // pred_region
    _
  $region5: #{transformer_forward.29} parent=0 // pred_fallthru
    _
  // Predicated region
  $region6: #{transformer_forward.29} parent=0 // pred_check
    _
  $region7: #{transformer_forward.29} parent=0 // pred_check_branch
    %10 = sbr.rel (0) target = $region9
  $region8: #{transformer_forward.29} parent=0 // pred_region
    _
  $region9: #{transformer_forward.29} parent=0 // pred_fallthru
    _
  %v11 = vld [vmem:[%s0] sm:$0xff]
  %v12 = vld [vmem:[%s0 + $0x8] sm:$0xff]
  %v13 = vld [vmem:[%s0 + $0x10] sm:$0xf]
  %v14 = vmul.f32 %v11, 5.656854
  %v15 = vmul.f32 %v12, 5.656854
  %v16 = vmul.f32 %v13, 5.656854
  %v17 = vld [vmem:[%s1] sm:$0x1]
  %v19 = vlaneseq
  %v20 = vshrl.u32 %v19, 7
  %v21 = vsub.s32 0, %v20
  %v22 = vrot.slane %v17, %v21
  %v24 = vadd.f32 %v14, %v22
  %v25 = vadd.f32 %v15, %v22
  %v26 = vadd.f32 %v16, %v22
  %vm27 = vcmask 261120
  %28 = vst.msk [vmem:[%s2] sm:$0xff] %vm27, %v24
  %29 = vst.msk [vmem:[%s2 + $0x8] sm:$0xff] %vm27, %v25
  %vm30 = vcmask 257024
  %31 = vst.msk [vmem:[%s2 + $0x10] sm:$0xf] %vm30, %v26
  // Predicated region
  $region10: #{transformer_forward.29} parent=0 // pred_check
    _
  $region11: #{transformer_forward.29} parent=0 // pred_check_branch
    %33 = sbr.rel (0) target = $region13
  $region12: #{transformer_forward.29} parent=0 // pred_region
    _
  $region13: #{transformer_forward.29} parent=0 // pred_fallthru
    _
  // Predicated region
  $region14: #{transformer_forward.29} parent=0 // pred_check
    _
  $region15: #{transformer_forward.29} parent=0 // pred_check_branch
    %35 = sbr.rel (0) target = $region17
  $region16: #{transformer_forward.29} parent=0 // pred_region
    _
  $region17: #{transformer_forward.29} parent=0 // pred_fallthru
    _

// kernel: transformer_forward.31
$region0: #{transformer_forward.31}
  #allocation0 [shape = 'u32[]', space=smem, size = 0x4, offset = 0x4, fixed_abs, tag = 'smem constant byte address 0x4 - core index']
  #allocation1 [shape = 'u32[144,128]{1,0:T(1,128)}', space=vmem, size = 0x12000, scoped, tag = 'internal scratch']
  %s0 = inlined_call_operand.vmem [shape: f32[20,32], index: 0, kind: input, shape index: {}]
  %s1 = inlined_call_operand.vmem [shape: f32[32,96], index: 1, kind: input, shape index: {}]
  %s2 = inlined_call_operand.vmem [shape: f32[1,96], index: 2, kind: input, shape index: {}]
  %s3 = inlined_call_operand.vmem [shape: bf16[20,96], index: 3, kind: output, shape index: {}]
  %s4 = sld [smem:[#allocation0]]
  $region22: #{transformer_forward.31} parent=0
    _
  %s6 = ssub.s32 1, %s4
  %s7 = scalar_select 0, %s6, %s4
  // Predicated region
  $region2: #{transformer_forward.31} parent=0 // pred_check
    _
  $region3: #{transformer_forward.31} parent=0 // pred_check_branch
    %9 = sbr.rel (0) target = $region5
  $region4: #{transformer_forward.31} parent=0 // pred_region
    _
  $region5: #{transformer_forward.31} parent=0 // pred_fallthru
    _
  // Predicated region
  $region6: #{transformer_forward.31} parent=0 // pred_check
    _
  $region7: #{transformer_forward.31} parent=0 // pred_check_branch
    %11 = sbr.rel (0) target = $region9
  $region8: #{transformer_forward.31} parent=0 // pred_region
    _
  $region9: #{transformer_forward.31} parent=0 // pred_fallthru
    _
  // Predicated region
  $region10: #{transformer_forward.31} parent=0 // pred_check
    _
  $region11: #{transformer_forward.31} parent=0 // pred_check_branch
    %13 = sbr.rel (0) target = $region13
  $region12: #{transformer_forward.31} parent=0 // pred_region
    _
  $region13: #{transformer_forward.31} parent=0 // pred_fallthru
    _
  %v15 = vld [vmem:[%s0] sm:$0xff]
  %v16 = vld [vmem:[%s0 + $0x8] sm:$0xff]
  %v17 = vld [vmem:[%s0 + $0x10] sm:$0xf]
  %v18 = vpack.c.bf16 %v16, %v15
  %v19 = vpack.c.bf16 %v17, %v17
  %v20 = vld [vmem:[%s1] sm:$0xff]
  %v21 = vld [vmem:[%s1 + $0x8] sm:$0xff]
  %v22 = vld [vmem:[%s1 + $0x10] sm:$0xff]
  %v23 = vld [vmem:[%s1 + $0x18] sm:$0xff]
  %v24 = vpack.c.bf16 %v21, %v20
  %v25 = vpack.c.bf16 %v23, %v22
  %v26 = vld [vmem:[%s2] sm:$0x1]
  %v28 = vlaneseq
  %v29 = vshrl.u32 %v28, 7
  %v30 = vsub.s32 0, %v29
  %v31 = vrot.slane %v26, %v30
  %vm33 = vcmask 261120
  %v35 = vsel %vm33, %v18, 0
  %v38 = vsel %vm33, %v19, 0
  %40 = vmatprep.subr.bf16.mxu0 0
  %41 = vmatpush1.bf16.msra.mxu0 0
  %42 = vmatprep.subr.bf16.mxu0 0
  %43 = vmatpush1.bf16.msra.mxu0 0
  %44 = vmatprep.subr.bf16.mxu0 0
  %45 = vmatpush1.bf16.msra.mxu0 0
  %46 = vmatprep.subr.bf16.mxu0 0
  %47 = vmatpush1.bf16.msra.mxu0 0
  %48 = vmatprep.subr.bf16.mxu0 0
  %49 = vmatpush1.bf16.msra.mxu0 0
  %50 = vmatprep.subr.bf16.mxu0 0
  %51 = vmatpush1.bf16.msra.mxu0 0
  %52 = vmatprep.subr.bf16.mxu0 0
  %53 = vmatpush1.bf16.msra.mxu0 %v25
  %54 = vmatprep.subr.bf16.mxu0 0
  %55 = vmatpush1.bf16.msra.mxu0 %v24
  %56 = vmatprep.subr.bf16.mxu0 0
  %57 = vmatpush2.bf16.msra.mxu0 0
  %58 = vmatprep.subr.bf16.mxu0 0
  %59 = vmatpush2.bf16.msra.mxu0 0
  %60 = vmatprep.subr.bf16.mxu0 0
  %61 = vmatpush2.bf16.msra.mxu0 0
  %62 = vmatprep.subr.bf16.mxu0 0
  %63 = vmatpush2.bf16.msra.mxu0 0
  %64 = vmatprep.subr.bf16.mxu0 0
  %65 = vmatpush2.bf16.msra.mxu0 0
  %66 = vmatprep.subr.bf16.mxu0 0
  %67 = vmatpush2.bf16.msra.mxu0 0
  %68 = vmatprep.subr.bf16.mxu0 0
  %69 = vmatpush2.bf16.msra.mxu0 0
  %70 = vmatprep.subr.bf16.mxu0 0
  %71 = vmatpush2.bf16.msra.mxu0 0
  %72 = vmatprep.mubr.bf16.mxu0 0
  %73 = vmatmul.mubr.bf16.gmra.mxu0 %v35
  %v74 = vpop.f32.mrf.mxu0
  %v75 = vadd.f32 %v31, %v74
  %v76 = vpop.f32.mrf.mxu0
  %v77 = vpop.f32.mrf.mxu0
  %v78 = vadd.f32 %v31, %v77
  %v79 = vpop.f32.mrf.mxu0
  %80 = vmatprep.mubr.bf16.mxu0 0
  %81 = vmatmul.mubr.bf16.gmra.mxu0 %v38
  %v82 = vpop.f32.mrf.mxu0
  %v83 = vadd.f32 %v31, %v82
  %v84 = vpop.f32.mrf.mxu0
  %v85 = vpop.f32.mrf.mxu0
  %v86 = vpop.f32.mrf.mxu0
  %87 = vdwg.mxu0
  %v88 = vpack.c.bf16 %v78, %v75
  %v89 = vpack.c.bf16 %v83, %v83
  %v92 = vunpack.c.l.b16 %v88
  %v93 = vunpack.c.h.b16 %v88
  %v94 = vunpack.c.l.b16 %v89
  %v95 = vpack.c.b16 %v92, %v92
  %v96 = vpack.c.b16 %v93, %v93
  %v97 = vpack.c.b16 %v94, %v94
  %vm101 = vcmask 781312
  %102 = vst.msk [vmem:[%s3] sm:$0xf] %vm101, %v95
  %103 = vst.msk [vmem:[%s3 + $0x4] sm:$0xf] %vm101, %v96
  %vm104 = vcmask 779264
  %105 = vst.msk [vmem:[%s3 + $0x8] sm:$0x3] %vm104, %v97
  // Predicated region
  $region14: #{transformer_forward.31} parent=0 // pred_check
    _
  $region15: #{transformer_forward.31} parent=0 // pred_check_branch
    %107 = sbr.rel (0) target = $region17
  $region16: #{transformer_forward.31} parent=0 // pred_region
    _
  $region17: #{transformer_forward.31} parent=0 // pred_fallthru
    _
  // Predicated region
  $region18: #{transformer_forward.31} parent=0 // pred_check
    _
  $region19: #{transformer_forward.31} parent=0 // pred_check_branch
    %109 = sbr.rel (0) target = $region21
  $region20: #{transformer_forward.31} parent=0 // pred_region
    _
  $region21: #{transformer_forward.31} parent=0 // pred_fallthru
    _

// kernel: transformer_forward.39
$region0: #{transformer_forward.39}
  #allocation0 [shape = 'u32[]', space=smem, size = 0x4, offset = 0x4, fixed_abs, tag = 'smem constant byte address 0x4 - core index']
  #allocation1 [shape = 'u32[144,128]{1,0:T(1,128)}', space=vmem, size = 0x12000, scoped, tag = 'internal scratch']
  %s0 = inlined_call_operand.vmem [shape: f32[20,32], index: 0, kind: input, shape index: {}]
  %s1 = inlined_call_operand.vmem [shape: f32[1,32], index: 1, kind: input, shape index: {}]
  %s2 = inlined_call_operand.vmem [shape: f32[1,32], index: 2, kind: input, shape index: {}]
  %s3 = inlined_call_operand.vmem [shape: f32[20,32], index: 3, kind: output, shape index: {}]
  %s4 = sld [smem:[#allocation0]]
  $region22: #{transformer_forward.39} parent=0
    _
  %s6 = ssub.s32 1, %s4
  %s7 = scalar_select 0, %s6, %s4
  // Predicated region
  $region2: #{transformer_forward.39} parent=0 // pred_check
    _
  $region3: #{transformer_forward.39} parent=0 // pred_check_branch
    %9 = sbr.rel (0) target = $region5
  $region4: #{transformer_forward.39} parent=0 // pred_region
    _
  $region5: #{transformer_forward.39} parent=0 // pred_fallthru
    _
  // Predicated region
  $region6: #{transformer_forward.39} parent=0 // pred_check
    _
  $region7: #{transformer_forward.39} parent=0 // pred_check_branch
    %11 = sbr.rel (0) target = $region9
  $region8: #{transformer_forward.39} parent=0 // pred_region
    _
  $region9: #{transformer_forward.39} parent=0 // pred_fallthru
    _
  // Predicated region
  $region10: #{transformer_forward.39} parent=0 // pred_check
    _
  $region11: #{transformer_forward.39} parent=0 // pred_check_branch
    %13 = sbr.rel (0) target = $region13
  $region12: #{transformer_forward.39} parent=0 // pred_region
    _
  $region13: #{transformer_forward.39} parent=0 // pred_fallthru
    _
  %v14 = vld [vmem:[%s0] sm:$0xff]
  %v15 = vld [vmem:[%s0 + $0x8] sm:$0xff]
  %v16 = vld [vmem:[%s0 + $0x10] sm:$0xf]
  %vm17 = vcmask 261120
  %v18 = vsel %vm17, %v14, 0.0
  %19 = vadd.xlane.f32.xlu0 %v18
  %v20 = vpop.xlane.xlu0 %19
  %v21 = vsel %vm17, %v15, 0.0
  %22 = vadd.xlane.f32.xlu0 %v21
  %v23 = vpop.xlane.xlu0 %22
  %vm24 = vcmask 257024
  %v25 = vsel %vm24, %v16, 0.0
  %26 = vadd.xlane.f32.xlu0 %v25
  %v27 = vpop.xlane.xlu0 %26
  %v28 = vrcp.pop 32.0
  %v29 = vmul.f32 %v20, %v28
  %v30 = vmul.f32 %v23, %v28
  %v31 = vmul.f32 %v27, %v28
  %v32 = vsub.f32 %v14, %v29
  %v33 = vsub.f32 %v15, %v30
  %v34 = vsub.f32 %v16, %v31
  %v35 = vmul.f32 %v32, %v32
  %v36 = vmul.f32 %v33, %v33
  %v37 = vmul.f32 %v34, %v34
  %v38 = vsel %vm17, %v35, 0.0
  %39 = vadd.xlane.f32.xlu0 %v38
  %v40 = vpop.xlane.xlu0 %39
  %v41 = vsel %vm17, %v36, 0.0
  %42 = vadd.xlane.f32.xlu0 %v41
  %v43 = vpop.xlane.xlu0 %42
  %v44 = vsel %vm24, %v37, 0.0
  %45 = vadd.xlane.f32.xlu0 %v44
  %v46 = vpop.xlane.xlu0 %45
  %v47 = vmul.f32 %v40, %v28
  %v48 = vmul.f32 %v43, %v28
  %v49 = vmul.f32 %v46, %v28
  %v50 = vadd.f32 %v47, 1e-05
  %v51 = vadd.f32 %v48, 1e-05
  %v52 = vadd.f32 %v49, 1e-05
  %v53 = vrsqrt.pop %v50
  %v54 = vrsqrt.pop %v51
  %v55 = vrsqrt.pop %v52
  %v56 = vmul.f32 %v32, %v53
  %v57 = vmul.f32 %v33, %v54
  %v58 = vmul.f32 %v34, %v55
  %v59 = vld [vmem:[%s1] sm:$0x1]
  %v61 = vlaneseq
  %v62 = vshrl.u32 %v61, 7
  %v63 = vsub.s32 0, %v62
  %v64 = vrot.slane %v59, %v63
  %v66 = vmul.f32 %v56, %v64
  %v67 = vmul.f32 %v57, %v64
  %v68 = vmul.f32 %v58, %v64
  %v69 = vld [vmem:[%s2] sm:$0x1]
  %v71 = vlaneseq
  %v72 = vshrl.u32 %v71, 7
  %v73 = vsub.s32 0, %v72
  %v74 = vrot.slane %v69, %v73
  %v76 = vadd.f32 %v66, %v74
  %v77 = vadd.f32 %v67, %v74
  %v78 = vadd.f32 %v68, %v74
  %79 = vst.msk [vmem:[%s3] sm:$0xff] %vm17, %v76
  %80 = vst.msk [vmem:[%s3 + $0x8] sm:$0xff] %vm17, %v77
  %81 = vst.msk [vmem:[%s3 + $0x10] sm:$0xf] %vm24, %v78
  // Predicated region
  $region14: #{transformer_forward.39} parent=0 // pred_check
    _
  $region15: #{transformer_forward.39} parent=0 // pred_check_branch
    %83 = sbr.rel (0) target = $region17
  $region16: #{transformer_forward.39} parent=0 // pred_region
    _
  $region17: #{transformer_forward.39} parent=0 // pred_fallthru
    _
  // Predicated region
  $region18: #{transformer_forward.39} parent=0 // pred_check
    _
  $region19: #{transformer_forward.39} parent=0 // pred_check_branch
    %85 = sbr.rel (0) target = $region21
  $region20: #{transformer_forward.39} parent=0 // pred_region
    _
  $region21: #{transformer_forward.39} parent=0 // pred_fallthru
    _

// kernel: transformer_forward.32
$region0: #{transformer_forward.32}
  #allocation0 [shape = 'u32[]', space=smem, size = 0x4, offset = 0x4, fixed_abs, tag = 'smem constant byte address 0x4 - core index']
  #allocation1 [shape = 'u32[144,128]{1,0:T(1,128)}', space=vmem, size = 0x12000, scoped, tag = 'internal scratch']
  %s0 = inlined_call_operand.vmem [shape: bf16[2,4,10,8], index: 0, kind: input, shape index: {}]
  %s1 = inlined_call_operand.vmem [shape: bf16[2,4,10,8], index: 1, kind: input, shape index: {}]
  %s2 = inlined_call_operand.vmem [shape: bf16[2,4,10,8], index: 2, kind: input, shape index: {}]
  %s3 = inlined_call_operand.vmem [shape: f32[2,1,10], index: 3, kind: input, shape index: {}]
  %s4 = inlined_call_operand.vmem [shape: bf16[2,4,10,8], index: 4, kind: output, shape index: {}]
  %s5 = sld [smem:[#allocation0]]
  $region49: #{transformer_forward.32} parent=0
    _
  %s7 = ssub.s32 1, %s5
  %s8 = scalar_select 0, %s7, %s5
  loop: start=0, step=1, limit=4
  $region2: #{transformer_forward.32} parent=0 // loop_pre_header
    _
  $region3: #{transformer_forward.32} parent=0 // loop_header
    %s10 = sphi 0, %s14
    %p11 = scmp.ge.s32.totalorder %s10, 4
    %s20 = sphi 0, %s22
    %s23 = sphi 0, %s20
    %s24 = sphi 0, %s23
    %s40 = sphi 0, %s24
    %s46 = sphi 0, %s48
    %s49 = sphi 0, %s46
    %s50 = sphi 0, %s49
    %s66 = sphi 0, %s50
    %s72 = sphi 0, %s74
    %s75 = sphi 0, %s72
    %s76 = sphi 0, %s75
    %s92 = sphi 0, %s76
    %s98 = sphi 0, %s100
    %s101 = sphi 0, %s98
    %s102 = sphi 0, %s101
    %s118 = sphi 0, %s102
    %s124 = sphi 0, %s126
    %s127 = sphi 0, %s124
    %s128 = sphi 0, %s127
    %s144 = sphi 0, %s128
  $region4: #{transformer_forward.32} parent=0 // loop_header_branch
    %13 = sbr.rel (%p11) target = $region8
  $region5: #{transformer_forward.32} parent=0 // loop_body
    %s15 = ssub.s32 %s10, 1
    %s16 = ssub.s32 %s10, 2
    %s17 = sadd.s32 %s10, 1
    %s18 = ssub.s32 %s10, %s17
    %p19 = scmp.eq.s32.totalorder %s18, 0
    %s21 = sadd.s32 %s20, 1
    %s22 = scalar_select %p19, %s20, %s21
    %p25 = pneg %p19
    %p26 = scmp.eq.s32.totalorder %s10, 1
    %p27 = por %p25, %p26
    %p28 = scmp.ne.s32.totalorder %s20, %s23
    %p29 = scmp.eq.s32.totalorder %s10, 0
    %p30 = por %p28, %p29
    %p31 = scmp.ne.s32.totalorder %s20, %s23
    %p32 = scmp.eq.s32.totalorder %s15, 1
    %p33 = por %p31, %p32
    %p34 = scmp.ne.s32.totalorder %s23, %s24
    %p35 = scmp.eq.s32.totalorder %s15, 0
    %p36 = por %p34, %p35
    %p37 = scmp.ne.s32.totalorder %s23, %s24
    %p38 = scmp.eq.s32.totalorder %s16, 1
    %p39 = por %p37, %p38
    %p41 = scmp.ne.s32.totalorder %s24, %s40
    %p42 = scmp.eq.s32.totalorder %s16, 0
    %p43 = por %p41, %p42
    %s44 = ssub.s32 %s10, %s17
    %p45 = scmp.eq.s32.totalorder %s44, 0
    %s47 = sadd.s32 %s46, 1
    %s48 = scalar_select %p45, %s46, %s47
    %p51 = pneg %p45
    %p52 = scmp.eq.s32.totalorder %s10, 1
    %p53 = por %p51, %p52
    %p54 = scmp.ne.s32.totalorder %s46, %s49
    %p55 = scmp.eq.s32.totalorder %s10, 0
    %p56 = por %p54, %p55
    %p57 = scmp.ne.s32.totalorder %s46, %s49
    %p58 = scmp.eq.s32.totalorder %s15, 1
    %p59 = por %p57, %p58
    %p60 = scmp.ne.s32.totalorder %s49, %s50
    %p61 = scmp.eq.s32.totalorder %s15, 0
    %p62 = por %p60, %p61
    %p63 = scmp.ne.s32.totalorder %s49, %s50
    %p64 = scmp.eq.s32.totalorder %s16, 1
    %p65 = por %p63, %p64
    %p67 = scmp.ne.s32.totalorder %s50, %s66
    %p68 = scmp.eq.s32.totalorder %s16, 0
    %p69 = por %p67, %p68
    %s70 = ssub.s32 %s10, %s17
    %p71 = scmp.eq.s32.totalorder %s70, 0
    %s73 = sadd.s32 %s72, 1
    %s74 = scalar_select %p71, %s72, %s73
    %p77 = pneg %p71
    %p78 = scmp.eq.s32.totalorder %s10, 1
    %p79 = por %p77, %p78
    %p80 = scmp.ne.s32.totalorder %s72, %s75
    %p81 = scmp.eq.s32.totalorder %s10, 0
    %p82 = por %p80, %p81
    %p83 = scmp.ne.s32.totalorder %s72, %s75
    %p84 = scmp.eq.s32.totalorder %s15, 1
    %p85 = por %p83, %p84
    %p86 = scmp.ne.s32.totalorder %s75, %s76
    %p87 = scmp.eq.s32.totalorder %s15, 0
    %p88 = por %p86, %p87
    %p89 = scmp.ne.s32.totalorder %s75, %s76
    %p90 = scmp.eq.s32.totalorder %s16, 1
    %p91 = por %p89, %p90
    %p93 = scmp.ne.s32.totalorder %s76, %s92
    %p94 = scmp.eq.s32.totalorder %s16, 0
    %p95 = por %p93, %p94
    %s96 = ssub.s32 %s10, %s17
    %p97 = scmp.eq.s32.totalorder %s96, 0
    %s99 = sadd.s32 %s98, 1
    %s100 = scalar_select %p97, %s98, %s99
    %p103 = pneg %p97
    %p104 = scmp.eq.s32.totalorder %s10, 1
    %p105 = por %p103, %p104
    %p106 = scmp.ne.s32.totalorder %s98, %s101
    %p107 = scmp.eq.s32.totalorder %s10, 0
    %p108 = por %p106, %p107
    %p109 = scmp.ne.s32.totalorder %s98, %s101
    %p110 = scmp.eq.s32.totalorder %s15, 1
    %p111 = por %p109, %p110
    %p112 = scmp.ne.s32.totalorder %s101, %s102
    %p113 = scmp.eq.s32.totalorder %s15, 0
    %p114 = por %p112, %p113
    %p115 = scmp.ne.s32.totalorder %s101, %s102
    %p116 = scmp.eq.s32.totalorder %s16, 1
    %p117 = por %p115, %p116
    %p119 = scmp.ne.s32.totalorder %s102, %s118
    %p120 = scmp.eq.s32.totalorder %s16, 0
    %p121 = por %p119, %p120
    %s122 = ssub.s32 %s10, %s17
    %p123 = scmp.eq.s32.totalorder %s122, 0
    %s125 = sadd.s32 %s124, 1
    %s126 = scalar_select %p123, %s124, %s125
    %p129 = pneg %p123
    %p130 = scmp.eq.s32.totalorder %s10, 1
    %p131 = por %p129, %p130
    %p132 = scmp.ne.s32.totalorder %s124, %s127
    %p133 = scmp.eq.s32.totalorder %s10, 0
    %p134 = por %p132, %p133
    %p135 = scmp.ne.s32.totalorder %s124, %s127
    %p136 = scmp.eq.s32.totalorder %s15, 1
    %p137 = por %p135, %p136
    %p138 = scmp.ne.s32.totalorder %s127, %s128
    %p139 = scmp.eq.s32.totalorder %s15, 0
    %p140 = por %p138, %p139
    %p141 = scmp.ne.s32.totalorder %s127, %s128
    %p142 = scmp.eq.s32.totalorder %s16, 1
    %p143 = por %p141, %p142
    %p145 = scmp.ne.s32.totalorder %s128, %s144
    %p146 = scmp.eq.s32.totalorder %s16, 0
    %p147 = por %p145, %p146
    %p148 = scmp.le.s32.totalorder 1, %s10
    %p149 = scmp.lt.s32.totalorder %s10, 3
    %p150 = pnand %p148, %p149
    %p151 = pneg %p150
    // Predicated region
    $region9: #{transformer_forward.32} parent=5 // pred_check
      _
    $region10: #{transformer_forward.32} parent=5 // pred_check_branch
      %153 = sbr.rel (%p150) target = $region12
    $region11: #{transformer_forward.32} parent=5 // pred_region
      %s154 = ssub.s32 %s10, 1
    $region12: #{transformer_forward.32} parent=5 // pred_fallthru
      _
    %p155 = scmp.lt.s32.totalorder %s10, 2
    // Predicated region
    $region13: #{transformer_forward.32} parent=5 // pred_check
      %p156 = pneg %p155
    $region14: #{transformer_forward.32} parent=5 // pred_check_branch
      %158 = sbr.rel (%p156) target = $region16
    $region15: #{transformer_forward.32} parent=5 // pred_region
      // Predicated region
      $region17: #{transformer_forward.32} parent=15 // pred_check
        %p159 = pneg %p30
      $region18: #{transformer_forward.32} parent=15 // pred_check_branch
        %161 = sbr.rel (%p159) target = $region20
      $region19: #{transformer_forward.32} parent=15 // pred_region
        %p162 = scmp.lt.s32.totalorder %s10, 1
        %s163 = scalar_select %p162, %s10, 1
        %s164 = smul.addr %s163, 8
        %s165 = smul.addr %s164, 4
        %s166 = scalar_lea.vmem %s0, %s165
      $region20: #{transformer_forward.32} parent=15 // pred_fallthru
        _
      // Predicated region
      $region21: #{transformer_forward.32} parent=15 // pred_check
        %p167 = pneg %p56
      $region22: #{transformer_forward.32} parent=15 // pred_check_branch
        %169 = sbr.rel (%p167) target = $region24
      $region23: #{transformer_forward.32} parent=15 // pred_region
        %p170 = scmp.lt.s32.totalorder %s10, 1
        %s171 = scalar_select %p170, %s10, 1
        %s172 = smul.addr %s171, 8
        %s173 = smul.addr %s172, 4
        %s174 = scalar_lea.vmem %s1, %s173
      $region24: #{transformer_forward.32} parent=15 // pred_fallthru
        _
      // Predicated region
      $region25: #{transformer_forward.32} parent=15 // pred_check
        %p175 = pneg %p82
      $region26: #{transformer_forward.32} parent=15 // pred_check_branch
        %177 = sbr.rel (%p175) target = $region28
      $region27: #{transformer_forward.32} parent=15 // pred_region
        %p178 = scmp.lt.s32.totalorder %s10, 1
        %s179 = scalar_select %p178, %s10, 1
        %s180 = smul.addr %s179, 8
        %s181 = smul.addr %s180, 4
        %s182 = scalar_lea.vmem %s2, %s181
      $region28: #{transformer_forward.32} parent=15 // pred_fallthru
        _
      // Predicated region
      $region29: #{transformer_forward.32} parent=15 // pred_check
        %p183 = pneg %p108
      $region30: #{transformer_forward.32} parent=15 // pred_check_branch
        %185 = sbr.rel (%p183) target = $region32
      $region31: #{transformer_forward.32} parent=15 // pred_region
        %p186 = scmp.lt.s32.totalorder %s10, 1
        %s187 = scalar_select %p186, %s10, 1
        %s188 = scalar_lea.vmem %s3, %s187
      $region32: #{transformer_forward.32} parent=15 // pred_fallthru
        _
    $region16: #{transformer_forward.32} parent=5 // pred_fallthru
      _
    %p189 = scmp.le.s32.totalorder 1, %s10
    %p190 = scmp.lt.s32.totalorder %s10, 3
    %p191 = pnand %p189, %p190
    %p192 = pneg %p191
    // Predicated region
    $region33: #{transformer_forward.32} parent=5 // pred_check
      _
    $region34: #{transformer_forward.32} parent=5 // pred_check_branch
      %194 = sbr.rel (%p191) target = $region36
    $region35: #{transformer_forward.32} parent=5 // pred_region
      %s195 = ssub.s32 %s10, 1
      %p196 = scmp.lt.s32.totalorder %s15, 1
      %s197 = scalar_select %p196, %s15, 1
      %s198 = smul.addr %s197, 8
      %s199 = smul.addr %s198, 4
      %s200 = scalar_lea.vmem %s0, %s199
      %p201 = pneg %p36
      %p202 = pneg %p33
      %p203 = scmp.lt.s32.totalorder %s15, 1
      %s204 = scalar_select %p203, %s15, 1
      %s205 = smul.addr %s204, 8
      %s206 = smul.addr %s205, 4
      %s207 = scalar_lea.vmem %s1, %s206
      %p208 = pneg %p62
      %p209 = pneg %p59
      %p210 = scmp.lt.s32.totalorder %s15, 1
      %s211 = scalar_select %p210, %s15, 1
      %s212 = smul.addr %s211, 8
      %s213 = smul.addr %s212, 4
      %s214 = scalar_lea.vmem %s2, %s213
      %p215 = pneg %p88
      %p216 = pneg %p85
      %p217 = scmp.lt.s32.totalorder %s15, 1
      %s218 = scalar_select %p217, %s15, 1
      %s219 = scalar_lea.vmem %s3, %s218
      %p220 = pneg %p114
      %p221 = pneg %p111
      %p222 = pneg %p140
      %p223 = pneg %p137
      %p224 = scmp.lt.s32.totalorder %s15, 1
      %s225 = scalar_select %p224, %s15, 1
      %s226 = smul.addr %s225, 8
      %s227 = smul.addr %s226, 4
      %s228 = scalar_lea.vmem %s4, %s227
      %p229 = scmp.lt.s32.totalorder %s15, 1
      %s230 = scalar_select %p229, %s15, 1
      %s231 = smul.addr %s230, 8
      %s232 = smul.addr %s231, 4
      %s233 = scalar_lea.vmem %s0, %s232
      %p234 = scmp.lt.s32.totalorder %s15, 1
      %s235 = scalar_select %p234, %s15, 1
      %s236 = smul.addr %s235, 8
      %s237 = smul.addr %s236, 4
      %s238 = scalar_lea.vmem %s1, %s237
      %p239 = scmp.lt.s32.totalorder %s15, 1
      %s240 = scalar_select %p239, %s15, 1
      %s241 = smul.addr %s240, 8
      %s242 = smul.addr %s241, 4
      %s243 = scalar_lea.vmem %s2, %s242
      %p244 = scmp.lt.s32.totalorder %s15, 1
      %s245 = scalar_select %p244, %s15, 1
      %s246 = scalar_lea.vmem %s3, %s245
      %p247 = scmp.lt.s32.totalorder %s15, 1
      %s248 = scalar_select %p247, %s15, 1
      %s249 = smul.addr %s248, 8
      %s250 = smul.addr %s249, 4
      %s251 = scalar_lea.vmem %s4, %s250
      %v253 = vld [vmem:[%s233] sm:$0xf]
      %v254 = vld [vmem:[%s233 + $0x4] sm:$0x1]
      %v255 = vld [vmem:[%s233 + $0x8] sm:$0xf]
      %v256 = vld [vmem:[%s233 + $0xc] sm:$0x1]
      %v257 = vld [vmem:[%s233 + $0x10] sm:$0xf]
      %v258 = vld [vmem:[%s233 + $0x14] sm:$0x1]
      %v259 = vld [vmem:[%s233 + $0x18] sm:$0xf]
      %v260 = vld [vmem:[%s233 + $0x1c] sm:$0x1]
      %v261 = vld [vmem:[%s238] sm:$0xf]
      %v262 = vld [vmem:[%s238 + $0x4] sm:$0x1]
      %v263 = vld [vmem:[%s238 + $0x8] sm:$0xf]
      %v264 = vld [vmem:[%s238 + $0xc] sm:$0x1]
      %v265 = vld [vmem:[%s238 + $0x10] sm:$0xf]
      %v266 = vld [vmem:[%s238 + $0x14] sm:$0x1]
      %v267 = vld [vmem:[%s238 + $0x18] sm:$0xf]
      %v268 = vld [vmem:[%s238 + $0x1c] sm:$0x1]
      %v269 = vld [vmem:[%s243] sm:$0xf]
      %v270 = vld [vmem:[%s243 + $0x4] sm:$0x1]
      %v271 = vld [vmem:[%s243 + $0x8] sm:$0xf]
      %v272 = vld [vmem:[%s243 + $0xc] sm:$0x1]
      %v273 = vld [vmem:[%s243 + $0x10] sm:$0xf]
      %v274 = vld [vmem:[%s243 + $0x14] sm:$0x1]
      %v275 = vld [vmem:[%s243 + $0x18] sm:$0xf]
      %v276 = vld [vmem:[%s243 + $0x1c] sm:$0x1]
      %v279 = vunpack.c.l.b16 %v253
      %v280 = vunpack.c.l.b16 %v254
      %v281 = vpack.c.b16 %v280, %v279
      %v284 = vunpack.c.l.b16 %v261
      %v285 = vunpack.c.l.b16 %v262
      %v286 = vpack.c.b16 %v285, %v284
      %vm287 = vcmask 64512
      %v289 = vsel %vm287, %v281, 0
      %v292 = vsel %vm287, %v286, 0
      %294 = vmatprep.subr.bf16.mxu0 0
      %295 = vmatpush1.bf16.xpose.msra.mxu0 0
      %296 = vmatprep.subr.bf16.mxu0 0
      %297 = vmatpush1.bf16.xpose.msra.mxu0 0
      %298 = vmatprep.subr.bf16.mxu0 0
      %299 = vmatpush1.bf16.xpose.msra.mxu0 0
      %300 = vmatprep.subr.bf16.mxu0 0
      %301 = vmatpush1.bf16.xpose.msra.mxu0 0
      %302 = vmatprep.subr.bf16.mxu0 0
      %303 = vmatpush1.bf16.xpose.msra.mxu0 0
      %304 = vmatprep.subr.bf16.mxu0 0
      %305 = vmatpush1.bf16.xpose.msra.mxu0 0
      %306 = vmatprep.subr.bf16.mxu0 0
      %307 = vmatpush1.bf16.xpose.msra.mxu0 0
      %308 = vmatprep.subr.bf16.mxu0 0
      %309 = vmatpush1.bf16.xpose.msra.mxu0 %v292
      %310 = vmatprep.subr.bf16.mxu0 0
      %311 = vmatpush2.bf16.xpose.msra.mxu0 0
      %312 = vmatprep.subr.bf16.mxu0 0
      %313 = vmatpush2.bf16.xpose.msra.mxu0 0
      %314 = vmatprep.subr.bf16.mxu0 0
      %315 = vmatpush2.bf16.xpose.msra.mxu0 0
      %316 = vmatprep.subr.bf16.mxu0 0
      %317 = vmatpush2.bf16.xpose.msra.mxu0 0
      %318 = vmatprep.subr.bf16.mxu0 0
      %319 = vmatpush2.bf16.xpose.msra.mxu0 0
      %320 = vmatprep.subr.bf16.mxu0 0
      %321 = vmatpush2.bf16.xpose.msra.mxu0 0
      %322 = vmatprep.subr.bf16.mxu0 0
      %323 = vmatpush2.bf16.xpose.msra.mxu0 0
      %324 = vmatprep.subr.bf16.mxu0 0
      %325 = vmatpush2.bf16.xpose.msra.mxu0 0
      %326 = vmatprep.mubr.bf16.mxu0 0
      %327 = vmatmul.mubr.bf16.gmra.mxu0 %v289
      %v328 = vpop.f32.mrf.mxu0
      %v329 = vadd.f32 0.0, %v328
      %v330 = vpop.f32.mrf.mxu0
      %v331 = vpop.f32.mrf.mxu0
      %v332 = vadd.f32 0.0, %v331
      %v333 = vpop.f32.mrf.mxu0
      %334 = vdwg.mxu0
      %v337 = vunpack.c.l.b16 %v255
      %v338 = vunpack.c.l.b16 %v256
      %v339 = vpack.c.b16 %v338, %v337
      %v342 = vunpack.c.l.b16 %v263
      %v343 = vunpack.c.l.b16 %v264
      %v344 = vpack.c.b16 %v343, %v342
      %v346 = vsel %vm287, %v339, 0
      %v349 = vsel %vm287, %v344, 0
      %351 = vmatprep.subr.bf16.mxu0 0
      %352 = vmatpush1.bf16.xpose.msra.mxu0 0
      %353 = vmatprep.subr.bf16.mxu0 0
      %354 = vmatpush1.bf16.xpose.msra.mxu0 0
      %355 = vmatprep.subr.bf16.mxu0 0
      %356 = vmatpush1.bf16.xpose.msra.mxu0 0
      %357 = vmatprep.subr.bf16.mxu0 0
      %358 = vmatpush1.bf16.xpose.msra.mxu0 0
      %359 = vmatprep.subr.bf16.mxu0 0
      %360 = vmatpush1.bf16.xpose.msra.mxu0 0
      %361 = vmatprep.subr.bf16.mxu0 0
      %362 = vmatpush1.bf16.xpose.msra.mxu0 0
      %363 = vmatprep.subr.bf16.mxu0 0
      %364 = vmatpush1.bf16.xpose.msra.mxu0 0
      %365 = vmatprep.subr.bf16.mxu0 0
      %366 = vmatpush1.bf16.xpose.msra.mxu0 %v349
      %367 = vmatprep.subr.bf16.mxu0 0
      %368 = vmatpush2.bf16.xpose.msra.mxu0 0
      %369 = vmatprep.subr.bf16.mxu0 0
      %370 = vmatpush2.bf16.xpose.msra.mxu0 0
      %371 = vmatprep.subr.bf16.mxu0 0
      %372 = vmatpush2.bf16.xpose.msra.mxu0 0
      %373 = vmatprep.subr.bf16.mxu0 0
      %374 = vmatpush2.bf16.xpose.msra.mxu0 0
      %375 = vmatprep.subr.bf16.mxu0 0
      %376 = vmatpush2.bf16.xpose.msra.mxu0 0
      %377 = vmatprep.subr.bf16.mxu0 0
      %378 = vmatpush2.bf16.xpose.msra.mxu0 0
      %379 = vmatprep.subr.bf16.mxu0 0
      %380 = vmatpush2.bf16.xpose.msra.mxu0 0
      %381 = vmatprep.subr.bf16.mxu0 0
      %382 = vmatpush2.bf16.xpose.msra.mxu0 0
      %383 = vmatprep.mubr.bf16.mxu0 0
      %384 = vmatmul.mubr.bf16.gmra.mxu0 %v346
      %v385 = vpop.f32.mrf.mxu0
      %v386 = vadd.f32 0.0, %v385
      %v387 = vpop.f32.mrf.mxu0
      %v388 = vpop.f32.mrf.mxu0
      %v389 = vadd.f32 0.0, %v388
      %v390 = vpop.f32.mrf.mxu0
      %391 = vdwg.mxu0
      %v394 = vunpack.c.l.b16 %v257
      %v395 = vunpack.c.l.b16 %v258
      %v396 = vpack.c.b16 %v395, %v394
      %v399 = vunpack.c.l.b16 %v265
      %v400 = vunpack.c.l.b16 %v266
      %v401 = vpack.c.b16 %v400, %v399
      %v403 = vsel %vm287, %v396, 0
      %v406 = vsel %vm287, %v401, 0
      %408 = vmatprep.subr.bf16.mxu0 0
      %409 = vmatpush1.bf16.xpose.msra.mxu0 0
      %410 = vmatprep.subr.bf16.mxu0 0
      %411 = vmatpush1.bf16.xpose.msra.mxu0 0
      %412 = vmatprep.subr.bf16.mxu0 0
      %413 = vmatpush1.bf16.xpose.msra.mxu0 0
      %414 = vmatprep.subr.bf16.mxu0 0
      %415 = vmatpush1.bf16.xpose.msra.mxu0 0
      %416 = vmatprep.subr.bf16.mxu0 0
      %417 = vmatpush1.bf16.xpose.msra.mxu0 0
      %418 = vmatprep.subr.bf16.mxu0 0
      %419 = vmatpush1.bf16.xpose.msra.mxu0 0
      %420 = vmatprep.subr.bf16.mxu0 0
      %421 = vmatpush1.bf16.xpose.msra.mxu0 0
      %422 = vmatprep.subr.bf16.mxu0 0
      %423 = vmatpush1.bf16.xpose.msra.mxu0 %v406
      %424 = vmatprep.subr.bf16.mxu0 0
      %425 = vmatpush2.bf16.xpose.msra.mxu0 0
      %426 = vmatprep.subr.bf16.mxu0 0
      %427 = vmatpush2.bf16.xpose.msra.mxu0 0
      %428 = vmatprep.subr.bf16.mxu0 0
      %429 = vmatpush2.bf16.xpose.msra.mxu0 0
      %430 = vmatprep.subr.bf16.mxu0 0
      %431 = vmatpush2.bf16.xpose.msra.mxu0 0
      %432 = vmatprep.subr.bf16.mxu0 0
      %433 = vmatpush2.bf16.xpose.msra.mxu0 0
      %434 = vmatprep.subr.bf16.mxu0 0
      %435 = vmatpush2.bf16.xpose.msra.mxu0 0
      %436 = vmatprep.subr.bf16.mxu0 0
      %437 = vmatpush2.bf16.xpose.msra.mxu0 0
      %438 = vmatprep.subr.bf16.mxu0 0
      %439 = vmatpush2.bf16.xpose.msra.mxu0 0
      %440 = vmatprep.mubr.bf16.mxu0 0
      %441 = vmatmul.mubr.bf16.gmra.mxu0 %v403
      %v442 = vpop.f32.mrf.mxu0
      %v443 = vadd.f32 0.0, %v442
      %v444 = vpop.f32.mrf.mxu0
      %v445 = vpop.f32.mrf.mxu0
      %v446 = vadd.f32 0.0, %v445
      %v447 = vpop.f32.mrf.mxu0
      %448 = vdwg.mxu0
      %v451 = vunpack.c.l.b16 %v259
      %v452 = vunpack.c.l.b16 %v260
      %v453 = vpack.c.b16 %v452, %v451
      %v456 = vunpack.c.l.b16 %v267
      %v457 = vunpack.c.l.b16 %v268
      %v458 = vpack.c.b16 %v457, %v456
      %v460 = vsel %vm287, %v453, 0
      %v463 = vsel %vm287, %v458, 0
      %465 = vmatprep.subr.bf16.mxu0 0
      %466 = vmatpush1.bf16.xpose.msra.mxu0 0
      %467 = vmatprep.subr.bf16.mxu0 0
      %468 = vmatpush1.bf16.xpose.msra.mxu0 0
      %469 = vmatprep.subr.bf16.mxu0 0
      %470 = vmatpush1.bf16.xpose.msra.mxu0 0
      %471 = vmatprep.subr.bf16.mxu0 0
      %472 = vmatpush1.bf16.xpose.msra.mxu0 0
      %473 = vmatprep.subr.bf16.mxu0 0
      %474 = vmatpush1.bf16.xpose.msra.mxu0 0
      %475 = vmatprep.subr.bf16.mxu0 0
      %476 = vmatpush1.bf16.xpose.msra.mxu0 0
      %477 = vmatprep.subr.bf16.mxu0 0
      %478 = vmatpush1.bf16.xpose.msra.mxu0 0
      %479 = vmatprep.subr.bf16.mxu0 0
      %480 = vmatpush1.bf16.xpose.msra.mxu0 %v463
      %481 = vmatprep.subr.bf16.mxu0 0
      %482 = vmatpush2.bf16.xpose.msra.mxu0 0
      %483 = vmatprep.subr.bf16.mxu0 0
      %484 = vmatpush2.bf16.xpose.msra.mxu0 0
      %485 = vmatprep.subr.bf16.mxu0 0
      %486 = vmatpush2.bf16.xpose.msra.mxu0 0
      %487 = vmatprep.subr.bf16.mxu0 0
      %488 = vmatpush2.bf16.xpose.msra.mxu0 0
      %489 = vmatprep.subr.bf16.mxu0 0
      %490 = vmatpush2.bf16.xpose.msra.mxu0 0
      %491 = vmatprep.subr.bf16.mxu0 0
      %492 = vmatpush2.bf16.xpose.msra.mxu0 0
      %493 = vmatprep.subr.bf16.mxu0 0
      %494 = vmatpush2.bf16.xpose.msra.mxu0 0
      %495 = vmatprep.subr.bf16.mxu0 0
      %496 = vmatpush2.bf16.xpose.msra.mxu0 0
      %497 = vmatprep.mubr.bf16.mxu0 0
      %498 = vmatmul.mubr.bf16.gmra.mxu0 %v460
      %v499 = vpop.f32.mrf.mxu0
      %v500 = vadd.f32 0.0, %v499
      %v501 = vpop.f32.mrf.mxu0
      %v502 = vpop.f32.mrf.mxu0
      %v503 = vadd.f32 0.0, %v502
      %v504 = vpop.f32.mrf.mxu0
      %505 = vdwg.mxu0
      %v506 = vmul.f32 %v329, 0.35355338
      %v507 = vmul.f32 %v332, 0.35355338
      %v508 = vmul.f32 %v386, 0.35355338
      %v509 = vmul.f32 %v389, 0.35355338
      %v510 = vmul.f32 %v443, 0.35355338
      %v511 = vmul.f32 %v446, 0.35355338
      %v512 = vmul.f32 %v500, 0.35355338
      %v513 = vmul.f32 %v503, 0.35355338
      %v514 = vld [vmem:[%s246] sm:$0x1]
      %v516 = vlaneseq
      %v517 = vshrl.u32 %v516, 7
      %v518 = vsub.s32 0, %v517
      %v519 = vrot.slane %v514, %v518
      %v521 = vadd.f32 %v506, %v519
      %v522 = vadd.f32 %v507, %v519
      %v523 = vadd.f32 %v508, %v519
      %v524 = vadd.f32 %v509, %v519
      %v525 = vadd.f32 %v510, %v519
      %v526 = vadd.f32 %v511, %v519
      %v527 = vadd.f32 %v512, %v519
      %v528 = vadd.f32 %v513, %v519
      %vm529 = vcmask 80896
      %v530 = vsel %vm529, %v521, -inf
      %531 = vmax.xlane.f32.xlu0 %v530
      %v532 = vpop.xlane.xlu0 %531
      %vm533 = vcmask 74752
      %v534 = vsel %vm533, %v522, -inf
      %535 = vmax.xlane.f32.xlu0 %v534
      %v536 = vpop.xlane.xlu0 %535
      %v537 = vsel %vm529, %v523, -inf
      %538 = vmax.xlane.f32.xlu0 %v537
      %v539 = vpop.xlane.xlu0 %538
      %v540 = vsel %vm533, %v524, -inf
      %541 = vmax.xlane.f32.xlu0 %v540
      %v542 = vpop.xlane.xlu0 %541
      %v543 = vsel %vm529, %v525, -inf
      %544 = vmax.xlane.f32.xlu0 %v543
      %v545 = vpop.xlane.xlu0 %544
      %v546 = vsel %vm533, %v526, -inf
      %547 = vmax.xlane.f32.xlu0 %v546
      %v548 = vpop.xlane.xlu0 %547
      %v549 = vsel %vm529, %v527, -inf
      %550 = vmax.xlane.f32.xlu0 %v549
      %v551 = vpop.xlane.xlu0 %550
      %v552 = vsel %vm533, %v528, -inf
      %553 = vmax.xlane.f32.xlu0 %v552
      %v554 = vpop.xlane.xlu0 %553
      %v555 = vsub.f32 %v521, %v532
      %v556 = vsub.f32 %v522, %v536
      %v557 = vsub.f32 %v523, %v539
      %v558 = vsub.f32 %v524, %v542
      %v559 = vsub.f32 %v525, %v545
      %v560 = vsub.f32 %v526, %v548
      %v561 = vsub.f32 %v527, %v551
      %v562 = vsub.f32 %v528, %v554
      %v563 = vmul.f32 %v555, 1.442695
      %v564 = vpow.pop %v563
      %v565 = vmul.f32 %v556, 1.442695
      %v566 = vpow.pop %v565
      %v567 = vmul.f32 %v557, 1.442695
      %v568 = vpow.pop %v567
      %v569 = vmul.f32 %v558, 1.442695
      %v570 = vpow.pop %v569
      %v571 = vmul.f32 %v559, 1.442695
      %v572 = vpow.pop %v571
      %v573 = vmul.f32 %v560, 1.442695
      %v574 = vpow.pop %v573
      %v575 = vmul.f32 %v561, 1.442695
      %v576 = vpow.pop %v575
      %v577 = vmul.f32 %v562, 1.442695
      %v578 = vpow.pop %v577
      %v579 = vsel %vm529, %v564, 0.0
      %580 = vadd.xlane.f32.xlu0 %v579
      %v581 = vpop.xlane.xlu0 %580
      %v582 = vsel %vm533, %v566, 0.0
      %583 = vadd.xlane.f32.xlu0 %v582
      %v584 = vpop.xlane.xlu0 %583
      %v585 = vsel %vm529, %v568, 0.0
      %586 = vadd.xlane.f32.xlu0 %v585
      %v587 = vpop.xlane.xlu0 %586
      %v588 = vsel %vm533, %v570, 0.0
      %589 = vadd.xlane.f32.xlu0 %v588
      %v590 = vpop.xlane.xlu0 %589
      %v591 = vsel %vm529, %v572, 0.0
      %592 = vadd.xlane.f32.xlu0 %v591
      %v593 = vpop.xlane.xlu0 %592
      %v594 = vsel %vm533, %v574, 0.0
      %595 = vadd.xlane.f32.xlu0 %v594
      %v596 = vpop.xlane.xlu0 %595
      %v597 = vsel %vm529, %v576, 0.0
      %598 = vadd.xlane.f32.xlu0 %v597
      %v599 = vpop.xlane.xlu0 %598
      %v600 = vsel %vm533, %v578, 0.0
      %601 = vadd.xlane.f32.xlu0 %v600
      %v602 = vpop.xlane.xlu0 %601
      %v603 = vpack.c.bf16 %v566, %v564
      %v604 = vpack.c.bf16 %v570, %v568
      %v605 = vpack.c.bf16 %v574, %v572
      %v606 = vpack.c.bf16 %v578, %v576
      %v609 = vunpack.c.l.b16 %v269
      %v610 = vunpack.c.l.b16 %v270
      %v611 = vpack.c.b16 %v610, %v609
      %v613 = vsel %vm529, %v603, 0
      %vm615 = vcmask 1044480
      %v617 = vsel %vm615, %v611, 0
      %619 = vmatprep.subr.bf16.mxu0 0
      %620 = vmatpush1.bf16.msra.mxu0 0
      %621 = vmatprep.subr.bf16.mxu0 0
      %622 = vmatpush1.bf16.msra.mxu0 0
      %623 = vmatprep.subr.bf16.mxu0 0
      %624 = vmatpush1.bf16.msra.mxu0 0
      %625 = vmatprep.subr.bf16.mxu0 0
      %626 = vmatpush1.bf16.msra.mxu0 0
      %627 = vmatprep.subr.bf16.mxu0 0
      %628 = vmatpush1.bf16.msra.mxu0 0
      %629 = vmatprep.subr.bf16.mxu0 0
      %630 = vmatpush1.bf16.msra.mxu0 0
      %631 = vmatprep.subr.bf16.mxu0 0
      %632 = vmatpush1.bf16.msra.mxu0 0
      %633 = vmatprep.subr.bf16.mxu0 0
      %634 = vmatpush1.bf16.msra.mxu0 %v617
      %635 = vmatprep.subr.bf16.mxu0 0
      %636 = vmatpush2.bf16.msra.mxu0 0
      %637 = vmatprep.subr.bf16.mxu0 0
      %638 = vmatpush2.bf16.msra.mxu0 0
      %639 = vmatprep.subr.bf16.mxu0 0
      %640 = vmatpush2.bf16.msra.mxu0 0
      %641 = vmatprep.subr.bf16.mxu0 0
      %642 = vmatpush2.bf16.msra.mxu0 0
      %643 = vmatprep.subr.bf16.mxu0 0
      %644 = vmatpush2.bf16.msra.mxu0 0
      %645 = vmatprep.subr.bf16.mxu0 0
      %646 = vmatpush2.bf16.msra.mxu0 0
      %647 = vmatprep.subr.bf16.mxu0 0
      %648 = vmatpush2.bf16.msra.mxu0 0
      %649 = vmatprep.subr.bf16.mxu0 0
      %650 = vmatpush2.bf16.msra.mxu0 0
      %651 = vmatprep.mubr.bf16.mxu0 0
      %652 = vmatmul.mubr.bf16.gmra.mxu0 %v613
      %v653 = vpop.f32.mrf.mxu0
      %v654 = vadd.f32 0.0, %v653
      %v655 = vpop.f32.mrf.mxu0
      %v656 = vpop.f32.mrf.mxu0
      %v657 = vadd.f32 0.0, %v656
      %v658 = vpop.f32.mrf.mxu0
      %659 = vdwg.mxu0
      %v662 = vunpack.c.l.b16 %v271
      %v663 = vunpack.c.l.b16 %v272
      %v664 = vpack.c.b16 %v663, %v662
      %v666 = vsel %vm529, %v604, 0
      %v669 = vsel %vm615, %v664, 0
      %671 = vmatprep.subr.bf16.mxu0 0
      %672 = vmatpush1.bf16.msra.mxu0 0
      %673 = vmatprep.subr.bf16.mxu0 0
      %674 = vmatpush1.bf16.msra.mxu0 0
      %675 = vmatprep.subr.bf16.mxu0 0
      %676 = vmatpush1.bf16.msra.mxu0 0
      %677 = vmatprep.subr.bf16.mxu0 0
      %678 = vmatpush1.bf16.msra.mxu0 0
      %679 = vmatprep.subr.bf16.mxu0 0
      %680 = vmatpush1.bf16.msra.mxu0 0
      %681 = vmatprep.subr.bf16.mxu0 0
      %682 = vmatpush1.bf16.msra.mxu0 0
      %683 = vmatprep.subr.bf16.mxu0 0
      %684 = vmatpush1.bf16.msra.mxu0 0
      %685 = vmatprep.subr.bf16.mxu0 0
      %686 = vmatpush1.bf16.msra.mxu0 %v669
      %687 = vmatprep.subr.bf16.mxu0 0
      %688 = vmatpush2.bf16.msra.mxu0 0
      %689 = vmatprep.subr.bf16.mxu0 0
      %690 = vmatpush2.bf16.msra.mxu0 0
      %691 = vmatprep.subr.bf16.mxu0 0
      %692 = vmatpush2.bf16.msra.mxu0 0
      %693 = vmatprep.subr.bf16.mxu0 0
      %694 = vmatpush2.bf16.msra.mxu0 0
      %695 = vmatprep.subr.bf16.mxu0 0
      %696 = vmatpush2.bf16.msra.mxu0 0
      %697 = vmatprep.subr.bf16.mxu0 0
      %698 = vmatpush2.bf16.msra.mxu0 0
      %699 = vmatprep.subr.bf16.mxu0 0
      %700 = vmatpush2.bf16.msra.mxu0 0
      %701 = vmatprep.subr.bf16.mxu0 0
      %702 = vmatpush2.bf16.msra.mxu0 0
      %703 = vmatprep.mubr.bf16.mxu0 0
      %704 = vmatmul.mubr.bf16.gmra.mxu0 %v666
      %v705 = vpop.f32.mrf.mxu0
      %v706 = vadd.f32 0.0, %v705
      %v707 = vpop.f32.mrf.mxu0
      %v708 = vpop.f32.mrf.mxu0
      %v709 = vadd.f32 0.0, %v708
      %v710 = vpop.f32.mrf.mxu0
      %711 = vdwg.mxu0
      %v714 = vunpack.c.l.b16 %v273
      %v715 = vunpack.c.l.b16 %v274
      %v716 = vpack.c.b16 %v715, %v714
      %v718 = vsel %vm529, %v605, 0
      %v721 = vsel %vm615, %v716, 0
      %723 = vmatprep.subr.bf16.mxu0 0
      %724 = vmatpush1.bf16.msra.mxu0 0
      %725 = vmatprep.subr.bf16.mxu0 0
      %726 = vmatpush1.bf16.msra.mxu0 0
      %727 = vmatprep.subr.bf16.mxu0 0
      %728 = vmatpush1.bf16.msra.mxu0 0
      %729 = vmatprep.subr.bf16.mxu0 0
      %730 = vmatpush1.bf16.msra.mxu0 0
      %731 = vmatprep.subr.bf16.mxu0 0
      %732 = vmatpush1.bf16.msra.mxu0 0
      %733 = vmatprep.subr.bf16.mxu0 0
      %734 = vmatpush1.bf16.msra.mxu0 0
      %735 = vmatprep.subr.bf16.mxu0 0
      %736 = vmatpush1.bf16.msra.mxu0 0
      %737 = vmatprep.subr.bf16.mxu0 0
      %738 = vmatpush1.bf16.msra.mxu0 %v721
      %739 = vmatprep.subr.bf16.mxu0 0
      %740 = vmatpush2.bf16.msra.mxu0 0
      %741 = vmatprep.subr.bf16.mxu0 0
      %742 = vmatpush2.bf16.msra.mxu0 0
      %743 = vmatprep.subr.bf16.mxu0 0
      %744 = vmatpush2.bf16.msra.mxu0 0
      %745 = vmatprep.subr.bf16.mxu0 0
      %746 = vmatpush2.bf16.msra.mxu0 0
      %747 = vmatprep.subr.bf16.mxu0 0
      %748 = vmatpush2.bf16.msra.mxu0 0
      %749 = vmatprep.subr.bf16.mxu0 0
      %750 = vmatpush2.bf16.msra.mxu0 0
      %751 = vmatprep.subr.bf16.mxu0 0
      %752 = vmatpush2.bf16.msra.mxu0 0
      %753 = vmatprep.subr.bf16.mxu0 0
      %754 = vmatpush2.bf16.msra.mxu0 0
      %755 = vmatprep.mubr.bf16.mxu0 0
      %756 = vmatmul.mubr.bf16.gmra.mxu0 %v718
      %v757 = vpop.f32.mrf.mxu0
      %v758 = vadd.f32 0.0, %v757
      %v759 = vpop.f32.mrf.mxu0
      %v760 = vpop.f32.mrf.mxu0
      %v761 = vadd.f32 0.0, %v760
      %v762 = vpop.f32.mrf.mxu0
      %763 = vdwg.mxu0
      %v766 = vunpack.c.l.b16 %v275
      %v767 = vunpack.c.l.b16 %v276
      %v768 = vpack.c.b16 %v767, %v766
      %v770 = vsel %vm529, %v606, 0
      %v773 = vsel %vm615, %v768, 0
      %775 = vmatprep.subr.bf16.mxu0 0
      %776 = vmatpush1.bf16.msra.mxu0 0
      %777 = vmatprep.subr.bf16.mxu0 0
      %778 = vmatpush1.bf16.msra.mxu0 0
      %779 = vmatprep.subr.bf16.mxu0 0
      %780 = vmatpush1.bf16.msra.mxu0 0
      %781 = vmatprep.subr.bf16.mxu0 0
      %782 = vmatpush1.bf16.msra.mxu0 0
      %783 = vmatprep.subr.bf16.mxu0 0
      %784 = vmatpush1.bf16.msra.mxu0 0
      %785 = vmatprep.subr.bf16.mxu0 0
      %786 = vmatpush1.bf16.msra.mxu0 0
      %787 = vmatprep.subr.bf16.mxu0 0
      %788 = vmatpush1.bf16.msra.mxu0 0
      %789 = vmatprep.subr.bf16.mxu0 0
      %790 = vmatpush1.bf16.msra.mxu0 %v773
      %791 = vmatprep.subr.bf16.mxu0 0
      %792 = vmatpush2.bf16.msra.mxu0 0
      %793 = vmatprep.subr.bf16.mxu0 0
      %794 = vmatpush2.bf16.msra.mxu0 0
      %795 = vmatprep.subr.bf16.mxu0 0
      %796 = vmatpush2.bf16.msra.mxu0 0
      %797 = vmatprep.subr.bf16.mxu0 0
      %798 = vmatpush2.bf16.msra.mxu0 0
      %799 = vmatprep.subr.bf16.mxu0 0
      %800 = vmatpush2.bf16.msra.mxu0 0
      %801 = vmatprep.subr.bf16.mxu0 0
      %802 = vmatpush2.bf16.msra.mxu0 0
      %803 = vmatprep.subr.bf16.mxu0 0
      %804 = vmatpush2.bf16.msra.mxu0 0
      %805 = vmatprep.subr.bf16.mxu0 0
      %806 = vmatpush2.bf16.msra.mxu0 0
      %807 = vmatprep.mubr.bf16.mxu0 0
      %808 = vmatmul.mubr.bf16.gmra.mxu0 %v770
      %v809 = vpop.f32.mrf.mxu0
      %v810 = vadd.f32 0.0, %v809
      %v811 = vpop.f32.mrf.mxu0
      %v812 = vpop.f32.mrf.mxu0
      %v813 = vadd.f32 0.0, %v812
      %v814 = vpop.f32.mrf.mxu0
      %815 = vdwg.mxu0
      %v816 = vrcp.pop %v581
      %v817 = vrcp.pop %v584
      %v818 = vrcp.pop %v587
      %v819 = vrcp.pop %v590
      %v820 = vrcp.pop %v593
      %v821 = vrcp.pop %v596
      %v822 = vrcp.pop %v599
      %v823 = vrcp.pop %v602
      %v824 = vmul.f32 %v654, %v816
      %v825 = vmul.f32 %v657, %v817
      %v826 = vmul.f32 %v706, %v818
      %v827 = vmul.f32 %v709, %v819
      %v828 = vmul.f32 %v758, %v820
      %v829 = vmul.f32 %v761, %v821
      %v830 = vmul.f32 %v810, %v822
      %v831 = vmul.f32 %v813, %v823
      %v832 = vpack.c.bf16 %v825, %v824
      %v833 = vpack.c.bf16 %v827, %v826
      %v834 = vpack.c.bf16 %v829, %v828
      %v835 = vpack.c.bf16 %v831, %v830
      %v840 = vunpack.c.l.b16 %v832
      %v841 = vunpack.c.h.b16 %v832
      %v842 = vunpack.c.l.b16 %v833
      %v843 = vunpack.c.h.b16 %v833
      %v844 = vunpack.c.l.b16 %v834
      %v845 = vunpack.c.h.b16 %v834
      %v846 = vunpack.c.l.b16 %v835
      %v847 = vunpack.c.h.b16 %v835
      %v848 = vpack.c.b16 %v840, %v840
      %v849 = vpack.c.b16 %v841, %v841
      %v850 = vpack.c.b16 %v842, %v842
      %v851 = vpack.c.b16 %v843, %v843
      %v852 = vpack.c.b16 %v844, %v844
      %v853 = vpack.c.b16 %v845, %v845
      %v854 = vpack.c.b16 %v846, %v846
      %v855 = vpack.c.b16 %v847, %v847
      %vm864 = vcmask 60416
      %865 = vst.msk [vmem:[%s251] sm:$0xf] %vm864, %v848
      %vm866 = vcmask 57344
      %867 = vst.msk [vmem:[%s251 + $0x4] sm:$0x1] %vm866, %v849
      %868 = vst.msk [vmem:[%s251 + $0x8] sm:$0xf] %vm864, %v850
      %869 = vst.msk [vmem:[%s251 + $0xc] sm:$0x1] %vm866, %v851
      %870 = vst.msk [vmem:[%s251 + $0x10] sm:$0xf] %vm864, %v852
      %871 = vst.msk [vmem:[%s251 + $0x14] sm:$0x1] %vm866, %v853
      %872 = vst.msk [vmem:[%s251 + $0x18] sm:$0xf] %vm864, %v854
      %873 = vst.msk [vmem:[%s251 + $0x1c] sm:$0x1] %vm866, %v855
      %p874 = scmp.lt.s32.totalorder %s15, 1
      %s875 = scalar_select %p874, %s15, 1
      %s876 = smul.addr %s875, 8
      %s877 = smul.addr %s876, 4
      %s878 = scalar_lea.vmem %s4, %s877
      // Predicated region
      $region37: #{transformer_forward.32} parent=35 // pred_check
        %p879 = pneg %p137
      $region38: #{transformer_forward.32} parent=35 // pred_check_branch
        %881 = sbr.rel (%p879) target = $region40
      $region39: #{transformer_forward.32} parent=35 // pred_region
        _
      $region40: #{transformer_forward.32} parent=35 // pred_fallthru
        _
    $region36: #{transformer_forward.32} parent=5 // pred_fallthru
      _
    %p882 = scmp.le.s32.totalorder 2, %s10
    // Predicated region
    $region41: #{transformer_forward.32} parent=5 // pred_check
      %p883 = pneg %p882
    $region42: #{transformer_forward.32} parent=5 // pred_check_branch
      %885 = sbr.rel (%p883) target = $region44
    $region43: #{transformer_forward.32} parent=5 // pred_region
      %s886 = ssub.s32 %s10, 2
      // Predicated region
      $region45: #{transformer_forward.32} parent=43 // pred_check
        %p887 = pneg %p143
      $region46: #{transformer_forward.32} parent=43 // pred_check_branch
        %889 = sbr.rel (%p887) target = $region48
      $region47: #{transformer_forward.32} parent=43 // pred_region
        %p890 = scmp.lt.s32.totalorder %s16, 1
        %s891 = scalar_select %p890, %s16, 1
        %s892 = smul.addr %s891, 8
        %s893 = smul.addr %s892, 4
        %s894 = scalar_lea.vmem %s4, %s893
      $region48: #{transformer_forward.32} parent=43 // pred_fallthru
        _
    $region44: #{transformer_forward.32} parent=5 // pred_fallthru
      _
  $region6: #{transformer_forward.32} parent=0 // loop_footer
    %s14 = sadd.s32 1, %s10
  $region7: #{transformer_forward.32} parent=0 // loop_footer_branch
    %9 = sbr.rel target = $region3
  $region8: #{transformer_forward.32} parent=0 // loop_exit
    _

// kernel: transformer_forward.33
$region0: #{transformer_forward.33}
  #allocation0 [shape = 'u32[]', space=smem, size = 0x4, offset = 0x4, fixed_abs, tag = 'smem constant byte address 0x4 - core index']
  #allocation1 [shape = 'u32[144,128]{1,0:T(1,128)}', space=vmem, size = 0x12000, scoped, tag = 'internal scratch']
  %s0 = inlined_call_operand.vmem [shape: bf16[20,32], index: 0, kind: input, shape index: {}]
  %s1 = inlined_call_operand.vmem [shape: f32[20,32], index: 1, kind: input, shape index: {}]
  %s2 = inlined_call_operand.vmem [shape: f32[32,32], index: 2, kind: input, shape index: {}]
  %s3 = inlined_call_operand.vmem [shape: f32[1,32], index: 3, kind: input, shape index: {}]
  %s4 = inlined_call_operand.vmem [shape: f32[1,32], index: 4, kind: input, shape index: {}]
  %s5 = inlined_call_operand.vmem [shape: f32[1,32], index: 5, kind: input, shape index: {}]
  %s6 = inlined_call_operand.vmem [shape: f32[20,32], index: 6, kind: output, shape index: {}]
  %s7 = sld [smem:[#allocation0]]
  $region34: #{transformer_forward.33} parent=0
    _
  %s9 = ssub.s32 1, %s7
  %s10 = scalar_select 0, %s9, %s7
  // Predicated region
  $region2: #{transformer_forward.33} parent=0 // pred_check
    _
  $region3: #{transformer_forward.33} parent=0 // pred_check_branch
    %12 = sbr.rel (0) target = $region5
  $region4: #{transformer_forward.33} parent=0 // pred_region
    _
  $region5: #{transformer_forward.33} parent=0 // pred_fallthru
    _
  // Predicated region
  $region6: #{transformer_forward.33} parent=0 // pred_check
    _
  $region7: #{transformer_forward.33} parent=0 // pred_check_branch
    %14 = sbr.rel (0) target = $region9
  $region8: #{transformer_forward.33} parent=0 // pred_region
    _
  $region9: #{transformer_forward.33} parent=0 // pred_fallthru
    _
  // Predicated region
  $region10: #{transformer_forward.33} parent=0 // pred_check
    _
  $region11: #{transformer_forward.33} parent=0 // pred_check_branch
    %16 = sbr.rel (0) target = $region13
  $region12: #{transformer_forward.33} parent=0 // pred_region
    _
  $region13: #{transformer_forward.33} parent=0 // pred_fallthru
    _
  // Predicated region
  $region14: #{transformer_forward.33} parent=0 // pred_check
    _
  $region15: #{transformer_forward.33} parent=0 // pred_check_branch
    %18 = sbr.rel (0) target = $region17
  $region16: #{transformer_forward.33} parent=0 // pred_region
    _
  $region17: #{transformer_forward.33} parent=0 // pred_fallthru
    _
  // Predicated region
  $region18: #{transformer_forward.33} parent=0 // pred_check
    _
  $region19: #{transformer_forward.33} parent=0 // pred_check_branch
    %20 = sbr.rel (0) target = $region21
  $region20: #{transformer_forward.33} parent=0 // pred_region
    _
  $region21: #{transformer_forward.33} parent=0 // pred_fallthru
    _
  // Predicated region
  $region22: #{transformer_forward.33} parent=0 // pred_check
    _
  $region23: #{transformer_forward.33} parent=0 // pred_check_branch
    %22 = sbr.rel (0) target = $region25
  $region24: #{transformer_forward.33} parent=0 // pred_region
    _
  $region25: #{transformer_forward.33} parent=0 // pred_fallthru
    _
  %v24 = vld [vmem:[%s0] sm:$0xf]
  %v25 = vld [vmem:[%s0 + $0x4] sm:$0xf]
  %v26 = vld [vmem:[%s0 + $0x8] sm:$0x3]
  %v27 = vld [vmem:[%s2] sm:$0xff]
  %v28 = vld [vmem:[%s2 + $0x8] sm:$0xff]
  %v29 = vld [vmem:[%s2 + $0x10] sm:$0xff]
  %v30 = vld [vmem:[%s2 + $0x18] sm:$0xff]
  %v31 = vpack.c.bf16 %v28, %v27
  %v32 = vpack.c.bf16 %v30, %v29
  %v33 = vld [vmem:[%s3] sm:$0x1]
  %v35 = vlaneseq
  %v36 = vshrl.u32 %v35, 7
  %v37 = vsub.s32 0, %v36
  %v38 = vrot.slane %v33, %v37
  %v43 = vunpack.c.l.b16 %v24
  %v44 = vunpack.c.l.b16 %v25
  %v45 = vunpack.c.l.b16 %v26
  %v46 = vpack.c.b16 %v44, %v43
  %v47 = vpack.c.b16 %v45, %v45
  %vm48 = vcmask 261120
  %v50 = vsel %vm48, %v46, 0
  %v53 = vsel %vm48, %v47, 0
  %55 = vmatprep.subr.bf16.mxu0 0
  %56 = vmatpush1.bf16.msra.mxu0 0
  %57 = vmatprep.subr.bf16.mxu0 0
  %58 = vmatpush1.bf16.msra.mxu0 0
  %59 = vmatprep.subr.bf16.mxu0 0
  %60 = vmatpush1.bf16.msra.mxu0 0
  %61 = vmatprep.subr.bf16.mxu0 0
  %62 = vmatpush1.bf16.msra.mxu0 0
  %63 = vmatprep.subr.bf16.mxu0 0
  %64 = vmatpush1.bf16.msra.mxu0 0
  %65 = vmatprep.subr.bf16.mxu0 0
  %66 = vmatpush1.bf16.msra.mxu0 0
  %67 = vmatprep.subr.bf16.mxu0 0
  %68 = vmatpush1.bf16.msra.mxu0 %v32
  %69 = vmatprep.subr.bf16.mxu0 0
  %70 = vmatpush1.bf16.msra.mxu0 %v31
  %71 = vmatprep.subr.bf16.mxu0 0
  %72 = vmatpush2.bf16.msra.mxu0 0
  %73 = vmatprep.subr.bf16.mxu0 0
  %74 = vmatpush2.bf16.msra.mxu0 0
  %75 = vmatprep.subr.bf16.mxu0 0
  %76 = vmatpush2.bf16.msra.mxu0 0
  %77 = vmatprep.subr.bf16.mxu0 0
  %78 = vmatpush2.bf16.msra.mxu0 0
  %79 = vmatprep.subr.bf16.mxu0 0
  %80 = vmatpush2.bf16.msra.mxu0 0
  %81 = vmatprep.subr.bf16.mxu0 0
  %82 = vmatpush2.bf16.msra.mxu0 0
  %83 = vmatprep.subr.bf16.mxu0 0
  %84 = vmatpush2.bf16.msra.mxu0 0
  %85 = vmatprep.subr.bf16.mxu0 0
  %86 = vmatpush2.bf16.msra.mxu0 0
  %87 = vmatprep.mubr.bf16.mxu0 0
  %88 = vmatmul.mubr.bf16.gmra.mxu0 %v50
  %v89 = vpop.f32.mrf.mxu0
  %v90 = vadd.f32 %v38, %v89
  %v91 = vpop.f32.mrf.mxu0
  %v92 = vpop.f32.mrf.mxu0
  %v93 = vadd.f32 %v38, %v92
  %v94 = vpop.f32.mrf.mxu0
  %95 = vmatprep.mubr.bf16.mxu0 0
  %96 = vmatmul.mubr.bf16.gmra.mxu0 %v53
  %v97 = vpop.f32.mrf.mxu0
  %v98 = vadd.f32 %v38, %v97
  %v99 = vpop.f32.mrf.mxu0
  %v100 = vpop.f32.mrf.mxu0
  %v101 = vpop.f32.mrf.mxu0
  %102 = vdwg.mxu0
  %v103 = vld [vmem:[%s1] sm:$0xff]
  %v104 = vld [vmem:[%s1 + $0x8] sm:$0xff]
  %v105 = vld [vmem:[%s1 + $0x10] sm:$0xf]
  %v106 = vadd.f32 %v103, %v90
  %v107 = vadd.f32 %v104, %v93
  %v108 = vadd.f32 %v105, %v98
  %v109 = vsel %vm48, %v106, 0.0
  %110 = vadd.xlane.f32.xlu0 %v109
  %v111 = vpop.xlane.xlu0 %110
  %v112 = vsel %vm48, %v107, 0.0
  %113 = vadd.xlane.f32.xlu0 %v112
  %v114 = vpop.xlane.xlu0 %113
  %vm115 = vcmask 257024
  %v116 = vsel %vm115, %v108, 0.0
  %117 = vadd.xlane.f32.xlu0 %v116
  %v118 = vpop.xlane.xlu0 %117
  %v119 = vrcp.pop 32.0
  %v120 = vmul.f32 %v111, %v119
  %v121 = vmul.f32 %v114, %v119
  %v122 = vmul.f32 %v118, %v119
  %v123 = vsub.f32 %v106, %v120
  %v124 = vsub.f32 %v107, %v121
  %v125 = vsub.f32 %v108, %v122
  %v126 = vmul.f32 %v123, %v123
  %v127 = vmul.f32 %v124, %v124
  %v128 = vmul.f32 %v125, %v125
  %v129 = vsel %vm48, %v126, 0.0
  %130 = vadd.xlane.f32.xlu0 %v129
  %v131 = vpop.xlane.xlu0 %130
  %v132 = vsel %vm48, %v127, 0.0
  %133 = vadd.xlane.f32.xlu0 %v132
  %v134 = vpop.xlane.xlu0 %133
  %v135 = vsel %vm115, %v128, 0.0
  %136 = vadd.xlane.f32.xlu0 %v135
  %v137 = vpop.xlane.xlu0 %136
  %v138 = vmul.f32 %v131, %v119
  %v139 = vmul.f32 %v134, %v119
  %v140 = vmul.f32 %v137, %v119
  %v141 = vadd.f32 %v138, 1e-05
  %v142 = vadd.f32 %v139, 1e-05
  %v143 = vadd.f32 %v140, 1e-05
  %v144 = vrsqrt.pop %v141
  %v145 = vrsqrt.pop %v142
  %v146 = vrsqrt.pop %v143
  %v147 = vmul.f32 %v123, %v144
  %v148 = vmul.f32 %v124, %v145
  %v149 = vmul.f32 %v125, %v146
  %v150 = vld [vmem:[%s4] sm:$0x1]
  %v152 = vlaneseq
  %v153 = vshrl.u32 %v152, 7
  %v154 = vsub.s32 0, %v153
  %v155 = vrot.slane %v150, %v154
  %v157 = vmul.f32 %v147, %v155
  %v158 = vmul.f32 %v148, %v155
  %v159 = vmul.f32 %v149, %v155
  %v160 = vld [vmem:[%s5] sm:$0x1]
  %v162 = vlaneseq
  %v163 = vshrl.u32 %v162, 7
  %v164 = vsub.s32 0, %v163
  %v165 = vrot.slane %v160, %v164
  %v167 = vadd.f32 %v157, %v165
  %v168 = vadd.f32 %v158, %v165
  %v169 = vadd.f32 %v159, %v165
  %170 = vst.msk [vmem:[%s6] sm:$0xff] %vm48, %v167
  %171 = vst.msk [vmem:[%s6 + $0x8] sm:$0xff] %vm48, %v168
  %172 = vst.msk [vmem:[%s6 + $0x10] sm:$0xf] %vm115, %v169
  // Predicated region
  $region26: #{transformer_forward.33} parent=0 // pred_check
    _
  $region27: #{transformer_forward.33} parent=0 // pred_check_branch
    %174 = sbr.rel (0) target = $region29
  $region28: #{transformer_forward.33} parent=0 // pred_region
    _
  $region29: #{transformer_forward.33} parent=0 // pred_fallthru
    _
  // Predicated region
  $region30: #{transformer_forward.33} parent=0 // pred_check
    _
  $region31: #{transformer_forward.33} parent=0 // pred_check_branch
    %176 = sbr.rel (0) target = $region33
  $region32: #{transformer_forward.33} parent=0 // pred_region
    _
  $region33: #{transformer_forward.33} parent=0 // pred_fallthru
    _

// kernel: transformer_forward.34
$region0: #{transformer_forward.34}
  #allocation0 [shape = 'u32[]', space=smem, size = 0x4, offset = 0x4, fixed_abs, tag = 'smem constant byte address 0x4 - core index']
  #allocation1 [shape = 'u32[144,128]{1,0:T(1,128)}', space=vmem, size = 0x12000, scoped, tag = 'internal scratch']
  %s0 = inlined_call_operand.vmem [shape: f32[20,32], index: 0, kind: input, shape index: {}]
  %s1 = inlined_call_operand.vmem [shape: f32[32,64], index: 1, kind: input, shape index: {}]
  %s2 = inlined_call_operand.vmem [shape: f32[1,64], index: 2, kind: input, shape index: {}]
  %s3 = inlined_call_operand.vmem [shape: f32[64,32], index: 3, kind: input, shape index: {}]
  %s4 = inlined_call_operand.vmem [shape: f32[1,32], index: 4, kind: input, shape index: {}]
  %s5 = inlined_call_operand.vmem [shape: f32[1,32], index: 5, kind: input, shape index: {}]
  %s6 = inlined_call_operand.vmem [shape: f32[1,32], index: 6, kind: input, shape index: {}]
  %s7 = inlined_call_operand.vmem [shape: f32[20,32], index: 7, kind: output, shape index: {}]
  %s8 = sld [smem:[#allocation0]]
  $region38: #{transformer_forward.34} parent=0
    _
  %s10 = ssub.s32 1, %s8
  %s11 = scalar_select 0, %s10, %s8
  // Predicated region
  $region2: #{transformer_forward.34} parent=0 // pred_check
    _
  $region3: #{transformer_forward.34} parent=0 // pred_check_branch
    %13 = sbr.rel (0) target = $region5
  $region4: #{transformer_forward.34} parent=0 // pred_region
    _
  $region5: #{transformer_forward.34} parent=0 // pred_fallthru
    _
  // Predicated region
  $region6: #{transformer_forward.34} parent=0 // pred_check
    _
  $region7: #{transformer_forward.34} parent=0 // pred_check_branch
    %15 = sbr.rel (0) target = $region9
  $region8: #{transformer_forward.34} parent=0 // pred_region
    _
  $region9: #{transformer_forward.34} parent=0 // pred_fallthru
    _
  // Predicated region
  $region10: #{transformer_forward.34} parent=0 // pred_check
    _
  $region11: #{transformer_forward.34} parent=0 // pred_check_branch
    %17 = sbr.rel (0) target = $region13
  $region12: #{transformer_forward.34} parent=0 // pred_region
    _
  $region13: #{transformer_forward.34} parent=0 // pred_fallthru
    _
  // Predicated region
  $region14: #{transformer_forward.34} parent=0 // pred_check
    _
  $region15: #{transformer_forward.34} parent=0 // pred_check_branch
    %19 = sbr.rel (0) target = $region17
  $region16: #{transformer_forward.34} parent=0 // pred_region
    _
  $region17: #{transformer_forward.34} parent=0 // pred_fallthru
    _
  // Predicated region
  $region18: #{transformer_forward.34} parent=0 // pred_check
    _
  $region19: #{transformer_forward.34} parent=0 // pred_check_branch
    %21 = sbr.rel (0) target = $region21
  $region20: #{transformer_forward.34} parent=0 // pred_region
    _
  $region21: #{transformer_forward.34} parent=0 // pred_fallthru
    _
  // Predicated region
  $region22: #{transformer_forward.34} parent=0 // pred_check
    _
  $region23: #{transformer_forward.34} parent=0 // pred_check_branch
    %23 = sbr.rel (0) target = $region25
  $region24: #{transformer_forward.34} parent=0 // pred_region
    _
  $region25: #{transformer_forward.34} parent=0 // pred_fallthru
    _
  // Predicated region
  $region26: #{transformer_forward.34} parent=0 // pred_check
    _
  $region27: #{transformer_forward.34} parent=0 // pred_check_branch
    %25 = sbr.rel (0) target = $region29
  $region28: #{transformer_forward.34} parent=0 // pred_region
    _
  $region29: #{transformer_forward.34} parent=0 // pred_fallthru
    _
  %v27 = vld [vmem:[%s0] sm:$0xff]
  %v28 = vld [vmem:[%s0 + $0x8] sm:$0xff]
  %v29 = vld [vmem:[%s0 + $0x10] sm:$0xf]
  %v30 = vpack.c.bf16 %v28, %v27
  %v31 = vpack.c.bf16 %v29, %v29
  %v32 = vld [vmem:[%s1] sm:$0xff]
  %v33 = vld [vmem:[%s1 + $0x8] sm:$0xff]
  %v34 = vld [vmem:[%s1 + $0x10] sm:$0xff]
  %v35 = vld [vmem:[%s1 + $0x18] sm:$0xff]
  %v36 = vpack.c.bf16 %v33, %v32
  %v37 = vpack.c.bf16 %v35, %v34
  %v38 = vld [vmem:[%s2] sm:$0x1]
  %v40 = vlaneseq
  %v41 = vshrl.u32 %v40, 7
  %v42 = vsub.s32 0, %v41
  %v43 = vrot.slane %v38, %v42
  %vm45 = vcmask 261120
  %v47 = vsel %vm45, %v30, 0
  %v50 = vsel %vm45, %v31, 0
  %52 = vmatprep.subr.bf16.mxu0 0
  %53 = vmatpush1.bf16.msra.mxu0 0
  %54 = vmatprep.subr.bf16.mxu0 0
  %55 = vmatpush1.bf16.msra.mxu0 0
  %56 = vmatprep.subr.bf16.mxu0 0
  %57 = vmatpush1.bf16.msra.mxu0 0
  %58 = vmatprep.subr.bf16.mxu0 0
  %59 = vmatpush1.bf16.msra.mxu0 0
  %60 = vmatprep.subr.bf16.mxu0 0
  %61 = vmatpush1.bf16.msra.mxu0 0
  %62 = vmatprep.subr.bf16.mxu0 0
  %63 = vmatpush1.bf16.msra.mxu0 0
  %64 = vmatprep.subr.bf16.mxu0 0
  %65 = vmatpush1.bf16.msra.mxu0 %v37
  %66 = vmatprep.subr.bf16.mxu0 0
  %67 = vmatpush1.bf16.msra.mxu0 %v36
  %68 = vmatprep.subr.bf16.mxu0 0
  %69 = vmatpush2.bf16.msra.mxu0 0
  %70 = vmatprep.subr.bf16.mxu0 0
  %71 = vmatpush2.bf16.msra.mxu0 0
  %72 = vmatprep.subr.bf16.mxu0 0
  %73 = vmatpush2.bf16.msra.mxu0 0
  %74 = vmatprep.subr.bf16.mxu0 0
  %75 = vmatpush2.bf16.msra.mxu0 0
  %76 = vmatprep.subr.bf16.mxu0 0
  %77 = vmatpush2.bf16.msra.mxu0 0
  %78 = vmatprep.subr.bf16.mxu0 0
  %79 = vmatpush2.bf16.msra.mxu0 0
  %80 = vmatprep.subr.bf16.mxu0 0
  %81 = vmatpush2.bf16.msra.mxu0 0
  %82 = vmatprep.subr.bf16.mxu0 0
  %83 = vmatpush2.bf16.msra.mxu0 0
  %84 = vmatprep.mubr.bf16.mxu0 0
  %85 = vmatmul.mubr.bf16.gmra.mxu0 %v47
  %v86 = vpop.f32.mrf.mxu0
  %v87 = vadd.f32 %v43, %v86
  %v88 = vpop.f32.mrf.mxu0
  %v89 = vpop.f32.mrf.mxu0
  %v90 = vadd.f32 %v43, %v89
  %v91 = vpop.f32.mrf.mxu0
  %92 = vmatprep.mubr.bf16.mxu0 0
  %93 = vmatmul.mubr.bf16.gmra.mxu0 %v50
  %v94 = vpop.f32.mrf.mxu0
  %v95 = vadd.f32 %v43, %v94
  %v96 = vpop.f32.mrf.mxu0
  %v97 = vpop.f32.mrf.mxu0
  %v98 = vpop.f32.mrf.mxu0
  %99 = vdwg.mxu0
  %v100 = vmax.f32 %v87, 0.0
  %v101 = vmax.f32 %v90, 0.0
  %v102 = vmax.f32 %v95, 0.0
  %v103 = vpack.c.bf16 %v101, %v100
  %v104 = vpack.c.bf16 %v102, %v102
  %v105 = vld [vmem:[%s3] sm:$0xff]
  %v106 = vld [vmem:[%s3 + $0x8] sm:$0xff]
  %v107 = vld [vmem:[%s3 + $0x10] sm:$0xff]
  %v108 = vld [vmem:[%s3 + $0x18] sm:$0xff]
  %v109 = vld [vmem:[%s3 + $0x20] sm:$0xff]
  %v110 = vld [vmem:[%s3 + $0x28] sm:$0xff]
  %v111 = vld [vmem:[%s3 + $0x30] sm:$0xff]
  %v112 = vld [vmem:[%s3 + $0x38] sm:$0xff]
  %v113 = vpack.c.bf16 %v106, %v105
  %v114 = vpack.c.bf16 %v108, %v107
  %v115 = vpack.c.bf16 %v110, %v109
  %v116 = vpack.c.bf16 %v112, %v111
  %v117 = vld [vmem:[%s4] sm:$0x1]
  %v119 = vlaneseq
  %v120 = vshrl.u32 %v119, 7
  %v121 = vsub.s32 0, %v120
  %v122 = vrot.slane %v117, %v121
  %vm124 = vcmask 523264
  %v126 = vsel %vm124, %v103, 0
  %v129 = vsel %vm124, %v104, 0
  %131 = vmatprep.subr.bf16.mxu0 0
  %132 = vmatpush1.bf16.msra.mxu0 0
  %133 = vmatprep.subr.bf16.mxu0 0
  %134 = vmatpush1.bf16.msra.mxu0 0
  %135 = vmatprep.subr.bf16.mxu0 0
  %136 = vmatpush1.bf16.msra.mxu0 0
  %137 = vmatprep.subr.bf16.mxu0 0
  %138 = vmatpush1.bf16.msra.mxu0 0
  %139 = vmatprep.subr.bf16.mxu0 0
  %140 = vmatpush1.bf16.msra.mxu0 %v116
  %141 = vmatprep.subr.bf16.mxu0 0
  %142 = vmatpush1.bf16.msra.mxu0 %v115
  %143 = vmatprep.subr.bf16.mxu0 0
  %144 = vmatpush1.bf16.msra.mxu0 %v114
  %145 = vmatprep.subr.bf16.mxu0 0
  %146 = vmatpush1.bf16.msra.mxu0 %v113
  %147 = vmatprep.subr.bf16.mxu0 0
  %148 = vmatpush2.bf16.msra.mxu0 0
  %149 = vmatprep.subr.bf16.mxu0 0
  %150 = vmatpush2.bf16.msra.mxu0 0
  %151 = vmatprep.subr.bf16.mxu0 0
  %152 = vmatpush2.bf16.msra.mxu0 0
  %153 = vmatprep.subr.bf16.mxu0 0
  %154 = vmatpush2.bf16.msra.mxu0 0
  %155 = vmatprep.subr.bf16.mxu0 0
  %156 = vmatpush2.bf16.msra.mxu0 0
  %157 = vmatprep.subr.bf16.mxu0 0
  %158 = vmatpush2.bf16.msra.mxu0 0
  %159 = vmatprep.subr.bf16.mxu0 0
  %160 = vmatpush2.bf16.msra.mxu0 0
  %161 = vmatprep.subr.bf16.mxu0 0
  %162 = vmatpush2.bf16.msra.mxu0 0
  %163 = vmatprep.mubr.bf16.mxu0 0
  %164 = vmatmul.mubr.bf16.gmra.mxu0 %v126
  %v165 = vpop.f32.mrf.mxu0
  %v166 = vadd.f32 %v122, %v165
  %v167 = vpop.f32.mrf.mxu0
  %v168 = vpop.f32.mrf.mxu0
  %v169 = vadd.f32 %v122, %v168
  %v170 = vpop.f32.mrf.mxu0
  %171 = vmatprep.mubr.bf16.mxu0 0
  %172 = vmatmul.mubr.bf16.gmra.mxu0 %v129
  %v173 = vpop.f32.mrf.mxu0
  %v174 = vadd.f32 %v122, %v173
  %v175 = vpop.f32.mrf.mxu0
  %v176 = vpop.f32.mrf.mxu0
  %v177 = vpop.f32.mrf.mxu0
  %178 = vdwg.mxu0
  %v179 = vadd.f32 %v27, %v166
  %v180 = vadd.f32 %v28, %v169
  %v181 = vadd.f32 %v29, %v174
  %v182 = vsel %vm45, %v179, 0.0
  %183 = vadd.xlane.f32.xlu0 %v182
  %v184 = vpop.xlane.xlu0 %183
  %v185 = vsel %vm45, %v180, 0.0
  %186 = vadd.xlane.f32.xlu0 %v185
  %v187 = vpop.xlane.xlu0 %186
  %vm188 = vcmask 257024
  %v189 = vsel %vm188, %v181, 0.0
  %190 = vadd.xlane.f32.xlu0 %v189
  %v191 = vpop.xlane.xlu0 %190
  %v192 = vrcp.pop 32.0
  %v193 = vmul.f32 %v184, %v192
  %v194 = vmul.f32 %v187, %v192
  %v195 = vmul.f32 %v191, %v192
  %v196 = vsub.f32 %v179, %v193
  %v197 = vsub.f32 %v180, %v194
  %v198 = vsub.f32 %v181, %v195
  %v199 = vmul.f32 %v196, %v196
  %v200 = vmul.f32 %v197, %v197
  %v201 = vmul.f32 %v198, %v198
  %v202 = vsel %vm45, %v199, 0.0
  %203 = vadd.xlane.f32.xlu0 %v202
  %v204 = vpop.xlane.xlu0 %203
  %v205 = vsel %vm45, %v200, 0.0
  %206 = vadd.xlane.f32.xlu0 %v205
  %v207 = vpop.xlane.xlu0 %206
  %v208 = vsel %vm188, %v201, 0.0
  %209 = vadd.xlane.f32.xlu0 %v208
  %v210 = vpop.xlane.xlu0 %209
  %v211 = vmul.f32 %v204, %v192
  %v212 = vmul.f32 %v207, %v192
  %v213 = vmul.f32 %v210, %v192
  %v214 = vadd.f32 %v211, 1e-05
  %v215 = vadd.f32 %v212, 1e-05
  %v216 = vadd.f32 %v213, 1e-05
  %v217 = vrsqrt.pop %v214
  %v218 = vrsqrt.pop %v215
  %v219 = vrsqrt.pop %v216
  %v220 = vmul.f32 %v196, %v217
  %v221 = vmul.f32 %v197, %v218
  %v222 = vmul.f32 %v198, %v219
  %v223 = vld [vmem:[%s5] sm:$0x1]
  %v225 = vlaneseq
  %v226 = vshrl.u32 %v225, 7
  %v227 = vsub.s32 0, %v226
  %v228 = vrot.slane %v223, %v227
  %v230 = vmul.f32 %v220, %v228
  %v231 = vmul.f32 %v221, %v228
  %v232 = vmul.f32 %v222, %v228
  %v233 = vld [vmem:[%s6] sm:$0x1]
  %v235 = vlaneseq
  %v236 = vshrl.u32 %v235, 7
  %v237 = vsub.s32 0, %v236
  %v238 = vrot.slane %v233, %v237
  %v240 = vadd.f32 %v230, %v238
  %v241 = vadd.f32 %v231, %v238
  %v242 = vadd.f32 %v232, %v238
  %243 = vst.msk [vmem:[%s7] sm:$0xff] %vm45, %v240
  %244 = vst.msk [vmem:[%s7 + $0x8] sm:$0xff] %vm45, %v241
  %245 = vst.msk [vmem:[%s7 + $0x10] sm:$0xf] %vm188, %v242
  // Predicated region
  $region30: #{transformer_forward.34} parent=0 // pred_check
    _
  $region31: #{transformer_forward.34} parent=0 // pred_check_branch
    %247 = sbr.rel (0) target = $region33
  $region32: #{transformer_forward.34} parent=0 // pred_region
    _
  $region33: #{transformer_forward.34} parent=0 // pred_fallthru
    _
  // Predicated region
  $region34: #{transformer_forward.34} parent=0 // pred_check
    _
  $region35: #{transformer_forward.34} parent=0 // pred_check_branch
    %249 = sbr.rel (0) target = $region37
  $region36: #{transformer_forward.34} parent=0 // pred_region
    _
  $region37: #{transformer_forward.34} parent=0 // pred_fallthru
    _

// kernel: transformer_forward.44
$region0: #{transformer_forward.44}
  #allocation0 [shape = 'u32[]', space=smem, size = 0x4, offset = 0x4, fixed_abs, tag = 'smem constant byte address 0x4 - core index']
  #allocation1 [shape = 'u32[144,128]{1,0:T(1,128)}', space=vmem, size = 0x12000, scoped, tag = 'internal scratch']
  %s0 = inlined_call_operand.vmem [shape: f32[20,32], index: 0, kind: input, shape index: {}]
  %s1 = inlined_call_operand.vmem [shape: f32[32,64], index: 1, kind: input, shape index: {}]
  %s2 = inlined_call_operand.vmem [shape: f32[1,64], index: 2, kind: input, shape index: {}]
  %s3 = inlined_call_operand.vmem [shape: bf16[20,64], index: 3, kind: output, shape index: {}]
  %s4 = sld [smem:[#allocation0]]
  $region22: #{transformer_forward.44} parent=0
    _
  %s6 = ssub.s32 1, %s4
  %s7 = scalar_select 0, %s6, %s4
  // Predicated region
  $region2: #{transformer_forward.44} parent=0 // pred_check
    _
  $region3: #{transformer_forward.44} parent=0 // pred_check_branch
    %9 = sbr.rel (0) target = $region5
  $region4: #{transformer_forward.44} parent=0 // pred_region
    _
  $region5: #{transformer_forward.44} parent=0 // pred_fallthru
    _
  // Predicated region
  $region6: #{transformer_forward.44} parent=0 // pred_check
    _
  $region7: #{transformer_forward.44} parent=0 // pred_check_branch
    %11 = sbr.rel (0) target = $region9
  $region8: #{transformer_forward.44} parent=0 // pred_region
    _
  $region9: #{transformer_forward.44} parent=0 // pred_fallthru
    _
  // Predicated region
  $region10: #{transformer_forward.44} parent=0 // pred_check
    _
  $region11: #{transformer_forward.44} parent=0 // pred_check_branch
    %13 = sbr.rel (0) target = $region13
  $region12: #{transformer_forward.44} parent=0 // pred_region
    _
  $region13: #{transformer_forward.44} parent=0 // pred_fallthru
    _
  %v15 = vld [vmem:[%s0] sm:$0xff]
  %v16 = vld [vmem:[%s0 + $0x8] sm:$0xff]
  %v17 = vld [vmem:[%s0 + $0x10] sm:$0xf]
  %v18 = vpack.c.bf16 %v16, %v15
  %v19 = vpack.c.bf16 %v17, %v17
  %v20 = vld [vmem:[%s1] sm:$0xff]
  %v21 = vld [vmem:[%s1 + $0x8] sm:$0xff]
  %v22 = vld [vmem:[%s1 + $0x10] sm:$0xff]
  %v23 = vld [vmem:[%s1 + $0x18] sm:$0xff]
  %v24 = vpack.c.bf16 %v21, %v20
  %v25 = vpack.c.bf16 %v23, %v22
  %v26 = vld [vmem:[%s2] sm:$0x1]
  %v28 = vlaneseq
  %v29 = vshrl.u32 %v28, 7
  %v30 = vsub.s32 0, %v29
  %v31 = vrot.slane %v26, %v30
  %vm33 = vcmask 261120
  %v35 = vsel %vm33, %v18, 0
  %v38 = vsel %vm33, %v19, 0
  %40 = vmatprep.subr.bf16.mxu0 0
  %41 = vmatpush1.bf16.msra.mxu0 0
  %42 = vmatprep.subr.bf16.mxu0 0
  %43 = vmatpush1.bf16.msra.mxu0 0
  %44 = vmatprep.subr.bf16.mxu0 0
  %45 = vmatpush1.bf16.msra.mxu0 0
  %46 = vmatprep.subr.bf16.mxu0 0
  %47 = vmatpush1.bf16.msra.mxu0 0
  %48 = vmatprep.subr.bf16.mxu0 0
  %49 = vmatpush1.bf16.msra.mxu0 0
  %50 = vmatprep.subr.bf16.mxu0 0
  %51 = vmatpush1.bf16.msra.mxu0 0
  %52 = vmatprep.subr.bf16.mxu0 0
  %53 = vmatpush1.bf16.msra.mxu0 %v25
  %54 = vmatprep.subr.bf16.mxu0 0
  %55 = vmatpush1.bf16.msra.mxu0 %v24
  %56 = vmatprep.subr.bf16.mxu0 0
  %57 = vmatpush2.bf16.msra.mxu0 0
  %58 = vmatprep.subr.bf16.mxu0 0
  %59 = vmatpush2.bf16.msra.mxu0 0
  %60 = vmatprep.subr.bf16.mxu0 0
  %61 = vmatpush2.bf16.msra.mxu0 0
  %62 = vmatprep.subr.bf16.mxu0 0
  %63 = vmatpush2.bf16.msra.mxu0 0
  %64 = vmatprep.subr.bf16.mxu0 0
  %65 = vmatpush2.bf16.msra.mxu0 0
  %66 = vmatprep.subr.bf16.mxu0 0
  %67 = vmatpush2.bf16.msra.mxu0 0
  %68 = vmatprep.subr.bf16.mxu0 0
  %69 = vmatpush2.bf16.msra.mxu0 0
  %70 = vmatprep.subr.bf16.mxu0 0
  %71 = vmatpush2.bf16.msra.mxu0 0
  %72 = vmatprep.mubr.bf16.mxu0 0
  %73 = vmatmul.mubr.bf16.gmra.mxu0 %v35
  %v74 = vpop.f32.mrf.mxu0
  %v75 = vadd.f32 %v31, %v74
  %v76 = vpop.f32.mrf.mxu0
  %v77 = vpop.f32.mrf.mxu0
  %v78 = vadd.f32 %v31, %v77
  %v79 = vpop.f32.mrf.mxu0
  %80 = vmatprep.mubr.bf16.mxu0 0
  %81 = vmatmul.mubr.bf16.gmra.mxu0 %v38
  %v82 = vpop.f32.mrf.mxu0
  %v83 = vadd.f32 %v31, %v82
  %v84 = vpop.f32.mrf.mxu0
  %v85 = vpop.f32.mrf.mxu0
  %v86 = vpop.f32.mrf.mxu0
  %87 = vdwg.mxu0
  %v88 = vpack.c.bf16 %v78, %v75
  %v89 = vpack.c.bf16 %v83, %v83
  %v92 = vunpack.c.l.b16 %v88
  %v93 = vunpack.c.h.b16 %v88
  %v94 = vunpack.c.l.b16 %v89
  %v95 = vpack.c.b16 %v92, %v92
  %v96 = vpack.c.b16 %v93, %v93
  %v97 = vpack.c.b16 %v94, %v94
  %vm101 = vcmask 519168
  %102 = vst.msk [vmem:[%s3] sm:$0xf] %vm101, %v95
  %103 = vst.msk [vmem:[%s3 + $0x4] sm:$0xf] %vm101, %v96
  %vm104 = vcmask 517120
  %105 = vst.msk [vmem:[%s3 + $0x8] sm:$0x3] %vm104, %v97
  // Predicated region
  $region14: #{transformer_forward.44} parent=0 // pred_check
    _
  $region15: #{transformer_forward.44} parent=0 // pred_check_branch
    %107 = sbr.rel (0) target = $region17
  $region16: #{transformer_forward.44} parent=0 // pred_region
    _
  $region17: #{transformer_forward.44} parent=0 // pred_fallthru
    _
  // Predicated region
  $region18: #{transformer_forward.44} parent=0 // pred_check
    _
  $region19: #{transformer_forward.44} parent=0 // pred_check_branch
    %109 = sbr.rel (0) target = $region21
  $region20: #{transformer_forward.44} parent=0 // pred_region
    _
  $region21: #{transformer_forward.44} parent=0 // pred_fallthru
    _

// kernel: transformer_forward.30
$region0: #{transformer_forward.30}
  #allocation0 [shape = 'u32[]', space=smem, size = 0x4, offset = 0x4, fixed_abs, tag = 'smem constant byte address 0x4 - core index']
  #allocation1 [shape = 'u32[144,128]{1,0:T(1,128)}', space=vmem, size = 0x12000, scoped, tag = 'internal scratch']
  %s0 = inlined_call_operand.vmem [shape: f32[16,32], index: 0, kind: input, shape index: {}]
  %s1 = inlined_call_operand.vmem [shape: f32[1,32], index: 1, kind: input, shape index: {}]
  %s2 = inlined_call_operand.vmem [shape: f32[16,32], index: 2, kind: output, shape index: {}]
  %s3 = sld [smem:[#allocation0]]
  $region18: #{transformer_forward.30} parent=0
    _
  %s5 = ssub.s32 1, %s3
  %s6 = scalar_select 0, %s5, %s3
  // Predicated region
  $region2: #{transformer_forward.30} parent=0 // pred_check
    _
  $region3: #{transformer_forward.30} parent=0 // pred_check_branch
    %8 = sbr.rel (0) target = $region5
  $region4: #{transformer_forward.30} parent=0 // pred_region
    _
  $region5: #{transformer_forward.30} parent=0 // pred_fallthru
    _
  // Predicated region
  $region6: #{transformer_forward.30} parent=0 // pred_check
    _
  $region7: #{transformer_forward.30} parent=0 // pred_check_branch
    %10 = sbr.rel (0) target = $region9
  $region8: #{transformer_forward.30} parent=0 // pred_region
    _
  $region9: #{transformer_forward.30} parent=0 // pred_fallthru
    _
  %v11 = vld [vmem:[%s0] sm:$0xff]
  %v12 = vld [vmem:[%s0 + $0x8] sm:$0xff]
  %v13 = vmul.f32 %v11, 5.656854
  %v14 = vmul.f32 %v12, 5.656854
  %v15 = vld [vmem:[%s1] sm:$0x1]
  %v17 = vlaneseq
  %v18 = vshrl.u32 %v17, 7
  %v19 = vsub.s32 0, %v18
  %v20 = vrot.slane %v15, %v19
  %v22 = vadd.f32 %v13, %v20
  %v23 = vadd.f32 %v14, %v20
  %vm24 = vcmask 261120
  %25 = vst.msk [vmem:[%s2] sm:$0xff] %vm24, %v22
  %26 = vst.msk [vmem:[%s2 + $0x8] sm:$0xff] %vm24, %v23
  // Predicated region
  $region10: #{transformer_forward.30} parent=0 // pred_check
    _
  $region11: #{transformer_forward.30} parent=0 // pred_check_branch
    %28 = sbr.rel (0) target = $region13
  $region12: #{transformer_forward.30} parent=0 // pred_region
    _
  $region13: #{transformer_forward.30} parent=0 // pred_fallthru
    _
  // Predicated region
  $region14: #{transformer_forward.30} parent=0 // pred_check
    _
  $region15: #{transformer_forward.30} parent=0 // pred_check_branch
    %30 = sbr.rel (0) target = $region17
  $region16: #{transformer_forward.30} parent=0 // pred_region
    _
  $region17: #{transformer_forward.30} parent=0 // pred_fallthru
    _

// kernel: transformer_forward.40
$region0: #{transformer_forward.40}
  #allocation0 [shape = 'u32[]', space=smem, size = 0x4, offset = 0x4, fixed_abs, tag = 'smem constant byte address 0x4 - core index']
  #allocation1 [shape = 'u32[144,128]{1,0:T(1,128)}', space=vmem, size = 0x12000, scoped, tag = 'internal scratch']
  %s0 = inlined_call_operand.vmem [shape: f32[16,32], index: 0, kind: input, shape index: {}]
  %s1 = inlined_call_operand.vmem [shape: f32[32,96], index: 1, kind: input, shape index: {}]
  %s2 = inlined_call_operand.vmem [shape: f32[1,96], index: 2, kind: input, shape index: {}]
  %s3 = inlined_call_operand.vmem [shape: bf16[16,96], index: 3, kind: output, shape index: {}]
  %s4 = sld [smem:[#allocation0]]
  $region22: #{transformer_forward.40} parent=0
    _
  %s6 = ssub.s32 1, %s4
  %s7 = scalar_select 0, %s6, %s4
  // Predicated region
  $region2: #{transformer_forward.40} parent=0 // pred_check
    _
  $region3: #{transformer_forward.40} parent=0 // pred_check_branch
    %9 = sbr.rel (0) target = $region5
  $region4: #{transformer_forward.40} parent=0 // pred_region
    _
  $region5: #{transformer_forward.40} parent=0 // pred_fallthru
    _
  // Predicated region
  $region6: #{transformer_forward.40} parent=0 // pred_check
    _
  $region7: #{transformer_forward.40} parent=0 // pred_check_branch
    %11 = sbr.rel (0) target = $region9
  $region8: #{transformer_forward.40} parent=0 // pred_region
    _
  $region9: #{transformer_forward.40} parent=0 // pred_fallthru
    _
  // Predicated region
  $region10: #{transformer_forward.40} parent=0 // pred_check
    _
  $region11: #{transformer_forward.40} parent=0 // pred_check_branch
    %13 = sbr.rel (0) target = $region13
  $region12: #{transformer_forward.40} parent=0 // pred_region
    _
  $region13: #{transformer_forward.40} parent=0 // pred_fallthru
    _
  %v15 = vld [vmem:[%s0] sm:$0xff]
  %v16 = vld [vmem:[%s0 + $0x8] sm:$0xff]
  %v17 = vpack.c.bf16 %v16, %v15
  %v18 = vld [vmem:[%s1] sm:$0xff]
  %v19 = vld [vmem:[%s1 + $0x8] sm:$0xff]
  %v20 = vld [vmem:[%s1 + $0x10] sm:$0xff]
  %v21 = vld [vmem:[%s1 + $0x18] sm:$0xff]
  %v22 = vpack.c.bf16 %v19, %v18
  %v23 = vpack.c.bf16 %v21, %v20
  %v24 = vld [vmem:[%s2] sm:$0x1]
  %v26 = vlaneseq
  %v27 = vshrl.u32 %v26, 7
  %v28 = vsub.s32 0, %v27
  %v29 = vrot.slane %v24, %v28
  %vm31 = vcmask 261120
  %v33 = vsel %vm31, %v17, 0
  %35 = vmatprep.subr.bf16.mxu0 0
  %36 = vmatpush1.bf16.msra.mxu0 0
  %37 = vmatprep.subr.bf16.mxu0 0
  %38 = vmatpush1.bf16.msra.mxu0 0
  %39 = vmatprep.subr.bf16.mxu0 0
  %40 = vmatpush1.bf16.msra.mxu0 0
  %41 = vmatprep.subr.bf16.mxu0 0
  %42 = vmatpush1.bf16.msra.mxu0 0
  %43 = vmatprep.subr.bf16.mxu0 0
  %44 = vmatpush1.bf16.msra.mxu0 0
  %45 = vmatprep.subr.bf16.mxu0 0
  %46 = vmatpush1.bf16.msra.mxu0 0
  %47 = vmatprep.subr.bf16.mxu0 0
  %48 = vmatpush1.bf16.msra.mxu0 %v23
  %49 = vmatprep.subr.bf16.mxu0 0
  %50 = vmatpush1.bf16.msra.mxu0 %v22
  %51 = vmatprep.subr.bf16.mxu0 0
  %52 = vmatpush2.bf16.msra.mxu0 0
  %53 = vmatprep.subr.bf16.mxu0 0
  %54 = vmatpush2.bf16.msra.mxu0 0
  %55 = vmatprep.subr.bf16.mxu0 0
  %56 = vmatpush2.bf16.msra.mxu0 0
  %57 = vmatprep.subr.bf16.mxu0 0
  %58 = vmatpush2.bf16.msra.mxu0 0
  %59 = vmatprep.subr.bf16.mxu0 0
  %60 = vmatpush2.bf16.msra.mxu0 0
  %61 = vmatprep.subr.bf16.mxu0 0
  %62 = vmatpush2.bf16.msra.mxu0 0
  %63 = vmatprep.subr.bf16.mxu0 0
  %64 = vmatpush2.bf16.msra.mxu0 0
  %65 = vmatprep.subr.bf16.mxu0 0
  %66 = vmatpush2.bf16.msra.mxu0 0
  %67 = vmatprep.mubr.bf16.mxu0 0
  %68 = vmatmul.mubr.bf16.gmra.mxu0 %v33
  %v69 = vpop.f32.mrf.mxu0
  %v70 = vadd.f32 %v29, %v69
  %v71 = vpop.f32.mrf.mxu0
  %v72 = vpop.f32.mrf.mxu0
  %v73 = vadd.f32 %v29, %v72
  %v74 = vpop.f32.mrf.mxu0
  %75 = vdwg.mxu0
  %v76 = vpack.c.bf16 %v73, %v70
  %v78 = vunpack.c.l.b16 %v76
  %v79 = vunpack.c.h.b16 %v76
  %v80 = vpack.c.b16 %v78, %v78
  %v81 = vpack.c.b16 %v79, %v79
  %vm84 = vcmask 781312
  %85 = vst.msk [vmem:[%s3] sm:$0xf] %vm84, %v80
  %86 = vst.msk [vmem:[%s3 + $0x4] sm:$0xf] %vm84, %v81
  // Predicated region
  $region14: #{transformer_forward.40} parent=0 // pred_check
    _
  $region15: #{transformer_forward.40} parent=0 // pred_check_branch
    %88 = sbr.rel (0) target = $region17
  $region16: #{transformer_forward.40} parent=0 // pred_region
    _
  $region17: #{transformer_forward.40} parent=0 // pred_fallthru
    _
  // Predicated region
  $region18: #{transformer_forward.40} parent=0 // pred_check
    _
  $region19: #{transformer_forward.40} parent=0 // pred_check_branch
    %90 = sbr.rel (0) target = $region21
  $region20: #{transformer_forward.40} parent=0 // pred_region
    _
  $region21: #{transformer_forward.40} parent=0 // pred_fallthru
    _

// kernel: transformer_forward.43
$region0: #{transformer_forward.43}
  #allocation0 [shape = 'u32[]', space=smem, size = 0x4, offset = 0x4, fixed_abs, tag = 'smem constant byte address 0x4 - core index']
  #allocation1 [shape = 'u32[144,128]{1,0:T(1,128)}', space=vmem, size = 0x12000, scoped, tag = 'internal scratch']
  %s0 = inlined_call_operand.vmem [shape: f32[16,32], index: 0, kind: input, shape index: {}]
  %s1 = inlined_call_operand.vmem [shape: f32[32,32], index: 1, kind: input, shape index: {}]
  %s2 = inlined_call_operand.vmem [shape: f32[1,32], index: 2, kind: input, shape index: {}]
  %s3 = inlined_call_operand.vmem [shape: bf16[16,32], index: 3, kind: output, shape index: {}]
  %s4 = sld [smem:[#allocation0]]
  $region22: #{transformer_forward.43} parent=0
    _
  %s6 = ssub.s32 1, %s4
  %s7 = scalar_select 0, %s6, %s4
  // Predicated region
  $region2: #{transformer_forward.43} parent=0 // pred_check
    _
  $region3: #{transformer_forward.43} parent=0 // pred_check_branch
    %9 = sbr.rel (0) target = $region5
  $region4: #{transformer_forward.43} parent=0 // pred_region
    _
  $region5: #{transformer_forward.43} parent=0 // pred_fallthru
    _
  // Predicated region
  $region6: #{transformer_forward.43} parent=0 // pred_check
    _
  $region7: #{transformer_forward.43} parent=0 // pred_check_branch
    %11 = sbr.rel (0) target = $region9
  $region8: #{transformer_forward.43} parent=0 // pred_region
    _
  $region9: #{transformer_forward.43} parent=0 // pred_fallthru
    _
  // Predicated region
  $region10: #{transformer_forward.43} parent=0 // pred_check
    _
  $region11: #{transformer_forward.43} parent=0 // pred_check_branch
    %13 = sbr.rel (0) target = $region13
  $region12: #{transformer_forward.43} parent=0 // pred_region
    _
  $region13: #{transformer_forward.43} parent=0 // pred_fallthru
    _
  %v15 = vld [vmem:[%s0] sm:$0xff]
  %v16 = vld [vmem:[%s0 + $0x8] sm:$0xff]
  %v17 = vpack.c.bf16 %v16, %v15
  %v18 = vld [vmem:[%s1] sm:$0xff]
  %v19 = vld [vmem:[%s1 + $0x8] sm:$0xff]
  %v20 = vld [vmem:[%s1 + $0x10] sm:$0xff]
  %v21 = vld [vmem:[%s1 + $0x18] sm:$0xff]
  %v22 = vpack.c.bf16 %v19, %v18
  %v23 = vpack.c.bf16 %v21, %v20
  %v24 = vld [vmem:[%s2] sm:$0x1]
  %v26 = vlaneseq
  %v27 = vshrl.u32 %v26, 7
  %v28 = vsub.s32 0, %v27
  %v29 = vrot.slane %v24, %v28
  %vm31 = vcmask 261120
  %v33 = vsel %vm31, %v17, 0
  %35 = vmatprep.subr.bf16.mxu0 0
  %36 = vmatpush1.bf16.msra.mxu0 0
  %37 = vmatprep.subr.bf16.mxu0 0
  %38 = vmatpush1.bf16.msra.mxu0 0
  %39 = vmatprep.subr.bf16.mxu0 0
  %40 = vmatpush1.bf16.msra.mxu0 0
  %41 = vmatprep.subr.bf16.mxu0 0
  %42 = vmatpush1.bf16.msra.mxu0 0
  %43 = vmatprep.subr.bf16.mxu0 0
  %44 = vmatpush1.bf16.msra.mxu0 0
  %45 = vmatprep.subr.bf16.mxu0 0
  %46 = vmatpush1.bf16.msra.mxu0 0
  %47 = vmatprep.subr.bf16.mxu0 0
  %48 = vmatpush1.bf16.msra.mxu0 %v23
  %49 = vmatprep.subr.bf16.mxu0 0
  %50 = vmatpush1.bf16.msra.mxu0 %v22
  %51 = vmatprep.subr.bf16.mxu0 0
  %52 = vmatpush2.bf16.msra.mxu0 0
  %53 = vmatprep.subr.bf16.mxu0 0
  %54 = vmatpush2.bf16.msra.mxu0 0
  %55 = vmatprep.subr.bf16.mxu0 0
  %56 = vmatpush2.bf16.msra.mxu0 0
  %57 = vmatprep.subr.bf16.mxu0 0
  %58 = vmatpush2.bf16.msra.mxu0 0
  %59 = vmatprep.subr.bf16.mxu0 0
  %60 = vmatpush2.bf16.msra.mxu0 0
  %61 = vmatprep.subr.bf16.mxu0 0
  %62 = vmatpush2.bf16.msra.mxu0 0
  %63 = vmatprep.subr.bf16.mxu0 0
  %64 = vmatpush2.bf16.msra.mxu0 0
  %65 = vmatprep.subr.bf16.mxu0 0
  %66 = vmatpush2.bf16.msra.mxu0 0
  %67 = vmatprep.mubr.bf16.mxu0 0
  %68 = vmatmul.mubr.bf16.gmra.mxu0 %v33
  %v69 = vpop.f32.mrf.mxu0
  %v70 = vadd.f32 %v29, %v69
  %v71 = vpop.f32.mrf.mxu0
  %v72 = vpop.f32.mrf.mxu0
  %v73 = vadd.f32 %v29, %v72
  %v74 = vpop.f32.mrf.mxu0
  %75 = vdwg.mxu0
  %v76 = vpack.c.bf16 %v73, %v70
  %v78 = vunpack.c.l.b16 %v76
  %v79 = vunpack.c.h.b16 %v76
  %v80 = vpack.c.b16 %v78, %v78
  %v81 = vpack.c.b16 %v79, %v79
  %vm84 = vcmask 257024
  %85 = vst.msk [vmem:[%s3] sm:$0xf] %vm84, %v80
  %86 = vst.msk [vmem:[%s3 + $0x4] sm:$0xf] %vm84, %v81
  // Predicated region
  $region14: #{transformer_forward.43} parent=0 // pred_check
    _
  $region15: #{transformer_forward.43} parent=0 // pred_check_branch
    %88 = sbr.rel (0) target = $region17
  $region16: #{transformer_forward.43} parent=0 // pred_region
    _
  $region17: #{transformer_forward.43} parent=0 // pred_fallthru
    _
  // Predicated region
  $region18: #{transformer_forward.43} parent=0 // pred_check
    _
  $region19: #{transformer_forward.43} parent=0 // pred_check_branch
    %90 = sbr.rel (0) target = $region21
  $region20: #{transformer_forward.43} parent=0 // pred_region
    _
  $region21: #{transformer_forward.43} parent=0 // pred_fallthru
    _

// kernel: transformer_forward.42
$region0: #{transformer_forward.42}
  #allocation0 [shape = 'u32[]', space=smem, size = 0x4, offset = 0x4, fixed_abs, tag = 'smem constant byte address 0x4 - core index']
  #allocation1 [shape = 'u32[144,128]{1,0:T(1,128)}', space=vmem, size = 0x12000, scoped, tag = 'internal scratch']
  %s0 = inlined_call_operand.vmem [shape: bf16[16,32], index: 0, kind: input, shape index: {}]
  %s1 = inlined_call_operand.vmem [shape: f32[16,32], index: 1, kind: input, shape index: {}]
  %s2 = inlined_call_operand.vmem [shape: f32[32,32], index: 2, kind: input, shape index: {}]
  %s3 = inlined_call_operand.vmem [shape: f32[1,32], index: 3, kind: input, shape index: {}]
  %s4 = inlined_call_operand.vmem [shape: f32[1,32], index: 4, kind: input, shape index: {}]
  %s5 = inlined_call_operand.vmem [shape: f32[1,32], index: 5, kind: input, shape index: {}]
  %s6 = inlined_call_operand.vmem [shape: f32[16,32], index: 6, kind: output, shape index: {}]
  %s7 = sld [smem:[#allocation0]]
  $region34: #{transformer_forward.42} parent=0
    _
  %s9 = ssub.s32 1, %s7
  %s10 = scalar_select 0, %s9, %s7
  // Predicated region
  $region2: #{transformer_forward.42} parent=0 // pred_check
    _
  $region3: #{transformer_forward.42} parent=0 // pred_check_branch
    %12 = sbr.rel (0) target = $region5
  $region4: #{transformer_forward.42} parent=0 // pred_region
    _
  $region5: #{transformer_forward.42} parent=0 // pred_fallthru
    _
  // Predicated region
  $region6: #{transformer_forward.42} parent=0 // pred_check
    _
  $region7: #{transformer_forward.42} parent=0 // pred_check_branch
    %14 = sbr.rel (0) target = $region9
  $region8: #{transformer_forward.42} parent=0 // pred_region
    _
  $region9: #{transformer_forward.42} parent=0 // pred_fallthru
    _
  // Predicated region
  $region10: #{transformer_forward.42} parent=0 // pred_check
    _
  $region11: #{transformer_forward.42} parent=0 // pred_check_branch
    %16 = sbr.rel (0) target = $region13
  $region12: #{transformer_forward.42} parent=0 // pred_region
    _
  $region13: #{transformer_forward.42} parent=0 // pred_fallthru
    _
  // Predicated region
  $region14: #{transformer_forward.42} parent=0 // pred_check
    _
  $region15: #{transformer_forward.42} parent=0 // pred_check_branch
    %18 = sbr.rel (0) target = $region17
  $region16: #{transformer_forward.42} parent=0 // pred_region
    _
  $region17: #{transformer_forward.42} parent=0 // pred_fallthru
    _
  // Predicated region
  $region18: #{transformer_forward.42} parent=0 // pred_check
    _
  $region19: #{transformer_forward.42} parent=0 // pred_check_branch
    %20 = sbr.rel (0) target = $region21
  $region20: #{transformer_forward.42} parent=0 // pred_region
    _
  $region21: #{transformer_forward.42} parent=0 // pred_fallthru
    _
  // Predicated region
  $region22: #{transformer_forward.42} parent=0 // pred_check
    _
  $region23: #{transformer_forward.42} parent=0 // pred_check_branch
    %22 = sbr.rel (0) target = $region25
  $region24: #{transformer_forward.42} parent=0 // pred_region
    _
  $region25: #{transformer_forward.42} parent=0 // pred_fallthru
    _
  %v24 = vld [vmem:[%s0] sm:$0xf]
  %v25 = vld [vmem:[%s0 + $0x4] sm:$0xf]
  %v26 = vld [vmem:[%s2] sm:$0xff]
  %v27 = vld [vmem:[%s2 + $0x8] sm:$0xff]
  %v28 = vld [vmem:[%s2 + $0x10] sm:$0xff]
  %v29 = vld [vmem:[%s2 + $0x18] sm:$0xff]
  %v30 = vpack.c.bf16 %v27, %v26
  %v31 = vpack.c.bf16 %v29, %v28
  %v32 = vld [vmem:[%s3] sm:$0x1]
  %v34 = vlaneseq
  %v35 = vshrl.u32 %v34, 7
  %v36 = vsub.s32 0, %v35
  %v37 = vrot.slane %v32, %v36
  %v41 = vunpack.c.l.b16 %v24
  %v42 = vunpack.c.l.b16 %v25
  %v43 = vpack.c.b16 %v42, %v41
  %vm44 = vcmask 261120
  %v46 = vsel %vm44, %v43, 0
  %48 = vmatprep.subr.bf16.mxu0 0
  %49 = vmatpush1.bf16.msra.mxu0 0
  %50 = vmatprep.subr.bf16.mxu0 0
  %51 = vmatpush1.bf16.msra.mxu0 0
  %52 = vmatprep.subr.bf16.mxu0 0
  %53 = vmatpush1.bf16.msra.mxu0 0
  %54 = vmatprep.subr.bf16.mxu0 0
  %55 = vmatpush1.bf16.msra.mxu0 0
  %56 = vmatprep.subr.bf16.mxu0 0
  %57 = vmatpush1.bf16.msra.mxu0 0
  %58 = vmatprep.subr.bf16.mxu0 0
  %59 = vmatpush1.bf16.msra.mxu0 0
  %60 = vmatprep.subr.bf16.mxu0 0
  %61 = vmatpush1.bf16.msra.mxu0 %v31
  %62 = vmatprep.subr.bf16.mxu0 0
  %63 = vmatpush1.bf16.msra.mxu0 %v30
  %64 = vmatprep.subr.bf16.mxu0 0
  %65 = vmatpush2.bf16.msra.mxu0 0
  %66 = vmatprep.subr.bf16.mxu0 0
  %67 = vmatpush2.bf16.msra.mxu0 0
  %68 = vmatprep.subr.bf16.mxu0 0
  %69 = vmatpush2.bf16.msra.mxu0 0
  %70 = vmatprep.subr.bf16.mxu0 0
  %71 = vmatpush2.bf16.msra.mxu0 0
  %72 = vmatprep.subr.bf16.mxu0 0
  %73 = vmatpush2.bf16.msra.mxu0 0
  %74 = vmatprep.subr.bf16.mxu0 0
  %75 = vmatpush2.bf16.msra.mxu0 0
  %76 = vmatprep.subr.bf16.mxu0 0
  %77 = vmatpush2.bf16.msra.mxu0 0
  %78 = vmatprep.subr.bf16.mxu0 0
  %79 = vmatpush2.bf16.msra.mxu0 0
  %80 = vmatprep.mubr.bf16.mxu0 0
  %81 = vmatmul.mubr.bf16.gmra.mxu0 %v46
  %v82 = vpop.f32.mrf.mxu0
  %v83 = vadd.f32 %v37, %v82
  %v84 = vpop.f32.mrf.mxu0
  %v85 = vpop.f32.mrf.mxu0
  %v86 = vadd.f32 %v37, %v85
  %v87 = vpop.f32.mrf.mxu0
  %88 = vdwg.mxu0
  %v89 = vld [vmem:[%s1] sm:$0xff]
  %v90 = vld [vmem:[%s1 + $0x8] sm:$0xff]
  %v91 = vadd.f32 %v89, %v83
  %v92 = vadd.f32 %v90, %v86
  %v93 = vsel %vm44, %v91, 0.0
  %94 = vadd.xlane.f32.xlu0 %v93
  %v95 = vpop.xlane.xlu0 %94
  %v96 = vsel %vm44, %v92, 0.0
  %97 = vadd.xlane.f32.xlu0 %v96
  %v98 = vpop.xlane.xlu0 %97
  %v99 = vrcp.pop 32.0
  %v100 = vmul.f32 %v95, %v99
  %v101 = vmul.f32 %v98, %v99
  %v102 = vsub.f32 %v91, %v100
  %v103 = vsub.f32 %v92, %v101
  %v104 = vmul.f32 %v102, %v102
  %v105 = vmul.f32 %v103, %v103
  %v106 = vsel %vm44, %v104, 0.0
  %107 = vadd.xlane.f32.xlu0 %v106
  %v108 = vpop.xlane.xlu0 %107
  %v109 = vsel %vm44, %v105, 0.0
  %110 = vadd.xlane.f32.xlu0 %v109
  %v111 = vpop.xlane.xlu0 %110
  %v112 = vmul.f32 %v108, %v99
  %v113 = vmul.f32 %v111, %v99
  %v114 = vadd.f32 %v112, 1e-05
  %v115 = vadd.f32 %v113, 1e-05
  %v116 = vrsqrt.pop %v114
  %v117 = vrsqrt.pop %v115
  %v118 = vmul.f32 %v102, %v116
  %v119 = vmul.f32 %v103, %v117
  %v120 = vld [vmem:[%s4] sm:$0x1]
  %v122 = vlaneseq
  %v123 = vshrl.u32 %v122, 7
  %v124 = vsub.s32 0, %v123
  %v125 = vrot.slane %v120, %v124
  %v127 = vmul.f32 %v118, %v125
  %v128 = vmul.f32 %v119, %v125
  %v129 = vld [vmem:[%s5] sm:$0x1]
  %v131 = vlaneseq
  %v132 = vshrl.u32 %v131, 7
  %v133 = vsub.s32 0, %v132
  %v134 = vrot.slane %v129, %v133
  %v136 = vadd.f32 %v127, %v134
  %v137 = vadd.f32 %v128, %v134
  %138 = vst.msk [vmem:[%s6] sm:$0xff] %vm44, %v136
  %139 = vst.msk [vmem:[%s6 + $0x8] sm:$0xff] %vm44, %v137
  // Predicated region
  $region26: #{transformer_forward.42} parent=0 // pred_check
    _
  $region27: #{transformer_forward.42} parent=0 // pred_check_branch
    %141 = sbr.rel (0) target = $region29
  $region28: #{transformer_forward.42} parent=0 // pred_region
    _
  $region29: #{transformer_forward.42} parent=0 // pred_fallthru
    _
  // Predicated region
  $region30: #{transformer_forward.42} parent=0 // pred_check
    _
  $region31: #{transformer_forward.42} parent=0 // pred_check_branch
    %143 = sbr.rel (0) target = $region33
  $region32: #{transformer_forward.42} parent=0 // pred_region
    _
  $region33: #{transformer_forward.42} parent=0 // pred_fallthru
    _

// kernel: transformer_forward.41
$region0: #{transformer_forward.41}
  #allocation0 [shape = 'u32[]', space=smem, size = 0x4, offset = 0x4, fixed_abs, tag = 'smem constant byte address 0x4 - core index']
  #allocation1 [shape = 'u32[144,128]{1,0:T(1,128)}', space=vmem, size = 0x12000, scoped, tag = 'internal scratch']
  %s0 = inlined_call_operand.vmem [shape: bf16[2,4,8,8], index: 0, kind: input, shape index: {}]
  %s1 = inlined_call_operand.vmem [shape: bf16[2,4,8,8], index: 1, kind: input, shape index: {}]
  %s2 = inlined_call_operand.vmem [shape: bf16[2,4,8,8], index: 2, kind: input, shape index: {}]
  %s3 = inlined_call_operand.vmem [shape: f32[2,1,8], index: 3, kind: input, shape index: {}]
  %s4 = inlined_call_operand.vmem [shape: bf16[2,4,8,8], index: 4, kind: output, shape index: {}]
  %s5 = sld [smem:[#allocation0]]
  $region49: #{transformer_forward.41} parent=0
    _
  %s7 = ssub.s32 1, %s5
  %s8 = scalar_select 0, %s7, %s5
  loop: start=0, step=1, limit=4
  $region2: #{transformer_forward.41} parent=0 // loop_pre_header
    _
  $region3: #{transformer_forward.41} parent=0 // loop_header
    %s10 = sphi 0, %s14
    %p11 = scmp.ge.s32.totalorder %s10, 4
    %s20 = sphi 0, %s22
    %s23 = sphi 0, %s20
    %s24 = sphi 0, %s23
    %s40 = sphi 0, %s24
    %s46 = sphi 0, %s48
    %s49 = sphi 0, %s46
    %s50 = sphi 0, %s49
    %s66 = sphi 0, %s50
    %s72 = sphi 0, %s74
    %s75 = sphi 0, %s72
    %s76 = sphi 0, %s75
    %s92 = sphi 0, %s76
    %s98 = sphi 0, %s100
    %s101 = sphi 0, %s98
    %s102 = sphi 0, %s101
    %s118 = sphi 0, %s102
    %s124 = sphi 0, %s126
    %s127 = sphi 0, %s124
    %s128 = sphi 0, %s127
    %s144 = sphi 0, %s128
  $region4: #{transformer_forward.41} parent=0 // loop_header_branch
    %13 = sbr.rel (%p11) target = $region8
  $region5: #{transformer_forward.41} parent=0 // loop_body
    %s15 = ssub.s32 %s10, 1
    %s16 = ssub.s32 %s10, 2
    %s17 = sadd.s32 %s10, 1
    %s18 = ssub.s32 %s10, %s17
    %p19 = scmp.eq.s32.totalorder %s18, 0
    %s21 = sadd.s32 %s20, 1
    %s22 = scalar_select %p19, %s20, %s21
    %p25 = pneg %p19
    %p26 = scmp.eq.s32.totalorder %s10, 1
    %p27 = por %p25, %p26
    %p28 = scmp.ne.s32.totalorder %s20, %s23
    %p29 = scmp.eq.s32.totalorder %s10, 0
    %p30 = por %p28, %p29
    %p31 = scmp.ne.s32.totalorder %s20, %s23
    %p32 = scmp.eq.s32.totalorder %s15, 1
    %p33 = por %p31, %p32
    %p34 = scmp.ne.s32.totalorder %s23, %s24
    %p35 = scmp.eq.s32.totalorder %s15, 0
    %p36 = por %p34, %p35
    %p37 = scmp.ne.s32.totalorder %s23, %s24
    %p38 = scmp.eq.s32.totalorder %s16, 1
    %p39 = por %p37, %p38
    %p41 = scmp.ne.s32.totalorder %s24, %s40
    %p42 = scmp.eq.s32.totalorder %s16, 0
    %p43 = por %p41, %p42
    %s44 = ssub.s32 %s10, %s17
    %p45 = scmp.eq.s32.totalorder %s44, 0
    %s47 = sadd.s32 %s46, 1
    %s48 = scalar_select %p45, %s46, %s47
    %p51 = pneg %p45
    %p52 = scmp.eq.s32.totalorder %s10, 1
    %p53 = por %p51, %p52
    %p54 = scmp.ne.s32.totalorder %s46, %s49
    %p55 = scmp.eq.s32.totalorder %s10, 0
    %p56 = por %p54, %p55
    %p57 = scmp.ne.s32.totalorder %s46, %s49
    %p58 = scmp.eq.s32.totalorder %s15, 1
    %p59 = por %p57, %p58
    %p60 = scmp.ne.s32.totalorder %s49, %s50
    %p61 = scmp.eq.s32.totalorder %s15, 0
    %p62 = por %p60, %p61
    %p63 = scmp.ne.s32.totalorder %s49, %s50
    %p64 = scmp.eq.s32.totalorder %s16, 1
    %p65 = por %p63, %p64
    %p67 = scmp.ne.s32.totalorder %s50, %s66
    %p68 = scmp.eq.s32.totalorder %s16, 0
    %p69 = por %p67, %p68
    %s70 = ssub.s32 %s10, %s17
    %p71 = scmp.eq.s32.totalorder %s70, 0
    %s73 = sadd.s32 %s72, 1
    %s74 = scalar_select %p71, %s72, %s73
    %p77 = pneg %p71
    %p78 = scmp.eq.s32.totalorder %s10, 1
    %p79 = por %p77, %p78
    %p80 = scmp.ne.s32.totalorder %s72, %s75
    %p81 = scmp.eq.s32.totalorder %s10, 0
    %p82 = por %p80, %p81
    %p83 = scmp.ne.s32.totalorder %s72, %s75
    %p84 = scmp.eq.s32.totalorder %s15, 1
    %p85 = por %p83, %p84
    %p86 = scmp.ne.s32.totalorder %s75, %s76
    %p87 = scmp.eq.s32.totalorder %s15, 0
    %p88 = por %p86, %p87
    %p89 = scmp.ne.s32.totalorder %s75, %s76
    %p90 = scmp.eq.s32.totalorder %s16, 1
    %p91 = por %p89, %p90
    %p93 = scmp.ne.s32.totalorder %s76, %s92
    %p94 = scmp.eq.s32.totalorder %s16, 0
    %p95 = por %p93, %p94
    %s96 = ssub.s32 %s10, %s17
    %p97 = scmp.eq.s32.totalorder %s96, 0
    %s99 = sadd.s32 %s98, 1
    %s100 = scalar_select %p97, %s98, %s99
    %p103 = pneg %p97
    %p104 = scmp.eq.s32.totalorder %s10, 1
    %p105 = por %p103, %p104
    %p106 = scmp.ne.s32.totalorder %s98, %s101
    %p107 = scmp.eq.s32.totalorder %s10, 0
    %p108 = por %p106, %p107
    %p109 = scmp.ne.s32.totalorder %s98, %s101
    %p110 = scmp.eq.s32.totalorder %s15, 1
    %p111 = por %p109, %p110
    %p112 = scmp.ne.s32.totalorder %s101, %s102
    %p113 = scmp.eq.s32.totalorder %s15, 0
    %p114 = por %p112, %p113
    %p115 = scmp.ne.s32.totalorder %s101, %s102
    %p116 = scmp.eq.s32.totalorder %s16, 1
    %p117 = por %p115, %p116
    %p119 = scmp.ne.s32.totalorder %s102, %s118
    %p120 = scmp.eq.s32.totalorder %s16, 0
    %p121 = por %p119, %p120
    %s122 = ssub.s32 %s10, %s17
    %p123 = scmp.eq.s32.totalorder %s122, 0
    %s125 = sadd.s32 %s124, 1
    %s126 = scalar_select %p123, %s124, %s125
    %p129 = pneg %p123
    %p130 = scmp.eq.s32.totalorder %s10, 1
    %p131 = por %p129, %p130
    %p132 = scmp.ne.s32.totalorder %s124, %s127
    %p133 = scmp.eq.s32.totalorder %s10, 0
    %p134 = por %p132, %p133
    %p135 = scmp.ne.s32.totalorder %s124, %s127
    %p136 = scmp.eq.s32.totalorder %s15, 1
    %p137 = por %p135, %p136
    %p138 = scmp.ne.s32.totalorder %s127, %s128
    %p139 = scmp.eq.s32.totalorder %s15, 0
    %p140 = por %p138, %p139
    %p141 = scmp.ne.s32.totalorder %s127, %s128
    %p142 = scmp.eq.s32.totalorder %s16, 1
    %p143 = por %p141, %p142
    %p145 = scmp.ne.s32.totalorder %s128, %s144
    %p146 = scmp.eq.s32.totalorder %s16, 0
    %p147 = por %p145, %p146
    %p148 = scmp.le.s32.totalorder 1, %s10
    %p149 = scmp.lt.s32.totalorder %s10, 3
    %p150 = pnand %p148, %p149
    %p151 = pneg %p150
    // Predicated region
    $region9: #{transformer_forward.41} parent=5 // pred_check
      _
    $region10: #{transformer_forward.41} parent=5 // pred_check_branch
      %153 = sbr.rel (%p150) target = $region12
    $region11: #{transformer_forward.41} parent=5 // pred_region
      %s154 = ssub.s32 %s10, 1
    $region12: #{transformer_forward.41} parent=5 // pred_fallthru
      _
    %p155 = scmp.lt.s32.totalorder %s10, 2
    // Predicated region
    $region13: #{transformer_forward.41} parent=5 // pred_check
      %p156 = pneg %p155
    $region14: #{transformer_forward.41} parent=5 // pred_check_branch
      %158 = sbr.rel (%p156) target = $region16
    $region15: #{transformer_forward.41} parent=5 // pred_region
      // Predicated region
      $region17: #{transformer_forward.41} parent=15 // pred_check
        %p159 = pneg %p30
      $region18: #{transformer_forward.41} parent=15 // pred_check_branch
        %161 = sbr.rel (%p159) target = $region20
      $region19: #{transformer_forward.41} parent=15 // pred_region
        %p162 = scmp.lt.s32.totalorder %s10, 1
        %s163 = scalar_select %p162, %s10, 1
        %s164 = smul.addr %s163, 4
        %s165 = smul.addr %s164, 4
        %s166 = scalar_lea.vmem %s0, %s165
      $region20: #{transformer_forward.41} parent=15 // pred_fallthru
        _
      // Predicated region
      $region21: #{transformer_forward.41} parent=15 // pred_check
        %p167 = pneg %p56
      $region22: #{transformer_forward.41} parent=15 // pred_check_branch
        %169 = sbr.rel (%p167) target = $region24
      $region23: #{transformer_forward.41} parent=15 // pred_region
        %p170 = scmp.lt.s32.totalorder %s10, 1
        %s171 = scalar_select %p170, %s10, 1
        %s172 = smul.addr %s171, 4
        %s173 = smul.addr %s172, 4
        %s174 = scalar_lea.vmem %s1, %s173
      $region24: #{transformer_forward.41} parent=15 // pred_fallthru
        _
      // Predicated region
      $region25: #{transformer_forward.41} parent=15 // pred_check
        %p175 = pneg %p82
      $region26: #{transformer_forward.41} parent=15 // pred_check_branch
        %177 = sbr.rel (%p175) target = $region28
      $region27: #{transformer_forward.41} parent=15 // pred_region
        %p178 = scmp.lt.s32.totalorder %s10, 1
        %s179 = scalar_select %p178, %s10, 1
        %s180 = smul.addr %s179, 4
        %s181 = smul.addr %s180, 4
        %s182 = scalar_lea.vmem %s2, %s181
      $region28: #{transformer_forward.41} parent=15 // pred_fallthru
        _
      // Predicated region
      $region29: #{transformer_forward.41} parent=15 // pred_check
        %p183 = pneg %p108
      $region30: #{transformer_forward.41} parent=15 // pred_check_branch
        %185 = sbr.rel (%p183) target = $region32
      $region31: #{transformer_forward.41} parent=15 // pred_region
        %p186 = scmp.lt.s32.totalorder %s10, 1
        %s187 = scalar_select %p186, %s10, 1
        %s188 = scalar_lea.vmem %s3, %s187
      $region32: #{transformer_forward.41} parent=15 // pred_fallthru
        _
    $region16: #{transformer_forward.41} parent=5 // pred_fallthru
      _
    %p189 = scmp.le.s32.totalorder 1, %s10
    %p190 = scmp.lt.s32.totalorder %s10, 3
    %p191 = pnand %p189, %p190
    %p192 = pneg %p191
    // Predicated region
    $region33: #{transformer_forward.41} parent=5 // pred_check
      _
    $region34: #{transformer_forward.41} parent=5 // pred_check_branch
      %194 = sbr.rel (%p191) target = $region36
    $region35: #{transformer_forward.41} parent=5 // pred_region
      %s195 = ssub.s32 %s10, 1
      %p196 = scmp.lt.s32.totalorder %s15, 1
      %s197 = scalar_select %p196, %s15, 1
      %s198 = smul.addr %s197, 4
      %s199 = smul.addr %s198, 4
      %s200 = scalar_lea.vmem %s0, %s199
      %p201 = pneg %p36
      %p202 = pneg %p33
      %p203 = scmp.lt.s32.totalorder %s15, 1
      %s204 = scalar_select %p203, %s15, 1
      %s205 = smul.addr %s204, 4
      %s206 = smul.addr %s205, 4
      %s207 = scalar_lea.vmem %s1, %s206
      %p208 = pneg %p62
      %p209 = pneg %p59
      %p210 = scmp.lt.s32.totalorder %s15, 1
      %s211 = scalar_select %p210, %s15, 1
      %s212 = smul.addr %s211, 4
      %s213 = smul.addr %s212, 4
      %s214 = scalar_lea.vmem %s2, %s213
      %p215 = pneg %p88
      %p216 = pneg %p85
      %p217 = scmp.lt.s32.totalorder %s15, 1
      %s218 = scalar_select %p217, %s15, 1
      %s219 = scalar_lea.vmem %s3, %s218
      %p220 = pneg %p114
      %p221 = pneg %p111
      %p222 = pneg %p140
      %p223 = pneg %p137
      %p224 = scmp.lt.s32.totalorder %s15, 1
      %s225 = scalar_select %p224, %s15, 1
      %s226 = smul.addr %s225, 4
      %s227 = smul.addr %s226, 4
      %s228 = scalar_lea.vmem %s4, %s227
      %p229 = scmp.lt.s32.totalorder %s15, 1
      %s230 = scalar_select %p229, %s15, 1
      %s231 = smul.addr %s230, 4
      %s232 = smul.addr %s231, 4
      %s233 = scalar_lea.vmem %s0, %s232
      %p234 = scmp.lt.s32.totalorder %s15, 1
      %s235 = scalar_select %p234, %s15, 1
      %s236 = smul.addr %s235, 4
      %s237 = smul.addr %s236, 4
      %s238 = scalar_lea.vmem %s1, %s237
      %p239 = scmp.lt.s32.totalorder %s15, 1
      %s240 = scalar_select %p239, %s15, 1
      %s241 = smul.addr %s240, 4
      %s242 = smul.addr %s241, 4
      %s243 = scalar_lea.vmem %s2, %s242
      %p244 = scmp.lt.s32.totalorder %s15, 1
      %s245 = scalar_select %p244, %s15, 1
      %s246 = scalar_lea.vmem %s3, %s245
      %p247 = scmp.lt.s32.totalorder %s15, 1
      %s248 = scalar_select %p247, %s15, 1
      %s249 = smul.addr %s248, 4
      %s250 = smul.addr %s249, 4
      %s251 = scalar_lea.vmem %s4, %s250
      %v253 = vld [vmem:[%s233] sm:$0xf]
      %v254 = vld [vmem:[%s233 + $0x4] sm:$0xf]
      %v255 = vld [vmem:[%s233 + $0x8] sm:$0xf]
      %v256 = vld [vmem:[%s233 + $0xc] sm:$0xf]
      %v257 = vld [vmem:[%s238] sm:$0xf]
      %v258 = vld [vmem:[%s238 + $0x4] sm:$0xf]
      %v259 = vld [vmem:[%s238 + $0x8] sm:$0xf]
      %v260 = vld [vmem:[%s238 + $0xc] sm:$0xf]
      %v261 = vld [vmem:[%s243] sm:$0xf]
      %v262 = vld [vmem:[%s243 + $0x4] sm:$0xf]
      %v263 = vld [vmem:[%s243 + $0x8] sm:$0xf]
      %v264 = vld [vmem:[%s243 + $0xc] sm:$0xf]
      %vm265 = vcmask 64512
      %v267 = vsel %vm265, %v253, 0
      %v270 = vsel %vm265, %v257, 0
      %272 = vmatprep.subr.bf16.mxu0 0
      %273 = vmatpush1.bf16.xpose.msra.mxu0 0
      %274 = vmatprep.subr.bf16.mxu0 0
      %275 = vmatpush1.bf16.xpose.msra.mxu0 0
      %276 = vmatprep.subr.bf16.mxu0 0
      %277 = vmatpush1.bf16.xpose.msra.mxu0 0
      %278 = vmatprep.subr.bf16.mxu0 0
      %279 = vmatpush1.bf16.xpose.msra.mxu0 0
      %280 = vmatprep.subr.bf16.mxu0 0
      %281 = vmatpush1.bf16.xpose.msra.mxu0 0
      %282 = vmatprep.subr.bf16.mxu0 0
      %283 = vmatpush1.bf16.xpose.msra.mxu0 0
      %284 = vmatprep.subr.bf16.mxu0 0
      %285 = vmatpush1.bf16.xpose.msra.mxu0 0
      %286 = vmatprep.subr.bf16.mxu0 0
      %287 = vmatpush1.bf16.xpose.msra.mxu0 %v270
      %288 = vmatprep.subr.bf16.mxu0 0
      %289 = vmatpush2.bf16.xpose.msra.mxu0 0
      %290 = vmatprep.subr.bf16.mxu0 0
      %291 = vmatpush2.bf16.xpose.msra.mxu0 0
      %292 = vmatprep.subr.bf16.mxu0 0
      %293 = vmatpush2.bf16.xpose.msra.mxu0 0
      %294 = vmatprep.subr.bf16.mxu0 0
      %295 = vmatpush2.bf16.xpose.msra.mxu0 0
      %296 = vmatprep.subr.bf16.mxu0 0
      %297 = vmatpush2.bf16.xpose.msra.mxu0 0
      %298 = vmatprep.subr.bf16.mxu0 0
      %299 = vmatpush2.bf16.xpose.msra.mxu0 0
      %300 = vmatprep.subr.bf16.mxu0 0
      %301 = vmatpush2.bf16.xpose.msra.mxu0 0
      %302 = vmatprep.subr.bf16.mxu0 0
      %303 = vmatpush2.bf16.xpose.msra.mxu0 0
      %304 = vmatprep.mubr.bf16.mxu0 0
      %305 = vmatmul.mubr.bf16.gmra.mxu0 %v267
      %v306 = vpop.f32.mrf.mxu0
      %v307 = vadd.f32 0.0, %v306
      %v308 = vpop.f32.mrf.mxu0
      %v309 = vpop.f32.mrf.mxu0
      %v310 = vpop.f32.mrf.mxu0
      %311 = vdwg.mxu0
      %v313 = vsel %vm265, %v254, 0
      %v316 = vsel %vm265, %v258, 0
      %318 = vmatprep.subr.bf16.mxu0 0
      %319 = vmatpush1.bf16.xpose.msra.mxu0 0
      %320 = vmatprep.subr.bf16.mxu0 0
      %321 = vmatpush1.bf16.xpose.msra.mxu0 0
      %322 = vmatprep.subr.bf16.mxu0 0
      %323 = vmatpush1.bf16.xpose.msra.mxu0 0
      %324 = vmatprep.subr.bf16.mxu0 0
      %325 = vmatpush1.bf16.xpose.msra.mxu0 0
      %326 = vmatprep.subr.bf16.mxu0 0
      %327 = vmatpush1.bf16.xpose.msra.mxu0 0
      %328 = vmatprep.subr.bf16.mxu0 0
      %329 = vmatpush1.bf16.xpose.msra.mxu0 0
      %330 = vmatprep.subr.bf16.mxu0 0
      %331 = vmatpush1.bf16.xpose.msra.mxu0 0
      %332 = vmatprep.subr.bf16.mxu0 0
      %333 = vmatpush1.bf16.xpose.msra.mxu0 %v316
      %334 = vmatprep.subr.bf16.mxu0 0
      %335 = vmatpush2.bf16.xpose.msra.mxu0 0
      %336 = vmatprep.subr.bf16.mxu0 0
      %337 = vmatpush2.bf16.xpose.msra.mxu0 0
      %338 = vmatprep.subr.bf16.mxu0 0
      %339 = vmatpush2.bf16.xpose.msra.mxu0 0
      %340 = vmatprep.subr.bf16.mxu0 0
      %341 = vmatpush2.bf16.xpose.msra.mxu0 0
      %342 = vmatprep.subr.bf16.mxu0 0
      %343 = vmatpush2.bf16.xpose.msra.mxu0 0
      %344 = vmatprep.subr.bf16.mxu0 0
      %345 = vmatpush2.bf16.xpose.msra.mxu0 0
      %346 = vmatprep.subr.bf16.mxu0 0
      %347 = vmatpush2.bf16.xpose.msra.mxu0 0
      %348 = vmatprep.subr.bf16.mxu0 0
      %349 = vmatpush2.bf16.xpose.msra.mxu0 0
      %350 = vmatprep.mubr.bf16.mxu0 0
      %351 = vmatmul.mubr.bf16.gmra.mxu0 %v313
      %v352 = vpop.f32.mrf.mxu0
      %v353 = vadd.f32 0.0, %v352
      %v354 = vpop.f32.mrf.mxu0
      %v355 = vpop.f32.mrf.mxu0
      %v356 = vpop.f32.mrf.mxu0
      %357 = vdwg.mxu0
      %v359 = vsel %vm265, %v255, 0
      %v362 = vsel %vm265, %v259, 0
      %364 = vmatprep.subr.bf16.mxu0 0
      %365 = vmatpush1.bf16.xpose.msra.mxu0 0
      %366 = vmatprep.subr.bf16.mxu0 0
      %367 = vmatpush1.bf16.xpose.msra.mxu0 0
      %368 = vmatprep.subr.bf16.mxu0 0
      %369 = vmatpush1.bf16.xpose.msra.mxu0 0
      %370 = vmatprep.subr.bf16.mxu0 0
      %371 = vmatpush1.bf16.xpose.msra.mxu0 0
      %372 = vmatprep.subr.bf16.mxu0 0
      %373 = vmatpush1.bf16.xpose.msra.mxu0 0
      %374 = vmatprep.subr.bf16.mxu0 0
      %375 = vmatpush1.bf16.xpose.msra.mxu0 0
      %376 = vmatprep.subr.bf16.mxu0 0
      %377 = vmatpush1.bf16.xpose.msra.mxu0 0
      %378 = vmatprep.subr.bf16.mxu0 0
      %379 = vmatpush1.bf16.xpose.msra.mxu0 %v362
      %380 = vmatprep.subr.bf16.mxu0 0
      %381 = vmatpush2.bf16.xpose.msra.mxu0 0
      %382 = vmatprep.subr.bf16.mxu0 0
      %383 = vmatpush2.bf16.xpose.msra.mxu0 0
      %384 = vmatprep.subr.bf16.mxu0 0
      %385 = vmatpush2.bf16.xpose.msra.mxu0 0
      %386 = vmatprep.subr.bf16.mxu0 0
      %387 = vmatpush2.bf16.xpose.msra.mxu0 0
      %388 = vmatprep.subr.bf16.mxu0 0
      %389 = vmatpush2.bf16.xpose.msra.mxu0 0
      %390 = vmatprep.subr.bf16.mxu0 0
      %391 = vmatpush2.bf16.xpose.msra.mxu0 0
      %392 = vmatprep.subr.bf16.mxu0 0
      %393 = vmatpush2.bf16.xpose.msra.mxu0 0
      %394 = vmatprep.subr.bf16.mxu0 0
      %395 = vmatpush2.bf16.xpose.msra.mxu0 0
      %396 = vmatprep.mubr.bf16.mxu0 0
      %397 = vmatmul.mubr.bf16.gmra.mxu0 %v359
      %v398 = vpop.f32.mrf.mxu0
      %v399 = vadd.f32 0.0, %v398
      %v400 = vpop.f32.mrf.mxu0
      %v401 = vpop.f32.mrf.mxu0
      %v402 = vpop.f32.mrf.mxu0
      %403 = vdwg.mxu0
      %v405 = vsel %vm265, %v256, 0
      %v408 = vsel %vm265, %v260, 0
      %410 = vmatprep.subr.bf16.mxu0 0
      %411 = vmatpush1.bf16.xpose.msra.mxu0 0
      %412 = vmatprep.subr.bf16.mxu0 0
      %413 = vmatpush1.bf16.xpose.msra.mxu0 0
      %414 = vmatprep.subr.bf16.mxu0 0
      %415 = vmatpush1.bf16.xpose.msra.mxu0 0
      %416 = vmatprep.subr.bf16.mxu0 0
      %417 = vmatpush1.bf16.xpose.msra.mxu0 0
      %418 = vmatprep.subr.bf16.mxu0 0
      %419 = vmatpush1.bf16.xpose.msra.mxu0 0
      %420 = vmatprep.subr.bf16.mxu0 0
      %421 = vmatpush1.bf16.xpose.msra.mxu0 0
      %422 = vmatprep.subr.bf16.mxu0 0
      %423 = vmatpush1.bf16.xpose.msra.mxu0 0
      %424 = vmatprep.subr.bf16.mxu0 0
      %425 = vmatpush1.bf16.xpose.msra.mxu0 %v408
      %426 = vmatprep.subr.bf16.mxu0 0
      %427 = vmatpush2.bf16.xpose.msra.mxu0 0
      %428 = vmatprep.subr.bf16.mxu0 0
      %429 = vmatpush2.bf16.xpose.msra.mxu0 0
      %430 = vmatprep.subr.bf16.mxu0 0
      %431 = vmatpush2.bf16.xpose.msra.mxu0 0
      %432 = vmatprep.subr.bf16.mxu0 0
      %433 = vmatpush2.bf16.xpose.msra.mxu0 0
      %434 = vmatprep.subr.bf16.mxu0 0
      %435 = vmatpush2.bf16.xpose.msra.mxu0 0
      %436 = vmatprep.subr.bf16.mxu0 0
      %437 = vmatpush2.bf16.xpose.msra.mxu0 0
      %438 = vmatprep.subr.bf16.mxu0 0
      %439 = vmatpush2.bf16.xpose.msra.mxu0 0
      %440 = vmatprep.subr.bf16.mxu0 0
      %441 = vmatpush2.bf16.xpose.msra.mxu0 0
      %442 = vmatprep.mubr.bf16.mxu0 0
      %443 = vmatmul.mubr.bf16.gmra.mxu0 %v405
      %v444 = vpop.f32.mrf.mxu0
      %v445 = vadd.f32 0.0, %v444
      %v446 = vpop.f32.mrf.mxu0
      %v447 = vpop.f32.mrf.mxu0
      %v448 = vpop.f32.mrf.mxu0
      %449 = vdwg.mxu0
      %v450 = vmul.f32 %v307, 0.35355338
      %v451 = vmul.f32 %v353, 0.35355338
      %v452 = vmul.f32 %v399, 0.35355338
      %v453 = vmul.f32 %v445, 0.35355338
      %v454 = vld [vmem:[%s246] sm:$0x1]
      %v456 = vlaneseq
      %v457 = vshrl.u32 %v456, 7
      %v458 = vsub.s32 0, %v457
      %v459 = vrot.slane %v454, %v458
      %v461 = vadd.f32 %v450, %v459
      %v462 = vadd.f32 %v451, %v459
      %v463 = vadd.f32 %v452, %v459
      %v464 = vadd.f32 %v453, %v459
      %v465 = vlaneseq
      %v466 = vshrl.u32 %v465, 7
      %v467 = vlaneseq
      %v468 = vand.u32 %v467, 127
      %vm469 = vcmp.le.s32.totalorder %v468, %v466
      %v470 = vsel %vm469, 1, 0
      %vm471 = vcmp.eq.s32.totalorder %v470, 1
      %v472 = vsel %vm471, %v461, -inf
      %v473 = vsel %vm471, %v462, -inf
      %v474 = vsel %vm471, %v463, -inf
      %v475 = vsel %vm471, %v464, -inf
      %v476 = vsel %vm265, %v472, -inf
      %477 = vmax.xlane.f32.xlu0 %v476
      %v478 = vpop.xlane.xlu0 %477
      %v479 = vsel %vm265, %v473, -inf
      %480 = vmax.xlane.f32.xlu0 %v479
      %v481 = vpop.xlane.xlu0 %480
      %v482 = vsel %vm265, %v474, -inf
      %483 = vmax.xlane.f32.xlu0 %v482
      %v484 = vpop.xlane.xlu0 %483
      %v485 = vsel %vm265, %v475, -inf
      %486 = vmax.xlane.f32.xlu0 %v485
      %v487 = vpop.xlane.xlu0 %486
      %v488 = vsub.f32 %v472, %v478
      %v489 = vsub.f32 %v473, %v481
      %v490 = vsub.f32 %v474, %v484
      %v491 = vsub.f32 %v475, %v487
      %v492 = vmul.f32 %v488, 1.442695
      %v493 = vpow.pop %v492
      %v494 = vmul.f32 %v489, 1.442695
      %v495 = vpow.pop %v494
      %v496 = vmul.f32 %v490, 1.442695
      %v497 = vpow.pop %v496
      %v498 = vmul.f32 %v491, 1.442695
      %v499 = vpow.pop %v498
      %v500 = vsel %vm265, %v493, 0.0
      %501 = vadd.xlane.f32.xlu0 %v500
      %v502 = vpop.xlane.xlu0 %501
      %v503 = vsel %vm265, %v495, 0.0
      %504 = vadd.xlane.f32.xlu0 %v503
      %v505 = vpop.xlane.xlu0 %504
      %v506 = vsel %vm265, %v497, 0.0
      %507 = vadd.xlane.f32.xlu0 %v506
      %v508 = vpop.xlane.xlu0 %507
      %v509 = vsel %vm265, %v499, 0.0
      %510 = vadd.xlane.f32.xlu0 %v509
      %v511 = vpop.xlane.xlu0 %510
      %v512 = vpack.c.bf16 %v493, %v493
      %v513 = vpack.c.bf16 %v495, %v495
      %v514 = vpack.c.bf16 %v497, %v497
      %v515 = vpack.c.bf16 %v499, %v499
      %v517 = vsel %vm265, %v512, 0
      %vm519 = vcmask 1043456
      %v521 = vsel %vm519, %v261, 0
      %523 = vmatprep.subr.bf16.mxu0 0
      %524 = vmatpush1.bf16.msra.mxu0 0
      %525 = vmatprep.subr.bf16.mxu0 0
      %526 = vmatpush1.bf16.msra.mxu0 0
      %527 = vmatprep.subr.bf16.mxu0 0
      %528 = vmatpush1.bf16.msra.mxu0 0
      %529 = vmatprep.subr.bf16.mxu0 0
      %530 = vmatpush1.bf16.msra.mxu0 0
      %531 = vmatprep.subr.bf16.mxu0 0
      %532 = vmatpush1.bf16.msra.mxu0 0
      %533 = vmatprep.subr.bf16.mxu0 0
      %534 = vmatpush1.bf16.msra.mxu0 0
      %535 = vmatprep.subr.bf16.mxu0 0
      %536 = vmatpush1.bf16.msra.mxu0 0
      %537 = vmatprep.subr.bf16.mxu0 0
      %538 = vmatpush1.bf16.msra.mxu0 %v521
      %539 = vmatprep.subr.bf16.mxu0 0
      %540 = vmatpush2.bf16.msra.mxu0 0
      %541 = vmatprep.subr.bf16.mxu0 0
      %542 = vmatpush2.bf16.msra.mxu0 0
      %543 = vmatprep.subr.bf16.mxu0 0
      %544 = vmatpush2.bf16.msra.mxu0 0
      %545 = vmatprep.subr.bf16.mxu0 0
      %546 = vmatpush2.bf16.msra.mxu0 0
      %547 = vmatprep.subr.bf16.mxu0 0
      %548 = vmatpush2.bf16.msra.mxu0 0
      %549 = vmatprep.subr.bf16.mxu0 0
      %550 = vmatpush2.bf16.msra.mxu0 0
      %551 = vmatprep.subr.bf16.mxu0 0
      %552 = vmatpush2.bf16.msra.mxu0 0
      %553 = vmatprep.subr.bf16.mxu0 0
      %554 = vmatpush2.bf16.msra.mxu0 0
      %555 = vmatprep.mubr.bf16.mxu0 0
      %556 = vmatmul.mubr.bf16.gmra.mxu0 %v517
      %v557 = vpop.f32.mrf.mxu0
      %v558 = vadd.f32 0.0, %v557
      %v559 = vpop.f32.mrf.mxu0
      %v560 = vpop.f32.mrf.mxu0
      %v561 = vpop.f32.mrf.mxu0
      %562 = vdwg.mxu0
      %v564 = vsel %vm265, %v513, 0
      %v567 = vsel %vm519, %v262, 0
      %569 = vmatprep.subr.bf16.mxu0 0
      %570 = vmatpush1.bf16.msra.mxu0 0
      %571 = vmatprep.subr.bf16.mxu0 0
      %572 = vmatpush1.bf16.msra.mxu0 0
      %573 = vmatprep.subr.bf16.mxu0 0
      %574 = vmatpush1.bf16.msra.mxu0 0
      %575 = vmatprep.subr.bf16.mxu0 0
      %576 = vmatpush1.bf16.msra.mxu0 0
      %577 = vmatprep.subr.bf16.mxu0 0
      %578 = vmatpush1.bf16.msra.mxu0 0
      %579 = vmatprep.subr.bf16.mxu0 0
      %580 = vmatpush1.bf16.msra.mxu0 0
      %581 = vmatprep.subr.bf16.mxu0 0
      %582 = vmatpush1.bf16.msra.mxu0 0
      %583 = vmatprep.subr.bf16.mxu0 0
      %584 = vmatpush1.bf16.msra.mxu0 %v567
      %585 = vmatprep.subr.bf16.mxu0 0
      %586 = vmatpush2.bf16.msra.mxu0 0
      %587 = vmatprep.subr.bf16.mxu0 0
      %588 = vmatpush2.bf16.msra.mxu0 0
      %589 = vmatprep.subr.bf16.mxu0 0
      %590 = vmatpush2.bf16.msra.mxu0 0
      %591 = vmatprep.subr.bf16.mxu0 0
      %592 = vmatpush2.bf16.msra.mxu0 0
      %593 = vmatprep.subr.bf16.mxu0 0
      %594 = vmatpush2.bf16.msra.mxu0 0
      %595 = vmatprep.subr.bf16.mxu0 0
      %596 = vmatpush2.bf16.msra.mxu0 0
      %597 = vmatprep.subr.bf16.mxu0 0
      %598 = vmatpush2.bf16.msra.mxu0 0
      %599 = vmatprep.subr.bf16.mxu0 0
      %600 = vmatpush2.bf16.msra.mxu0 0
      %601 = vmatprep.mubr.bf16.mxu0 0
      %602 = vmatmul.mubr.bf16.gmra.mxu0 %v564
      %v603 = vpop.f32.mrf.mxu0
      %v604 = vadd.f32 0.0, %v603
      %v605 = vpop.f32.mrf.mxu0
      %v606 = vpop.f32.mrf.mxu0
      %v607 = vpop.f32.mrf.mxu0
      %608 = vdwg.mxu0
      %v610 = vsel %vm265, %v514, 0
      %v613 = vsel %vm519, %v263, 0
      %615 = vmatprep.subr.bf16.mxu0 0
      %616 = vmatpush1.bf16.msra.mxu0 0
      %617 = vmatprep.subr.bf16.mxu0 0
      %618 = vmatpush1.bf16.msra.mxu0 0
      %619 = vmatprep.subr.bf16.mxu0 0
      %620 = vmatpush1.bf16.msra.mxu0 0
      %621 = vmatprep.subr.bf16.mxu0 0
      %622 = vmatpush1.bf16.msra.mxu0 0
      %623 = vmatprep.subr.bf16.mxu0 0
      %624 = vmatpush1.bf16.msra.mxu0 0
      %625 = vmatprep.subr.bf16.mxu0 0
      %626 = vmatpush1.bf16.msra.mxu0 0
      %627 = vmatprep.subr.bf16.mxu0 0
      %628 = vmatpush1.bf16.msra.mxu0 0
      %629 = vmatprep.subr.bf16.mxu0 0
      %630 = vmatpush1.bf16.msra.mxu0 %v613
      %631 = vmatprep.subr.bf16.mxu0 0
      %632 = vmatpush2.bf16.msra.mxu0 0
      %633 = vmatprep.subr.bf16.mxu0 0
      %634 = vmatpush2.bf16.msra.mxu0 0
      %635 = vmatprep.subr.bf16.mxu0 0
      %636 = vmatpush2.bf16.msra.mxu0 0
      %637 = vmatprep.subr.bf16.mxu0 0
      %638 = vmatpush2.bf16.msra.mxu0 0
      %639 = vmatprep.subr.bf16.mxu0 0
      %640 = vmatpush2.bf16.msra.mxu0 0
      %641 = vmatprep.subr.bf16.mxu0 0
      %642 = vmatpush2.bf16.msra.mxu0 0
      %643 = vmatprep.subr.bf16.mxu0 0
      %644 = vmatpush2.bf16.msra.mxu0 0
      %645 = vmatprep.subr.bf16.mxu0 0
      %646 = vmatpush2.bf16.msra.mxu0 0
      %647 = vmatprep.mubr.bf16.mxu0 0
      %648 = vmatmul.mubr.bf16.gmra.mxu0 %v610
      %v649 = vpop.f32.mrf.mxu0
      %v650 = vadd.f32 0.0, %v649
      %v651 = vpop.f32.mrf.mxu0
      %v652 = vpop.f32.mrf.mxu0
      %v653 = vpop.f32.mrf.mxu0
      %654 = vdwg.mxu0
      %v656 = vsel %vm265, %v515, 0
      %v659 = vsel %vm519, %v264, 0
      %661 = vmatprep.subr.bf16.mxu0 0
      %662 = vmatpush1.bf16.msra.mxu0 0
      %663 = vmatprep.subr.bf16.mxu0 0
      %664 = vmatpush1.bf16.msra.mxu0 0
      %665 = vmatprep.subr.bf16.mxu0 0
      %666 = vmatpush1.bf16.msra.mxu0 0
      %667 = vmatprep.subr.bf16.mxu0 0
      %668 = vmatpush1.bf16.msra.mxu0 0
      %669 = vmatprep.subr.bf16.mxu0 0
      %670 = vmatpush1.bf16.msra.mxu0 0
      %671 = vmatprep.subr.bf16.mxu0 0
      %672 = vmatpush1.bf16.msra.mxu0 0
      %673 = vmatprep.subr.bf16.mxu0 0
      %674 = vmatpush1.bf16.msra.mxu0 0
      %675 = vmatprep.subr.bf16.mxu0 0
      %676 = vmatpush1.bf16.msra.mxu0 %v659
      %677 = vmatprep.subr.bf16.mxu0 0
      %678 = vmatpush2.bf16.msra.mxu0 0
      %679 = vmatprep.subr.bf16.mxu0 0
      %680 = vmatpush2.bf16.msra.mxu0 0
      %681 = vmatprep.subr.bf16.mxu0 0
      %682 = vmatpush2.bf16.msra.mxu0 0
      %683 = vmatprep.subr.bf16.mxu0 0
      %684 = vmatpush2.bf16.msra.mxu0 0
      %685 = vmatprep.subr.bf16.mxu0 0
      %686 = vmatpush2.bf16.msra.mxu0 0
      %687 = vmatprep.subr.bf16.mxu0 0
      %688 = vmatpush2.bf16.msra.mxu0 0
      %689 = vmatprep.subr.bf16.mxu0 0
      %690 = vmatpush2.bf16.msra.mxu0 0
      %691 = vmatprep.subr.bf16.mxu0 0
      %692 = vmatpush2.bf16.msra.mxu0 0
      %693 = vmatprep.mubr.bf16.mxu0 0
      %694 = vmatmul.mubr.bf16.gmra.mxu0 %v656
      %v695 = vpop.f32.mrf.mxu0
      %v696 = vadd.f32 0.0, %v695
      %v697 = vpop.f32.mrf.mxu0
      %v698 = vpop.f32.mrf.mxu0
      %v699 = vpop.f32.mrf.mxu0
      %700 = vdwg.mxu0
      %v701 = vrcp.pop %v502
      %v702 = vrcp.pop %v505
      %v703 = vrcp.pop %v508
      %v704 = vrcp.pop %v511
      %v705 = vmul.f32 %v558, %v701
      %v706 = vmul.f32 %v604, %v702
      %v707 = vmul.f32 %v650, %v703
      %v708 = vmul.f32 %v696, %v704
      %v709 = vpack.c.bf16 %v705, %v705
      %v710 = vpack.c.bf16 %v706, %v706
      %v711 = vpack.c.bf16 %v707, %v707
      %v712 = vpack.c.bf16 %v708, %v708
      %vm713 = vcmask 60416
      %714 = vst.msk [vmem:[%s251] sm:$0xf] %vm713, %v709
      %715 = vst.msk [vmem:[%s251 + $0x4] sm:$0xf] %vm713, %v710
      %716 = vst.msk [vmem:[%s251 + $0x8] sm:$0xf] %vm713, %v711
      %717 = vst.msk [vmem:[%s251 + $0xc] sm:$0xf] %vm713, %v712
      %p718 = scmp.lt.s32.totalorder %s15, 1
      %s719 = scalar_select %p718, %s15, 1
      %s720 = smul.addr %s719, 4
      %s721 = smul.addr %s720, 4
      %s722 = scalar_lea.vmem %s4, %s721
      // Predicated region
      $region37: #{transformer_forward.41} parent=35 // pred_check
        %p723 = pneg %p137
      $region38: #{transformer_forward.41} parent=35 // pred_check_branch
        %725 = sbr.rel (%p723) target = $region40
      $region39: #{transformer_forward.41} parent=35 // pred_region
        _
      $region40: #{transformer_forward.41} parent=35 // pred_fallthru
        _
    $region36: #{transformer_forward.41} parent=5 // pred_fallthru
      _
    %p726 = scmp.le.s32.totalorder 2, %s10
    // Predicated region
    $region41: #{transformer_forward.41} parent=5 // pred_check
      %p727 = pneg %p726
    $region42: #{transformer_forward.41} parent=5 // pred_check_branch
      %729 = sbr.rel (%p727) target = $region44
    $region43: #{transformer_forward.41} parent=5 // pred_region
      %s730 = ssub.s32 %s10, 2
      // Predicated region
      $region45: #{transformer_forward.41} parent=43 // pred_check
        %p731 = pneg %p143
      $region46: #{transformer_forward.41} parent=43 // pred_check_branch
        %733 = sbr.rel (%p731) target = $region48
      $region47: #{transformer_forward.41} parent=43 // pred_region
        %p734 = scmp.lt.s32.totalorder %s16, 1
        %s735 = scalar_select %p734, %s16, 1
        %s736 = smul.addr %s735, 4
        %s737 = smul.addr %s736, 4
        %s738 = scalar_lea.vmem %s4, %s737
      $region48: #{transformer_forward.41} parent=43 // pred_fallthru
        _
    $region44: #{transformer_forward.41} parent=5 // pred_fallthru
      _
  $region6: #{transformer_forward.41} parent=0 // loop_footer
    %s14 = sadd.s32 1, %s10
  $region7: #{transformer_forward.41} parent=0 // loop_footer_branch
    %9 = sbr.rel target = $region3
  $region8: #{transformer_forward.41} parent=0 // loop_exit
    _

// kernel: transformer_forward.45
$region0: #{transformer_forward.45}
  #allocation0 [shape = 'u32[]', space=smem, size = 0x4, offset = 0x4, fixed_abs, tag = 'smem constant byte address 0x4 - core index']
  #allocation1 [shape = 'u32[144,128]{1,0:T(1,128)}', space=vmem, size = 0x12000, scoped, tag = 'internal scratch']
  %s0 = inlined_call_operand.vmem [shape: bf16[2,4,8,8], index: 0, kind: input, shape index: {}]
  %s1 = inlined_call_operand.vmem [shape: bf16[2,4,10,8], index: 1, kind: input, shape index: {}]
  %s2 = inlined_call_operand.vmem [shape: bf16[2,4,10,8], index: 2, kind: input, shape index: {}]
  %s3 = inlined_call_operand.vmem [shape: f32[2,1,10], index: 3, kind: input, shape index: {}]
  %s4 = inlined_call_operand.vmem [shape: bf16[2,4,8,8], index: 4, kind: output, shape index: {}]
  %s5 = sld [smem:[#allocation0]]
  $region49: #{transformer_forward.45} parent=0
    _
  %s7 = ssub.s32 1, %s5
  %s8 = scalar_select 0, %s7, %s5
  loop: start=0, step=1, limit=4
  $region2: #{transformer_forward.45} parent=0 // loop_pre_header
    _
  $region3: #{transformer_forward.45} parent=0 // loop_header
    %s10 = sphi 0, %s14
    %p11 = scmp.ge.s32.totalorder %s10, 4
    %s20 = sphi 0, %s22
    %s23 = sphi 0, %s20
    %s24 = sphi 0, %s23
    %s40 = sphi 0, %s24
    %s46 = sphi 0, %s48
    %s49 = sphi 0, %s46
    %s50 = sphi 0, %s49
    %s66 = sphi 0, %s50
    %s72 = sphi 0, %s74
    %s75 = sphi 0, %s72
    %s76 = sphi 0, %s75
    %s92 = sphi 0, %s76
    %s98 = sphi 0, %s100
    %s101 = sphi 0, %s98
    %s102 = sphi 0, %s101
    %s118 = sphi 0, %s102
    %s124 = sphi 0, %s126
    %s127 = sphi 0, %s124
    %s128 = sphi 0, %s127
    %s144 = sphi 0, %s128
  $region4: #{transformer_forward.45} parent=0 // loop_header_branch
    %13 = sbr.rel (%p11) target = $region8
  $region5: #{transformer_forward.45} parent=0 // loop_body
    %s15 = ssub.s32 %s10, 1
    %s16 = ssub.s32 %s10, 2
    %s17 = sadd.s32 %s10, 1
    %s18 = ssub.s32 %s10, %s17
    %p19 = scmp.eq.s32.totalorder %s18, 0
    %s21 = sadd.s32 %s20, 1
    %s22 = scalar_select %p19, %s20, %s21
    %p25 = pneg %p19
    %p26 = scmp.eq.s32.totalorder %s10, 1
    %p27 = por %p25, %p26
    %p28 = scmp.ne.s32.totalorder %s20, %s23
    %p29 = scmp.eq.s32.totalorder %s10, 0
    %p30 = por %p28, %p29
    %p31 = scmp.ne.s32.totalorder %s20, %s23
    %p32 = scmp.eq.s32.totalorder %s15, 1
    %p33 = por %p31, %p32
    %p34 = scmp.ne.s32.totalorder %s23, %s24
    %p35 = scmp.eq.s32.totalorder %s15, 0
    %p36 = por %p34, %p35
    %p37 = scmp.ne.s32.totalorder %s23, %s24
    %p38 = scmp.eq.s32.totalorder %s16, 1
    %p39 = por %p37, %p38
    %p41 = scmp.ne.s32.totalorder %s24, %s40
    %p42 = scmp.eq.s32.totalorder %s16, 0
    %p43 = por %p41, %p42
    %s44 = ssub.s32 %s10, %s17
    %p45 = scmp.eq.s32.totalorder %s44, 0
    %s47 = sadd.s32 %s46, 1
    %s48 = scalar_select %p45, %s46, %s47
    %p51 = pneg %p45
    %p52 = scmp.eq.s32.totalorder %s10, 1
    %p53 = por %p51, %p52
    %p54 = scmp.ne.s32.totalorder %s46, %s49
    %p55 = scmp.eq.s32.totalorder %s10, 0
    %p56 = por %p54, %p55
    %p57 = scmp.ne.s32.totalorder %s46, %s49
    %p58 = scmp.eq.s32.totalorder %s15, 1
    %p59 = por %p57, %p58
    %p60 = scmp.ne.s32.totalorder %s49, %s50
    %p61 = scmp.eq.s32.totalorder %s15, 0
    %p62 = por %p60, %p61
    %p63 = scmp.ne.s32.totalorder %s49, %s50
    %p64 = scmp.eq.s32.totalorder %s16, 1
    %p65 = por %p63, %p64
    %p67 = scmp.ne.s32.totalorder %s50, %s66
    %p68 = scmp.eq.s32.totalorder %s16, 0
    %p69 = por %p67, %p68
    %s70 = ssub.s32 %s10, %s17
    %p71 = scmp.eq.s32.totalorder %s70, 0
    %s73 = sadd.s32 %s72, 1
    %s74 = scalar_select %p71, %s72, %s73
    %p77 = pneg %p71
    %p78 = scmp.eq.s32.totalorder %s10, 1
    %p79 = por %p77, %p78
    %p80 = scmp.ne.s32.totalorder %s72, %s75
    %p81 = scmp.eq.s32.totalorder %s10, 0
    %p82 = por %p80, %p81
    %p83 = scmp.ne.s32.totalorder %s72, %s75
    %p84 = scmp.eq.s32.totalorder %s15, 1
    %p85 = por %p83, %p84
    %p86 = scmp.ne.s32.totalorder %s75, %s76
    %p87 = scmp.eq.s32.totalorder %s15, 0
    %p88 = por %p86, %p87
    %p89 = scmp.ne.s32.totalorder %s75, %s76
    %p90 = scmp.eq.s32.totalorder %s16, 1
    %p91 = por %p89, %p90
    %p93 = scmp.ne.s32.totalorder %s76, %s92
    %p94 = scmp.eq.s32.totalorder %s16, 0
    %p95 = por %p93, %p94
    %s96 = ssub.s32 %s10, %s17
    %p97 = scmp.eq.s32.totalorder %s96, 0
    %s99 = sadd.s32 %s98, 1
    %s100 = scalar_select %p97, %s98, %s99
    %p103 = pneg %p97
    %p104 = scmp.eq.s32.totalorder %s10, 1
    %p105 = por %p103, %p104
    %p106 = scmp.ne.s32.totalorder %s98, %s101
    %p107 = scmp.eq.s32.totalorder %s10, 0
    %p108 = por %p106, %p107
    %p109 = scmp.ne.s32.totalorder %s98, %s101
    %p110 = scmp.eq.s32.totalorder %s15, 1
    %p111 = por %p109, %p110
    %p112 = scmp.ne.s32.totalorder %s101, %s102
    %p113 = scmp.eq.s32.totalorder %s15, 0
    %p114 = por %p112, %p113
    %p115 = scmp.ne.s32.totalorder %s101, %s102
    %p116 = scmp.eq.s32.totalorder %s16, 1
    %p117 = por %p115, %p116
    %p119 = scmp.ne.s32.totalorder %s102, %s118
    %p120 = scmp.eq.s32.totalorder %s16, 0
    %p121 = por %p119, %p120
    %s122 = ssub.s32 %s10, %s17
    %p123 = scmp.eq.s32.totalorder %s122, 0
    %s125 = sadd.s32 %s124, 1
    %s126 = scalar_select %p123, %s124, %s125
    %p129 = pneg %p123
    %p130 = scmp.eq.s32.totalorder %s10, 1
    %p131 = por %p129, %p130
    %p132 = scmp.ne.s32.totalorder %s124, %s127
    %p133 = scmp.eq.s32.totalorder %s10, 0
    %p134 = por %p132, %p133
    %p135 = scmp.ne.s32.totalorder %s124, %s127
    %p136 = scmp.eq.s32.totalorder %s15, 1
    %p137 = por %p135, %p136
    %p138 = scmp.ne.s32.totalorder %s127, %s128
    %p139 = scmp.eq.s32.totalorder %s15, 0
    %p140 = por %p138, %p139
    %p141 = scmp.ne.s32.totalorder %s127, %s128
    %p142 = scmp.eq.s32.totalorder %s16, 1
    %p143 = por %p141, %p142
    %p145 = scmp.ne.s32.totalorder %s128, %s144
    %p146 = scmp.eq.s32.totalorder %s16, 0
    %p147 = por %p145, %p146
    %p148 = scmp.le.s32.totalorder 1, %s10
    %p149 = scmp.lt.s32.totalorder %s10, 3
    %p150 = pnand %p148, %p149
    %p151 = pneg %p150
    // Predicated region
    $region9: #{transformer_forward.45} parent=5 // pred_check
      _
    $region10: #{transformer_forward.45} parent=5 // pred_check_branch
      %153 = sbr.rel (%p150) target = $region12
    $region11: #{transformer_forward.45} parent=5 // pred_region
      %s154 = ssub.s32 %s10, 1
    $region12: #{transformer_forward.45} parent=5 // pred_fallthru
      _
    %p155 = scmp.lt.s32.totalorder %s10, 2
    // Predicated region
    $region13: #{transformer_forward.45} parent=5 // pred_check
      %p156 = pneg %p155
    $region14: #{transformer_forward.45} parent=5 // pred_check_branch
      %158 = sbr.rel (%p156) target = $region16
    $region15: #{transformer_forward.45} parent=5 // pred_region
      // Predicated region
      $region17: #{transformer_forward.45} parent=15 // pred_check
        %p159 = pneg %p30
      $region18: #{transformer_forward.45} parent=15 // pred_check_branch
        %161 = sbr.rel (%p159) target = $region20
      $region19: #{transformer_forward.45} parent=15 // pred_region
        %p162 = scmp.lt.s32.totalorder %s10, 1
        %s163 = scalar_select %p162, %s10, 1
        %s164 = smul.addr %s163, 4
        %s165 = smul.addr %s164, 4
        %s166 = scalar_lea.vmem %s0, %s165
      $region20: #{transformer_forward.45} parent=15 // pred_fallthru
        _
      // Predicated region
      $region21: #{transformer_forward.45} parent=15 // pred_check
        %p167 = pneg %p56
      $region22: #{transformer_forward.45} parent=15 // pred_check_branch
        %169 = sbr.rel (%p167) target = $region24
      $region23: #{transformer_forward.45} parent=15 // pred_region
        %p170 = scmp.lt.s32.totalorder %s10, 1
        %s171 = scalar_select %p170, %s10, 1
        %s172 = smul.addr %s171, 8
        %s173 = smul.addr %s172, 4
        %s174 = scalar_lea.vmem %s1, %s173
      $region24: #{transformer_forward.45} parent=15 // pred_fallthru
        _
      // Predicated region
      $region25: #{transformer_forward.45} parent=15 // pred_check
        %p175 = pneg %p82
      $region26: #{transformer_forward.45} parent=15 // pred_check_branch
        %177 = sbr.rel (%p175) target = $region28
      $region27: #{transformer_forward.45} parent=15 // pred_region
        %p178 = scmp.lt.s32.totalorder %s10, 1
        %s179 = scalar_select %p178, %s10, 1
        %s180 = smul.addr %s179, 8
        %s181 = smul.addr %s180, 4
        %s182 = scalar_lea.vmem %s2, %s181
      $region28: #{transformer_forward.45} parent=15 // pred_fallthru
        _
      // Predicated region
      $region29: #{transformer_forward.45} parent=15 // pred_check
        %p183 = pneg %p108
      $region30: #{transformer_forward.45} parent=15 // pred_check_branch
        %185 = sbr.rel (%p183) target = $region32
      $region31: #{transformer_forward.45} parent=15 // pred_region
        %p186 = scmp.lt.s32.totalorder %s10, 1
        %s187 = scalar_select %p186, %s10, 1
        %s188 = scalar_lea.vmem %s3, %s187
      $region32: #{transformer_forward.45} parent=15 // pred_fallthru
        _
    $region16: #{transformer_forward.45} parent=5 // pred_fallthru
      _
    %p189 = scmp.le.s32.totalorder 1, %s10
    %p190 = scmp.lt.s32.totalorder %s10, 3
    %p191 = pnand %p189, %p190
    %p192 = pneg %p191
    // Predicated region
    $region33: #{transformer_forward.45} parent=5 // pred_check
      _
    $region34: #{transformer_forward.45} parent=5 // pred_check_branch
      %194 = sbr.rel (%p191) target = $region36
    $region35: #{transformer_forward.45} parent=5 // pred_region
      %s195 = ssub.s32 %s10, 1
      %p196 = scmp.lt.s32.totalorder %s15, 1
      %s197 = scalar_select %p196, %s15, 1
      %s198 = smul.addr %s197, 4
      %s199 = smul.addr %s198, 4
      %s200 = scalar_lea.vmem %s0, %s199
      %p201 = pneg %p36
      %p202 = pneg %p33
      %p203 = scmp.lt.s32.totalorder %s15, 1
      %s204 = scalar_select %p203, %s15, 1
      %s205 = smul.addr %s204, 8
      %s206 = smul.addr %s205, 4
      %s207 = scalar_lea.vmem %s1, %s206
      %p208 = pneg %p62
      %p209 = pneg %p59
      %p210 = scmp.lt.s32.totalorder %s15, 1
      %s211 = scalar_select %p210, %s15, 1
      %s212 = smul.addr %s211, 8
      %s213 = smul.addr %s212, 4
      %s214 = scalar_lea.vmem %s2, %s213
      %p215 = pneg %p88
      %p216 = pneg %p85
      %p217 = scmp.lt.s32.totalorder %s15, 1
      %s218 = scalar_select %p217, %s15, 1
      %s219 = scalar_lea.vmem %s3, %s218
      %p220 = pneg %p114
      %p221 = pneg %p111
      %p222 = pneg %p140
      %p223 = pneg %p137
      %p224 = scmp.lt.s32.totalorder %s15, 1
      %s225 = scalar_select %p224, %s15, 1
      %s226 = smul.addr %s225, 4
      %s227 = smul.addr %s226, 4
      %s228 = scalar_lea.vmem %s4, %s227
      %p229 = scmp.lt.s32.totalorder %s15, 1
      %s230 = scalar_select %p229, %s15, 1
      %s231 = smul.addr %s230, 4
      %s232 = smul.addr %s231, 4
      %s233 = scalar_lea.vmem %s0, %s232
      %p234 = scmp.lt.s32.totalorder %s15, 1
      %s235 = scalar_select %p234, %s15, 1
      %s236 = smul.addr %s235, 8
      %s237 = smul.addr %s236, 4
      %s238 = scalar_lea.vmem %s1, %s237
      %p239 = scmp.lt.s32.totalorder %s15, 1
      %s240 = scalar_select %p239, %s15, 1
      %s241 = smul.addr %s240, 8
      %s242 = smul.addr %s241, 4
      %s243 = scalar_lea.vmem %s2, %s242
      %p244 = scmp.lt.s32.totalorder %s15, 1
      %s245 = scalar_select %p244, %s15, 1
      %s246 = scalar_lea.vmem %s3, %s245
      %p247 = scmp.lt.s32.totalorder %s15, 1
      %s248 = scalar_select %p247, %s15, 1
      %s249 = smul.addr %s248, 4
      %s250 = smul.addr %s249, 4
      %s251 = scalar_lea.vmem %s4, %s250
      %v253 = vld [vmem:[%s233] sm:$0xf]
      %v254 = vld [vmem:[%s233 + $0x4] sm:$0xf]
      %v255 = vld [vmem:[%s233 + $0x8] sm:$0xf]
      %v256 = vld [vmem:[%s233 + $0xc] sm:$0xf]
      %v257 = vld [vmem:[%s238] sm:$0xf]
      %v258 = vld [vmem:[%s238 + $0x4] sm:$0x1]
      %v259 = vld [vmem:[%s238 + $0x8] sm:$0xf]
      %v260 = vld [vmem:[%s238 + $0xc] sm:$0x1]
      %v261 = vld [vmem:[%s238 + $0x10] sm:$0xf]
      %v262 = vld [vmem:[%s238 + $0x14] sm:$0x1]
      %v263 = vld [vmem:[%s238 + $0x18] sm:$0xf]
      %v264 = vld [vmem:[%s238 + $0x1c] sm:$0x1]
      %v265 = vld [vmem:[%s243] sm:$0xf]
      %v266 = vld [vmem:[%s243 + $0x4] sm:$0x1]
      %v267 = vld [vmem:[%s243 + $0x8] sm:$0xf]
      %v268 = vld [vmem:[%s243 + $0xc] sm:$0x1]
      %v269 = vld [vmem:[%s243 + $0x10] sm:$0xf]
      %v270 = vld [vmem:[%s243 + $0x14] sm:$0x1]
      %v271 = vld [vmem:[%s243 + $0x18] sm:$0xf]
      %v272 = vld [vmem:[%s243 + $0x1c] sm:$0x1]
      %v275 = vunpack.c.l.b16 %v257
      %v276 = vunpack.c.l.b16 %v258
      %v277 = vpack.c.b16 %v276, %v275
      %vm278 = vcmask 64512
      %v280 = vsel %vm278, %v253, 0
      %v283 = vsel %vm278, %v277, 0
      %285 = vmatprep.subr.bf16.mxu0 0
      %286 = vmatpush1.bf16.xpose.msra.mxu0 0
      %287 = vmatprep.subr.bf16.mxu0 0
      %288 = vmatpush1.bf16.xpose.msra.mxu0 0
      %289 = vmatprep.subr.bf16.mxu0 0
      %290 = vmatpush1.bf16.xpose.msra.mxu0 0
      %291 = vmatprep.subr.bf16.mxu0 0
      %292 = vmatpush1.bf16.xpose.msra.mxu0 0
      %293 = vmatprep.subr.bf16.mxu0 0
      %294 = vmatpush1.bf16.xpose.msra.mxu0 0
      %295 = vmatprep.subr.bf16.mxu0 0
      %296 = vmatpush1.bf16.xpose.msra.mxu0 0
      %297 = vmatprep.subr.bf16.mxu0 0
      %298 = vmatpush1.bf16.xpose.msra.mxu0 0
      %299 = vmatprep.subr.bf16.mxu0 0
      %300 = vmatpush1.bf16.xpose.msra.mxu0 %v283
      %301 = vmatprep.subr.bf16.mxu0 0
      %302 = vmatpush2.bf16.xpose.msra.mxu0 0
      %303 = vmatprep.subr.bf16.mxu0 0
      %304 = vmatpush2.bf16.xpose.msra.mxu0 0
      %305 = vmatprep.subr.bf16.mxu0 0
      %306 = vmatpush2.bf16.xpose.msra.mxu0 0
      %307 = vmatprep.subr.bf16.mxu0 0
      %308 = vmatpush2.bf16.xpose.msra.mxu0 0
      %309 = vmatprep.subr.bf16.mxu0 0
      %310 = vmatpush2.bf16.xpose.msra.mxu0 0
      %311 = vmatprep.subr.bf16.mxu0 0
      %312 = vmatpush2.bf16.xpose.msra.mxu0 0
      %313 = vmatprep.subr.bf16.mxu0 0
      %314 = vmatpush2.bf16.xpose.msra.mxu0 0
      %315 = vmatprep.subr.bf16.mxu0 0
      %316 = vmatpush2.bf16.xpose.msra.mxu0 0
      %317 = vmatprep.mubr.bf16.mxu0 0
      %318 = vmatmul.mubr.bf16.gmra.mxu0 %v280
      %v319 = vpop.f32.mrf.mxu0
      %v320 = vadd.f32 0.0, %v319
      %v321 = vpop.f32.mrf.mxu0
      %v322 = vpop.f32.mrf.mxu0
      %v323 = vpop.f32.mrf.mxu0
      %324 = vdwg.mxu0
      %v327 = vunpack.c.l.b16 %v259
      %v328 = vunpack.c.l.b16 %v260
      %v329 = vpack.c.b16 %v328, %v327
      %v331 = vsel %vm278, %v254, 0
      %v334 = vsel %vm278, %v329, 0
      %336 = vmatprep.subr.bf16.mxu0 0
      %337 = vmatpush1.bf16.xpose.msra.mxu0 0
      %338 = vmatprep.subr.bf16.mxu0 0
      %339 = vmatpush1.bf16.xpose.msra.mxu0 0
      %340 = vmatprep.subr.bf16.mxu0 0
      %341 = vmatpush1.bf16.xpose.msra.mxu0 0
      %342 = vmatprep.subr.bf16.mxu0 0
      %343 = vmatpush1.bf16.xpose.msra.mxu0 0
      %344 = vmatprep.subr.bf16.mxu0 0
      %345 = vmatpush1.bf16.xpose.msra.mxu0 0
      %346 = vmatprep.subr.bf16.mxu0 0
      %347 = vmatpush1.bf16.xpose.msra.mxu0 0
      %348 = vmatprep.subr.bf16.mxu0 0
      %349 = vmatpush1.bf16.xpose.msra.mxu0 0
      %350 = vmatprep.subr.bf16.mxu0 0
      %351 = vmatpush1.bf16.xpose.msra.mxu0 %v334
      %352 = vmatprep.subr.bf16.mxu0 0
      %353 = vmatpush2.bf16.xpose.msra.mxu0 0
      %354 = vmatprep.subr.bf16.mxu0 0
      %355 = vmatpush2.bf16.xpose.msra.mxu0 0
      %356 = vmatprep.subr.bf16.mxu0 0
      %357 = vmatpush2.bf16.xpose.msra.mxu0 0
      %358 = vmatprep.subr.bf16.mxu0 0
      %359 = vmatpush2.bf16.xpose.msra.mxu0 0
      %360 = vmatprep.subr.bf16.mxu0 0
      %361 = vmatpush2.bf16.xpose.msra.mxu0 0
      %362 = vmatprep.subr.bf16.mxu0 0
      %363 = vmatpush2.bf16.xpose.msra.mxu0 0
      %364 = vmatprep.subr.bf16.mxu0 0
      %365 = vmatpush2.bf16.xpose.msra.mxu0 0
      %366 = vmatprep.subr.bf16.mxu0 0
      %367 = vmatpush2.bf16.xpose.msra.mxu0 0
      %368 = vmatprep.mubr.bf16.mxu0 0
      %369 = vmatmul.mubr.bf16.gmra.mxu0 %v331
      %v370 = vpop.f32.mrf.mxu0
      %v371 = vadd.f32 0.0, %v370
      %v372 = vpop.f32.mrf.mxu0
      %v373 = vpop.f32.mrf.mxu0
      %v374 = vpop.f32.mrf.mxu0
      %375 = vdwg.mxu0
      %v378 = vunpack.c.l.b16 %v261
      %v379 = vunpack.c.l.b16 %v262
      %v380 = vpack.c.b16 %v379, %v378
      %v382 = vsel %vm278, %v255, 0
      %v385 = vsel %vm278, %v380, 0
      %387 = vmatprep.subr.bf16.mxu0 0
      %388 = vmatpush1.bf16.xpose.msra.mxu0 0
      %389 = vmatprep.subr.bf16.mxu0 0
      %390 = vmatpush1.bf16.xpose.msra.mxu0 0
      %391 = vmatprep.subr.bf16.mxu0 0
      %392 = vmatpush1.bf16.xpose.msra.mxu0 0
      %393 = vmatprep.subr.bf16.mxu0 0
      %394 = vmatpush1.bf16.xpose.msra.mxu0 0
      %395 = vmatprep.subr.bf16.mxu0 0
      %396 = vmatpush1.bf16.xpose.msra.mxu0 0
      %397 = vmatprep.subr.bf16.mxu0 0
      %398 = vmatpush1.bf16.xpose.msra.mxu0 0
      %399 = vmatprep.subr.bf16.mxu0 0
      %400 = vmatpush1.bf16.xpose.msra.mxu0 0
      %401 = vmatprep.subr.bf16.mxu0 0
      %402 = vmatpush1.bf16.xpose.msra.mxu0 %v385
      %403 = vmatprep.subr.bf16.mxu0 0
      %404 = vmatpush2.bf16.xpose.msra.mxu0 0
      %405 = vmatprep.subr.bf16.mxu0 0
      %406 = vmatpush2.bf16.xpose.msra.mxu0 0
      %407 = vmatprep.subr.bf16.mxu0 0
      %408 = vmatpush2.bf16.xpose.msra.mxu0 0
      %409 = vmatprep.subr.bf16.mxu0 0
      %410 = vmatpush2.bf16.xpose.msra.mxu0 0
      %411 = vmatprep.subr.bf16.mxu0 0
      %412 = vmatpush2.bf16.xpose.msra.mxu0 0
      %413 = vmatprep.subr.bf16.mxu0 0
      %414 = vmatpush2.bf16.xpose.msra.mxu0 0
      %415 = vmatprep.subr.bf16.mxu0 0
      %416 = vmatpush2.bf16.xpose.msra.mxu0 0
      %417 = vmatprep.subr.bf16.mxu0 0
      %418 = vmatpush2.bf16.xpose.msra.mxu0 0
      %419 = vmatprep.mubr.bf16.mxu0 0
      %420 = vmatmul.mubr.bf16.gmra.mxu0 %v382
      %v421 = vpop.f32.mrf.mxu0
      %v422 = vadd.f32 0.0, %v421
      %v423 = vpop.f32.mrf.mxu0
      %v424 = vpop.f32.mrf.mxu0
      %v425 = vpop.f32.mrf.mxu0
      %426 = vdwg.mxu0
      %v429 = vunpack.c.l.b16 %v263
      %v430 = vunpack.c.l.b16 %v264
      %v431 = vpack.c.b16 %v430, %v429
      %v433 = vsel %vm278, %v256, 0
      %v436 = vsel %vm278, %v431, 0
      %438 = vmatprep.subr.bf16.mxu0 0
      %439 = vmatpush1.bf16.xpose.msra.mxu0 0
      %440 = vmatprep.subr.bf16.mxu0 0
      %441 = vmatpush1.bf16.xpose.msra.mxu0 0
      %442 = vmatprep.subr.bf16.mxu0 0
      %443 = vmatpush1.bf16.xpose.msra.mxu0 0
      %444 = vmatprep.subr.bf16.mxu0 0
      %445 = vmatpush1.bf16.xpose.msra.mxu0 0
      %446 = vmatprep.subr.bf16.mxu0 0
      %447 = vmatpush1.bf16.xpose.msra.mxu0 0
      %448 = vmatprep.subr.bf16.mxu0 0
      %449 = vmatpush1.bf16.xpose.msra.mxu0 0
      %450 = vmatprep.subr.bf16.mxu0 0
      %451 = vmatpush1.bf16.xpose.msra.mxu0 0
      %452 = vmatprep.subr.bf16.mxu0 0
      %453 = vmatpush1.bf16.xpose.msra.mxu0 %v436
      %454 = vmatprep.subr.bf16.mxu0 0
      %455 = vmatpush2.bf16.xpose.msra.mxu0 0
      %456 = vmatprep.subr.bf16.mxu0 0
      %457 = vmatpush2.bf16.xpose.msra.mxu0 0
      %458 = vmatprep.subr.bf16.mxu0 0
      %459 = vmatpush2.bf16.xpose.msra.mxu0 0
      %460 = vmatprep.subr.bf16.mxu0 0
      %461 = vmatpush2.bf16.xpose.msra.mxu0 0
      %462 = vmatprep.subr.bf16.mxu0 0
      %463 = vmatpush2.bf16.xpose.msra.mxu0 0
      %464 = vmatprep.subr.bf16.mxu0 0
      %465 = vmatpush2.bf16.xpose.msra.mxu0 0
      %466 = vmatprep.subr.bf16.mxu0 0
      %467 = vmatpush2.bf16.xpose.msra.mxu0 0
      %468 = vmatprep.subr.bf16.mxu0 0
      %469 = vmatpush2.bf16.xpose.msra.mxu0 0
      %470 = vmatprep.mubr.bf16.mxu0 0
      %471 = vmatmul.mubr.bf16.gmra.mxu0 %v433
      %v472 = vpop.f32.mrf.mxu0
      %v473 = vadd.f32 0.0, %v472
      %v474 = vpop.f32.mrf.mxu0
      %v475 = vpop.f32.mrf.mxu0
      %v476 = vpop.f32.mrf.mxu0
      %477 = vdwg.mxu0
      %v478 = vmul.f32 %v320, 0.35355338
      %v479 = vmul.f32 %v371, 0.35355338
      %v480 = vmul.f32 %v422, 0.35355338
      %v481 = vmul.f32 %v473, 0.35355338
      %v482 = vld [vmem:[%s246] sm:$0x1]
      %v484 = vlaneseq
      %v485 = vshrl.u32 %v484, 7
      %v486 = vsub.s32 0, %v485
      %v487 = vrot.slane %v482, %v486
      %v489 = vadd.f32 %v478, %v487
      %v490 = vadd.f32 %v479, %v487
      %v491 = vadd.f32 %v480, %v487
      %v492 = vadd.f32 %v481, %v487
      %vm493 = vcmask 80896
      %v494 = vsel %vm493, %v489, -inf
      %495 = vmax.xlane.f32.xlu0 %v494
      %v496 = vpop.xlane.xlu0 %495
      %v497 = vsel %vm493, %v490, -inf
      %498 = vmax.xlane.f32.xlu0 %v497
      %v499 = vpop.xlane.xlu0 %498
      %v500 = vsel %vm493, %v491, -inf
      %501 = vmax.xlane.f32.xlu0 %v500
      %v502 = vpop.xlane.xlu0 %501
      %v503 = vsel %vm493, %v492, -inf
      %504 = vmax.xlane.f32.xlu0 %v503
      %v505 = vpop.xlane.xlu0 %504
      %v506 = vsub.f32 %v489, %v496
      %v507 = vsub.f32 %v490, %v499
      %v508 = vsub.f32 %v491, %v502
      %v509 = vsub.f32 %v492, %v505
      %v510 = vmul.f32 %v506, 1.442695
      %v511 = vpow.pop %v510
      %v512 = vmul.f32 %v507, 1.442695
      %v513 = vpow.pop %v512
      %v514 = vmul.f32 %v508, 1.442695
      %v515 = vpow.pop %v514
      %v516 = vmul.f32 %v509, 1.442695
      %v517 = vpow.pop %v516
      %v518 = vsel %vm493, %v511, 0.0
      %519 = vadd.xlane.f32.xlu0 %v518
      %v520 = vpop.xlane.xlu0 %519
      %v521 = vsel %vm493, %v513, 0.0
      %522 = vadd.xlane.f32.xlu0 %v521
      %v523 = vpop.xlane.xlu0 %522
      %v524 = vsel %vm493, %v515, 0.0
      %525 = vadd.xlane.f32.xlu0 %v524
      %v526 = vpop.xlane.xlu0 %525
      %v527 = vsel %vm493, %v517, 0.0
      %528 = vadd.xlane.f32.xlu0 %v527
      %v529 = vpop.xlane.xlu0 %528
      %v530 = vpack.c.bf16 %v511, %v511
      %v531 = vpack.c.bf16 %v513, %v513
      %v532 = vpack.c.bf16 %v515, %v515
      %v533 = vpack.c.bf16 %v517, %v517
      %v536 = vunpack.c.l.b16 %v265
      %v537 = vunpack.c.l.b16 %v266
      %v538 = vpack.c.b16 %v537, %v536
      %v540 = vsel %vm493, %v530, 0
      %vm542 = vcmask 1044480
      %v544 = vsel %vm542, %v538, 0
      %546 = vmatprep.subr.bf16.mxu0 0
      %547 = vmatpush1.bf16.msra.mxu0 0
      %548 = vmatprep.subr.bf16.mxu0 0
      %549 = vmatpush1.bf16.msra.mxu0 0
      %550 = vmatprep.subr.bf16.mxu0 0
      %551 = vmatpush1.bf16.msra.mxu0 0
      %552 = vmatprep.subr.bf16.mxu0 0
      %553 = vmatpush1.bf16.msra.mxu0 0
      %554 = vmatprep.subr.bf16.mxu0 0
      %555 = vmatpush1.bf16.msra.mxu0 0
      %556 = vmatprep.subr.bf16.mxu0 0
      %557 = vmatpush1.bf16.msra.mxu0 0
      %558 = vmatprep.subr.bf16.mxu0 0
      %559 = vmatpush1.bf16.msra.mxu0 0
      %560 = vmatprep.subr.bf16.mxu0 0
      %561 = vmatpush1.bf16.msra.mxu0 %v544
      %562 = vmatprep.subr.bf16.mxu0 0
      %563 = vmatpush2.bf16.msra.mxu0 0
      %564 = vmatprep.subr.bf16.mxu0 0
      %565 = vmatpush2.bf16.msra.mxu0 0
      %566 = vmatprep.subr.bf16.mxu0 0
      %567 = vmatpush2.bf16.msra.mxu0 0
      %568 = vmatprep.subr.bf16.mxu0 0
      %569 = vmatpush2.bf16.msra.mxu0 0
      %570 = vmatprep.subr.bf16.mxu0 0
      %571 = vmatpush2.bf16.msra.mxu0 0
      %572 = vmatprep.subr.bf16.mxu0 0
      %573 = vmatpush2.bf16.msra.mxu0 0
      %574 = vmatprep.subr.bf16.mxu0 0
      %575 = vmatpush2.bf16.msra.mxu0 0
      %576 = vmatprep.subr.bf16.mxu0 0
      %577 = vmatpush2.bf16.msra.mxu0 0
      %578 = vmatprep.mubr.bf16.mxu0 0
      %579 = vmatmul.mubr.bf16.gmra.mxu0 %v540
      %v580 = vpop.f32.mrf.mxu0
      %v581 = vadd.f32 0.0, %v580
      %v582 = vpop.f32.mrf.mxu0
      %v583 = vpop.f32.mrf.mxu0
      %v584 = vpop.f32.mrf.mxu0
      %585 = vdwg.mxu0
      %v588 = vunpack.c.l.b16 %v267
      %v589 = vunpack.c.l.b16 %v268
      %v590 = vpack.c.b16 %v589, %v588
      %v592 = vsel %vm493, %v531, 0
      %v595 = vsel %vm542, %v590, 0
      %597 = vmatprep.subr.bf16.mxu0 0
      %598 = vmatpush1.bf16.msra.mxu0 0
      %599 = vmatprep.subr.bf16.mxu0 0
      %600 = vmatpush1.bf16.msra.mxu0 0
      %601 = vmatprep.subr.bf16.mxu0 0
      %602 = vmatpush1.bf16.msra.mxu0 0
      %603 = vmatprep.subr.bf16.mxu0 0
      %604 = vmatpush1.bf16.msra.mxu0 0
      %605 = vmatprep.subr.bf16.mxu0 0
      %606 = vmatpush1.bf16.msra.mxu0 0
      %607 = vmatprep.subr.bf16.mxu0 0
      %608 = vmatpush1.bf16.msra.mxu0 0
      %609 = vmatprep.subr.bf16.mxu0 0
      %610 = vmatpush1.bf16.msra.mxu0 0
      %611 = vmatprep.subr.bf16.mxu0 0
      %612 = vmatpush1.bf16.msra.mxu0 %v595
      %613 = vmatprep.subr.bf16.mxu0 0
      %614 = vmatpush2.bf16.msra.mxu0 0
      %615 = vmatprep.subr.bf16.mxu0 0
      %616 = vmatpush2.bf16.msra.mxu0 0
      %617 = vmatprep.subr.bf16.mxu0 0
      %618 = vmatpush2.bf16.msra.mxu0 0
      %619 = vmatprep.subr.bf16.mxu0 0
      %620 = vmatpush2.bf16.msra.mxu0 0
      %621 = vmatprep.subr.bf16.mxu0 0
      %622 = vmatpush2.bf16.msra.mxu0 0
      %623 = vmatprep.subr.bf16.mxu0 0
      %624 = vmatpush2.bf16.msra.mxu0 0
      %625 = vmatprep.subr.bf16.mxu0 0
      %626 = vmatpush2.bf16.msra.mxu0 0
      %627 = vmatprep.subr.bf16.mxu0 0
      %628 = vmatpush2.bf16.msra.mxu0 0
      %629 = vmatprep.mubr.bf16.mxu0 0
      %630 = vmatmul.mubr.bf16.gmra.mxu0 %v592
      %v631 = vpop.f32.mrf.mxu0
      %v632 = vadd.f32 0.0, %v631
      %v633 = vpop.f32.mrf.mxu0
      %v634 = vpop.f32.mrf.mxu0
      %v635 = vpop.f32.mrf.mxu0
      %636 = vdwg.mxu0
      %v639 = vunpack.c.l.b16 %v269
      %v640 = vunpack.c.l.b16 %v270
      %v641 = vpack.c.b16 %v640, %v639
      %v643 = vsel %vm493, %v532, 0
      %v646 = vsel %vm542, %v641, 0
      %648 = vmatprep.subr.bf16.mxu0 0
      %649 = vmatpush1.bf16.msra.mxu0 0
      %650 = vmatprep.subr.bf16.mxu0 0
      %651 = vmatpush1.bf16.msra.mxu0 0
      %652 = vmatprep.subr.bf16.mxu0 0
      %653 = vmatpush1.bf16.msra.mxu0 0
      %654 = vmatprep.subr.bf16.mxu0 0
      %655 = vmatpush1.bf16.msra.mxu0 0
      %656 = vmatprep.subr.bf16.mxu0 0
      %657 = vmatpush1.bf16.msra.mxu0 0
      %658 = vmatprep.subr.bf16.mxu0 0
      %659 = vmatpush1.bf16.msra.mxu0 0
      %660 = vmatprep.subr.bf16.mxu0 0
      %661 = vmatpush1.bf16.msra.mxu0 0
      %662 = vmatprep.subr.bf16.mxu0 0
      %663 = vmatpush1.bf16.msra.mxu0 %v646
      %664 = vmatprep.subr.bf16.mxu0 0
      %665 = vmatpush2.bf16.msra.mxu0 0
      %666 = vmatprep.subr.bf16.mxu0 0
      %667 = vmatpush2.bf16.msra.mxu0 0
      %668 = vmatprep.subr.bf16.mxu0 0
      %669 = vmatpush2.bf16.msra.mxu0 0
      %670 = vmatprep.subr.bf16.mxu0 0
      %671 = vmatpush2.bf16.msra.mxu0 0
      %672 = vmatprep.subr.bf16.mxu0 0
      %673 = vmatpush2.bf16.msra.mxu0 0
      %674 = vmatprep.subr.bf16.mxu0 0
      %675 = vmatpush2.bf16.msra.mxu0 0
      %676 = vmatprep.subr.bf16.mxu0 0
      %677 = vmatpush2.bf16.msra.mxu0 0
      %678 = vmatprep.subr.bf16.mxu0 0
      %679 = vmatpush2.bf16.msra.mxu0 0
      %680 = vmatprep.mubr.bf16.mxu0 0
      %681 = vmatmul.mubr.bf16.gmra.mxu0 %v643
      %v682 = vpop.f32.mrf.mxu0
      %v683 = vadd.f32 0.0, %v682
      %v684 = vpop.f32.mrf.mxu0
      %v685 = vpop.f32.mrf.mxu0
      %v686 = vpop.f32.mrf.mxu0
      %687 = vdwg.mxu0
      %v690 = vunpack.c.l.b16 %v271
      %v691 = vunpack.c.l.b16 %v272
      %v692 = vpack.c.b16 %v691, %v690
      %v694 = vsel %vm493, %v533, 0
      %v697 = vsel %vm542, %v692, 0
      %699 = vmatprep.subr.bf16.mxu0 0
      %700 = vmatpush1.bf16.msra.mxu0 0
      %701 = vmatprep.subr.bf16.mxu0 0
      %702 = vmatpush1.bf16.msra.mxu0 0
      %703 = vmatprep.subr.bf16.mxu0 0
      %704 = vmatpush1.bf16.msra.mxu0 0
      %705 = vmatprep.subr.bf16.mxu0 0
      %706 = vmatpush1.bf16.msra.mxu0 0
      %707 = vmatprep.subr.bf16.mxu0 0
      %708 = vmatpush1.bf16.msra.mxu0 0
      %709 = vmatprep.subr.bf16.mxu0 0
      %710 = vmatpush1.bf16.msra.mxu0 0
      %711 = vmatprep.subr.bf16.mxu0 0
      %712 = vmatpush1.bf16.msra.mxu0 0
      %713 = vmatprep.subr.bf16.mxu0 0
      %714 = vmatpush1.bf16.msra.mxu0 %v697
      %715 = vmatprep.subr.bf16.mxu0 0
      %716 = vmatpush2.bf16.msra.mxu0 0
      %717 = vmatprep.subr.bf16.mxu0 0
      %718 = vmatpush2.bf16.msra.mxu0 0
      %719 = vmatprep.subr.bf16.mxu0 0
      %720 = vmatpush2.bf16.msra.mxu0 0
      %721 = vmatprep.subr.bf16.mxu0 0
      %722 = vmatpush2.bf16.msra.mxu0 0
      %723 = vmatprep.subr.bf16.mxu0 0
      %724 = vmatpush2.bf16.msra.mxu0 0
      %725 = vmatprep.subr.bf16.mxu0 0
      %726 = vmatpush2.bf16.msra.mxu0 0
      %727 = vmatprep.subr.bf16.mxu0 0
      %728 = vmatpush2.bf16.msra.mxu0 0
      %729 = vmatprep.subr.bf16.mxu0 0
      %730 = vmatpush2.bf16.msra.mxu0 0
      %731 = vmatprep.mubr.bf16.mxu0 0
      %732 = vmatmul.mubr.bf16.gmra.mxu0 %v694
      %v733 = vpop.f32.mrf.mxu0
      %v734 = vadd.f32 0.0, %v733
      %v735 = vpop.f32.mrf.mxu0
      %v736 = vpop.f32.mrf.mxu0
      %v737 = vpop.f32.mrf.mxu0
      %738 = vdwg.mxu0
      %v739 = vrcp.pop %v520
      %v740 = vrcp.pop %v523
      %v741 = vrcp.pop %v526
      %v742 = vrcp.pop %v529
      %v743 = vmul.f32 %v581, %v739
      %v744 = vmul.f32 %v632, %v740
      %v745 = vmul.f32 %v683, %v741
      %v746 = vmul.f32 %v734, %v742
      %v747 = vpack.c.bf16 %v743, %v743
      %v748 = vpack.c.bf16 %v744, %v744
      %v749 = vpack.c.bf16 %v745, %v745
      %v750 = vpack.c.bf16 %v746, %v746
      %vm751 = vcmask 60416
      %752 = vst.msk [vmem:[%s251] sm:$0xf] %vm751, %v747
      %753 = vst.msk [vmem:[%s251 + $0x4] sm:$0xf] %vm751, %v748
      %754 = vst.msk [vmem:[%s251 + $0x8] sm:$0xf] %vm751, %v749
      %755 = vst.msk [vmem:[%s251 + $0xc] sm:$0xf] %vm751, %v750
      %p756 = scmp.lt.s32.totalorder %s15, 1
      %s757 = scalar_select %p756, %s15, 1
      %s758 = smul.addr %s757, 4
      %s759 = smul.addr %s758, 4
      %s760 = scalar_lea.vmem %s4, %s759
      // Predicated region
      $region37: #{transformer_forward.45} parent=35 // pred_check
        %p761 = pneg %p137
      $region38: #{transformer_forward.45} parent=35 // pred_check_branch
        %763 = sbr.rel (%p761) target = $region40
      $region39: #{transformer_forward.45} parent=35 // pred_region
        _
      $region40: #{transformer_forward.45} parent=35 // pred_fallthru
        _
    $region36: #{transformer_forward.45} parent=5 // pred_fallthru
      _
    %p764 = scmp.le.s32.totalorder 2, %s10
    // Predicated region
    $region41: #{transformer_forward.45} parent=5 // pred_check
      %p765 = pneg %p764
    $region42: #{transformer_forward.45} parent=5 // pred_check_branch
      %767 = sbr.rel (%p765) target = $region44
    $region43: #{transformer_forward.45} parent=5 // pred_region
      %s768 = ssub.s32 %s10, 2
      // Predicated region
      $region45: #{transformer_forward.45} parent=43 // pred_check
        %p769 = pneg %p143
      $region46: #{transformer_forward.45} parent=43 // pred_check_branch
        %771 = sbr.rel (%p769) target = $region48
      $region47: #{transformer_forward.45} parent=43 // pred_region
        %p772 = scmp.lt.s32.totalorder %s16, 1
        %s773 = scalar_select %p772, %s16, 1
        %s774 = smul.addr %s773, 4
        %s775 = smul.addr %s774, 4
        %s776 = scalar_lea.vmem %s4, %s775
      $region48: #{transformer_forward.45} parent=43 // pred_fallthru
        _
    $region44: #{transformer_forward.45} parent=5 // pred_fallthru
      _
  $region6: #{transformer_forward.45} parent=0 // loop_footer
    %s14 = sadd.s32 1, %s10
  $region7: #{transformer_forward.45} parent=0 // loop_footer_branch
    %9 = sbr.rel target = $region3
  $region8: #{transformer_forward.45} parent=0 // loop_exit
    _

// kernel: transformer_forward.56
$region0: #{transformer_forward.56}
  #allocation0 [shape = 'u32[]', space=smem, size = 0x4, offset = 0x4, fixed_abs, tag = 'smem constant byte address 0x4 - core index']
  #allocation1 [shape = 'u32[144,128]{1,0:T(1,128)}', space=vmem, size = 0x12000, scoped, tag = 'internal scratch']
  %s0 = inlined_call_operand.vmem [shape: f32[16,32], index: 0, kind: input, shape index: {}]
  %s1 = inlined_call_operand.vmem [shape: f32[1,32], index: 1, kind: input, shape index: {}]
  %s2 = inlined_call_operand.vmem [shape: f32[1,32], index: 2, kind: input, shape index: {}]
  %s3 = inlined_call_operand.vmem [shape: f32[16,32], index: 3, kind: output, shape index: {}]
  %s4 = sld [smem:[#allocation0]]
  $region22: #{transformer_forward.56} parent=0
    _
  %s6 = ssub.s32 1, %s4
  %s7 = scalar_select 0, %s6, %s4
  // Predicated region
  $region2: #{transformer_forward.56} parent=0 // pred_check
    _
  $region3: #{transformer_forward.56} parent=0 // pred_check_branch
    %9 = sbr.rel (0) target = $region5
  $region4: #{transformer_forward.56} parent=0 // pred_region
    _
  $region5: #{transformer_forward.56} parent=0 // pred_fallthru
    _
  // Predicated region
  $region6: #{transformer_forward.56} parent=0 // pred_check
    _
  $region7: #{transformer_forward.56} parent=0 // pred_check_branch
    %11 = sbr.rel (0) target = $region9
  $region8: #{transformer_forward.56} parent=0 // pred_region
    _
  $region9: #{transformer_forward.56} parent=0 // pred_fallthru
    _
  // Predicated region
  $region10: #{transformer_forward.56} parent=0 // pred_check
    _
  $region11: #{transformer_forward.56} parent=0 // pred_check_branch
    %13 = sbr.rel (0) target = $region13
  $region12: #{transformer_forward.56} parent=0 // pred_region
    _
  $region13: #{transformer_forward.56} parent=0 // pred_fallthru
    _
  %v14 = vld [vmem:[%s0] sm:$0xff]
  %v15 = vld [vmem:[%s0 + $0x8] sm:$0xff]
  %vm16 = vcmask 261120
  %v17 = vsel %vm16, %v14, 0.0
  %18 = vadd.xlane.f32.xlu0 %v17
  %v19 = vpop.xlane.xlu0 %18
  %v20 = vsel %vm16, %v15, 0.0
  %21 = vadd.xlane.f32.xlu0 %v20
  %v22 = vpop.xlane.xlu0 %21
  %v23 = vrcp.pop 32.0
  %v24 = vmul.f32 %v19, %v23
  %v25 = vmul.f32 %v22, %v23
  %v26 = vsub.f32 %v14, %v24
  %v27 = vsub.f32 %v15, %v25
  %v28 = vmul.f32 %v26, %v26
  %v29 = vmul.f32 %v27, %v27
  %v30 = vsel %vm16, %v28, 0.0
  %31 = vadd.xlane.f32.xlu0 %v30
  %v32 = vpop.xlane.xlu0 %31
  %v33 = vsel %vm16, %v29, 0.0
  %34 = vadd.xlane.f32.xlu0 %v33
  %v35 = vpop.xlane.xlu0 %34
  %v36 = vmul.f32 %v32, %v23
  %v37 = vmul.f32 %v35, %v23
  %v38 = vadd.f32 %v36, 1e-05
  %v39 = vadd.f32 %v37, 1e-05
  %v40 = vrsqrt.pop %v38
  %v41 = vrsqrt.pop %v39
  %v42 = vmul.f32 %v26, %v40
  %v43 = vmul.f32 %v27, %v41
  %v44 = vld [vmem:[%s1] sm:$0x1]
  %v46 = vlaneseq
  %v47 = vshrl.u32 %v46, 7
  %v48 = vsub.s32 0, %v47
  %v49 = vrot.slane %v44, %v48
  %v51 = vmul.f32 %v42, %v49
  %v52 = vmul.f32 %v43, %v49
  %v53 = vld [vmem:[%s2] sm:$0x1]
  %v55 = vlaneseq
  %v56 = vshrl.u32 %v55, 7
  %v57 = vsub.s32 0, %v56
  %v58 = vrot.slane %v53, %v57
  %v60 = vadd.f32 %v51, %v58
  %v61 = vadd.f32 %v52, %v58
  %62 = vst.msk [vmem:[%s3] sm:$0xff] %vm16, %v60
  %63 = vst.msk [vmem:[%s3 + $0x8] sm:$0xff] %vm16, %v61
  // Predicated region
  $region14: #{transformer_forward.56} parent=0 // pred_check
    _
  $region15: #{transformer_forward.56} parent=0 // pred_check_branch
    %65 = sbr.rel (0) target = $region17
  $region16: #{transformer_forward.56} parent=0 // pred_region
    _
  $region17: #{transformer_forward.56} parent=0 // pred_fallthru
    _
  // Predicated region
  $region18: #{transformer_forward.56} parent=0 // pred_check
    _
  $region19: #{transformer_forward.56} parent=0 // pred_check_branch
    %67 = sbr.rel (0) target = $region21
  $region20: #{transformer_forward.56} parent=0 // pred_region
    _
  $region21: #{transformer_forward.56} parent=0 // pred_fallthru
    _

// kernel: transformer_forward.57
$region0: #{transformer_forward.57}
  #allocation0 [shape = 'u32[]', space=smem, size = 0x4, offset = 0x4, fixed_abs, tag = 'smem constant byte address 0x4 - core index']
  #allocation1 [shape = 'u32[144,128]{1,0:T(1,128)}', space=vmem, size = 0x12000, scoped, tag = 'internal scratch']
  %s0 = inlined_call_operand.vmem [shape: f32[16,32], index: 0, kind: input, shape index: {}]
  %s1 = inlined_call_operand.vmem [shape: f32[32,48], index: 1, kind: input, shape index: {}]
  %s2 = inlined_call_operand.vmem [shape: f32[1,48], index: 2, kind: input, shape index: {}]
  %s3 = inlined_call_operand.hbm [shape: f32[16,48], index: 3, kind: output, shape index: {}]
  %s4 = sld [smem:[#allocation0]]
  $region22: #{transformer_forward.57} parent=0
    _
  %s6 = ssub.s32 1, %s4
  %s7 = scalar_select 0, %s6, %s4
  $region1: #{transformer_forward.57} parent=0
    #allocation2 [shape = 'u8[8192]{0}', space=vmem, size = 0x2000, scoped, tag = 'output window, operand 0, single buffered']
    #allocation3 [shape = 's32[1]{0}', space=sflag, size = 0x4, scoped, tag = 'scoped memory for transformer_forward.57']
    %8 = vsyncpa [#allocation3], 0
    // Predicated region
    $region2: #{transformer_forward.57} parent=1 // pred_check
      _
    $region3: #{transformer_forward.57} parent=1 // pred_check_branch
      %10 = sbr.rel (0) target = $region5
    $region4: #{transformer_forward.57} parent=1 // pred_region
      _
    $region5: #{transformer_forward.57} parent=1 // pred_fallthru
      _
    // Predicated region
    $region6: #{transformer_forward.57} parent=1 // pred_check
      _
    $region7: #{transformer_forward.57} parent=1 // pred_check_branch
      %12 = sbr.rel (0) target = $region9
    $region8: #{transformer_forward.57} parent=1 // pred_region
      _
    $region9: #{transformer_forward.57} parent=1 // pred_fallthru
      _
    // Predicated region
    $region10: #{transformer_forward.57} parent=1 // pred_check
      _
    $region11: #{transformer_forward.57} parent=1 // pred_check_branch
      %14 = sbr.rel (0) target = $region13
    $region12: #{transformer_forward.57} parent=1 // pred_region
      _
    $region13: #{transformer_forward.57} parent=1 // pred_fallthru
      _
    %v16 = vld [vmem:[%s0] sm:$0xff]
    %v17 = vld [vmem:[%s0 + $0x8] sm:$0xff]
    %v18 = vpack.c.bf16 %v17, %v16
    %v19 = vld [vmem:[%s1] sm:$0xff]
    %v20 = vld [vmem:[%s1 + $0x8] sm:$0xff]
    %v21 = vld [vmem:[%s1 + $0x10] sm:$0xff]
    %v22 = vld [vmem:[%s1 + $0x18] sm:$0xff]
    %v23 = vpack.c.bf16 %v20, %v19
    %v24 = vpack.c.bf16 %v22, %v21
    %v25 = vld [vmem:[%s2] sm:$0x1]
    %v27 = vlaneseq
    %v28 = vshrl.u32 %v27, 7
    %v29 = vsub.s32 0, %v28
    %v30 = vrot.slane %v25, %v29
    %vm32 = vcmask 261120
    %v34 = vsel %vm32, %v18, 0
    %36 = vmatprep.subr.bf16.mxu0 0
    %37 = vmatpush1.bf16.msra.mxu0 0
    %38 = vmatprep.subr.bf16.mxu0 0
    %39 = vmatpush1.bf16.msra.mxu0 0
    %40 = vmatprep.subr.bf16.mxu0 0
    %41 = vmatpush1.bf16.msra.mxu0 0
    %42 = vmatprep.subr.bf16.mxu0 0
    %43 = vmatpush1.bf16.msra.mxu0 0
    %44 = vmatprep.subr.bf16.mxu0 0
    %45 = vmatpush1.bf16.msra.mxu0 0
    %46 = vmatprep.subr.bf16.mxu0 0
    %47 = vmatpush1.bf16.msra.mxu0 0
    %48 = vmatprep.subr.bf16.mxu0 0
    %49 = vmatpush1.bf16.msra.mxu0 %v24
    %50 = vmatprep.subr.bf16.mxu0 0
    %51 = vmatpush1.bf16.msra.mxu0 %v23
    %52 = vmatprep.subr.bf16.mxu0 0
    %53 = vmatpush2.bf16.msra.mxu0 0
    %54 = vmatprep.subr.bf16.mxu0 0
    %55 = vmatpush2.bf16.msra.mxu0 0
    %56 = vmatprep.subr.bf16.mxu0 0
    %57 = vmatpush2.bf16.msra.mxu0 0
    %58 = vmatprep.subr.bf16.mxu0 0
    %59 = vmatpush2.bf16.msra.mxu0 0
    %60 = vmatprep.subr.bf16.mxu0 0
    %61 = vmatpush2.bf16.msra.mxu0 0
    %62 = vmatprep.subr.bf16.mxu0 0
    %63 = vmatpush2.bf16.msra.mxu0 0
    %64 = vmatprep.subr.bf16.mxu0 0
    %65 = vmatpush2.bf16.msra.mxu0 0
    %66 = vmatprep.subr.bf16.mxu0 0
    %67 = vmatpush2.bf16.msra.mxu0 0
    %68 = vmatprep.mubr.bf16.mxu0 0
    %69 = vmatmul.mubr.bf16.gmra.mxu0 %v34
    %v70 = vpop.f32.mrf.mxu0
    %v71 = vadd.f32 %v30, %v70
    %v72 = vpop.f32.mrf.mxu0
    %v73 = vpop.f32.mrf.mxu0
    %v74 = vadd.f32 %v30, %v73
    %v75 = vpop.f32.mrf.mxu0
    %76 = vdwg.mxu0
    %vm77 = vcmask 392192
    %78 = vst.msk [vmem:[#allocation2] sm:$0xff] %vm77, %v71
    %79 = vst.msk [vmem:[#allocation2 + $0x8] sm:$0xff] %vm77, %v74
    // Predicated region
    $region14: #{transformer_forward.57} parent=1 // pred_check
      _
    $region15: #{transformer_forward.57} parent=1 // pred_check_branch
      %81 = sbr.rel (0) target = $region17
    $region16: #{transformer_forward.57} parent=1 // pred_region
      %s83 = ssub.s32 256, 256
      %84 = vsyncadd [#allocation3], %s83
      %s85 = sshll.u32 [#allocation2], 4
      %s86 = int_to_ptr.vmem [resolvable:$true] %s85
      %91 = dma.vmem_to_hbm [thread:$0]  %s86, 256, %s3, [#allocation3], 128, 128, 8
    $region17: #{transformer_forward.57} parent=1 // pred_fallthru
      _
    // Predicated region
    $region18: #{transformer_forward.57} parent=1 // pred_check
      _
    $region19: #{transformer_forward.57} parent=1 // pred_check_branch
      %93 = sbr.rel (0) target = $region21
    $region20: #{transformer_forward.57} parent=1 // pred_region
      %94 = dma.done [#allocation3], 256
    $region21: #{transformer_forward.57} parent=1 // pred_fallthru
      _
    %95 = vsyncpa [#allocation3], 1

// kernel: transformer_forward.47
$region0: #{transformer_forward.47}
  #allocation0 [shape = 'u32[]', space=smem, size = 0x4, offset = 0x4, fixed_abs, tag = 'smem constant byte address 0x4 - core index']
  #allocation1 [shape = 'u32[144,128]{1,0:T(1,128)}', space=vmem, size = 0x12000, scoped, tag = 'internal scratch']
  %s0 = inlined_call_operand.vmem [shape: f32[16,32], index: 0, kind: input, shape index: {}]
  %s1 = inlined_call_operand.vmem [shape: f32[32,64], index: 1, kind: input, shape index: {}]
  %s2 = inlined_call_operand.vmem [shape: f32[1,64], index: 2, kind: input, shape index: {}]
  %s3 = inlined_call_operand.vmem [shape: f32[64,32], index: 3, kind: input, shape index: {}]
  %s4 = inlined_call_operand.vmem [shape: f32[1,32], index: 4, kind: input, shape index: {}]
  %s5 = inlined_call_operand.vmem [shape: f32[1,32], index: 5, kind: input, shape index: {}]
  %s6 = inlined_call_operand.vmem [shape: f32[1,32], index: 6, kind: input, shape index: {}]
  %s7 = inlined_call_operand.vmem [shape: f32[16,32], index: 7, kind: output, shape index: {}]
  %s8 = sld [smem:[#allocation0]]
  $region38: #{transformer_forward.47} parent=0
    _
  %s10 = ssub.s32 1, %s8
  %s11 = scalar_select 0, %s10, %s8
  // Predicated region
  $region2: #{transformer_forward.47} parent=0 // pred_check
    _
  $region3: #{transformer_forward.47} parent=0 // pred_check_branch
    %13 = sbr.rel (0) target = $region5
  $region4: #{transformer_forward.47} parent=0 // pred_region
    _
  $region5: #{transformer_forward.47} parent=0 // pred_fallthru
    _
  // Predicated region
  $region6: #{transformer_forward.47} parent=0 // pred_check
    _
  $region7: #{transformer_forward.47} parent=0 // pred_check_branch
    %15 = sbr.rel (0) target = $region9
  $region8: #{transformer_forward.47} parent=0 // pred_region
    _
  $region9: #{transformer_forward.47} parent=0 // pred_fallthru
    _
  // Predicated region
  $region10: #{transformer_forward.47} parent=0 // pred_check
    _
  $region11: #{transformer_forward.47} parent=0 // pred_check_branch
    %17 = sbr.rel (0) target = $region13
  $region12: #{transformer_forward.47} parent=0 // pred_region
    _
  $region13: #{transformer_forward.47} parent=0 // pred_fallthru
    _
  // Predicated region
  $region14: #{transformer_forward.47} parent=0 // pred_check
    _
  $region15: #{transformer_forward.47} parent=0 // pred_check_branch
    %19 = sbr.rel (0) target = $region17
  $region16: #{transformer_forward.47} parent=0 // pred_region
    _
  $region17: #{transformer_forward.47} parent=0 // pred_fallthru
    _
  // Predicated region
  $region18: #{transformer_forward.47} parent=0 // pred_check
    _
  $region19: #{transformer_forward.47} parent=0 // pred_check_branch
    %21 = sbr.rel (0) target = $region21
  $region20: #{transformer_forward.47} parent=0 // pred_region
    _
  $region21: #{transformer_forward.47} parent=0 // pred_fallthru
    _
  // Predicated region
  $region22: #{transformer_forward.47} parent=0 // pred_check
    _
  $region23: #{transformer_forward.47} parent=0 // pred_check_branch
    %23 = sbr.rel (0) target = $region25
  $region24: #{transformer_forward.47} parent=0 // pred_region
    _
  $region25: #{transformer_forward.47} parent=0 // pred_fallthru
    _
  // Predicated region
  $region26: #{transformer_forward.47} parent=0 // pred_check
    _
  $region27: #{transformer_forward.47} parent=0 // pred_check_branch
    %25 = sbr.rel (0) target = $region29
  $region28: #{transformer_forward.47} parent=0 // pred_region
    _
  $region29: #{transformer_forward.47} parent=0 // pred_fallthru
    _
  %v27 = vld [vmem:[%s0] sm:$0xff]
  %v28 = vld [vmem:[%s0 + $0x8] sm:$0xff]
  %v29 = vpack.c.bf16 %v28, %v27
  %v30 = vld [vmem:[%s1] sm:$0xff]
  %v31 = vld [vmem:[%s1 + $0x8] sm:$0xff]
  %v32 = vld [vmem:[%s1 + $0x10] sm:$0xff]
  %v33 = vld [vmem:[%s1 + $0x18] sm:$0xff]
  %v34 = vpack.c.bf16 %v31, %v30
  %v35 = vpack.c.bf16 %v33, %v32
  %v36 = vld [vmem:[%s2] sm:$0x1]
  %v38 = vlaneseq
  %v39 = vshrl.u32 %v38, 7
  %v40 = vsub.s32 0, %v39
  %v41 = vrot.slane %v36, %v40
  %vm43 = vcmask 261120
  %v45 = vsel %vm43, %v29, 0
  %47 = vmatprep.subr.bf16.mxu0 0
  %48 = vmatpush1.bf16.msra.mxu0 0
  %49 = vmatprep.subr.bf16.mxu0 0
  %50 = vmatpush1.bf16.msra.mxu0 0
  %51 = vmatprep.subr.bf16.mxu0 0
  %52 = vmatpush1.bf16.msra.mxu0 0
  %53 = vmatprep.subr.bf16.mxu0 0
  %54 = vmatpush1.bf16.msra.mxu0 0
  %55 = vmatprep.subr.bf16.mxu0 0
  %56 = vmatpush1.bf16.msra.mxu0 0
  %57 = vmatprep.subr.bf16.mxu0 0
  %58 = vmatpush1.bf16.msra.mxu0 0
  %59 = vmatprep.subr.bf16.mxu0 0
  %60 = vmatpush1.bf16.msra.mxu0 %v35
  %61 = vmatprep.subr.bf16.mxu0 0
  %62 = vmatpush1.bf16.msra.mxu0 %v34
  %63 = vmatprep.subr.bf16.mxu0 0
  %64 = vmatpush2.bf16.msra.mxu0 0
  %65 = vmatprep.subr.bf16.mxu0 0
  %66 = vmatpush2.bf16.msra.mxu0 0
  %67 = vmatprep.subr.bf16.mxu0 0
  %68 = vmatpush2.bf16.msra.mxu0 0
  %69 = vmatprep.subr.bf16.mxu0 0
  %70 = vmatpush2.bf16.msra.mxu0 0
  %71 = vmatprep.subr.bf16.mxu0 0
  %72 = vmatpush2.bf16.msra.mxu0 0
  %73 = vmatprep.subr.bf16.mxu0 0
  %74 = vmatpush2.bf16.msra.mxu0 0
  %75 = vmatprep.subr.bf16.mxu0 0
  %76 = vmatpush2.bf16.msra.mxu0 0
  %77 = vmatprep.subr.bf16.mxu0 0
  %78 = vmatpush2.bf16.msra.mxu0 0
  %79 = vmatprep.mubr.bf16.mxu0 0
  %80 = vmatmul.mubr.bf16.gmra.mxu0 %v45
  %v81 = vpop.f32.mrf.mxu0
  %v82 = vadd.f32 %v41, %v81
  %v83 = vpop.f32.mrf.mxu0
  %v84 = vpop.f32.mrf.mxu0
  %v85 = vadd.f32 %v41, %v84
  %v86 = vpop.f32.mrf.mxu0
  %87 = vdwg.mxu0
  %v88 = vmax.f32 %v82, 0.0
  %v89 = vmax.f32 %v85, 0.0
  %v90 = vpack.c.bf16 %v89, %v88
  %v91 = vld [vmem:[%s3] sm:$0xff]
  %v92 = vld [vmem:[%s3 + $0x8] sm:$0xff]
  %v93 = vld [vmem:[%s3 + $0x10] sm:$0xff]
  %v94 = vld [vmem:[%s3 + $0x18] sm:$0xff]
  %v95 = vld [vmem:[%s3 + $0x20] sm:$0xff]
  %v96 = vld [vmem:[%s3 + $0x28] sm:$0xff]
  %v97 = vld [vmem:[%s3 + $0x30] sm:$0xff]
  %v98 = vld [vmem:[%s3 + $0x38] sm:$0xff]
  %v99 = vpack.c.bf16 %v92, %v91
  %v100 = vpack.c.bf16 %v94, %v93
  %v101 = vpack.c.bf16 %v96, %v95
  %v102 = vpack.c.bf16 %v98, %v97
  %v103 = vld [vmem:[%s4] sm:$0x1]
  %v105 = vlaneseq
  %v106 = vshrl.u32 %v105, 7
  %v107 = vsub.s32 0, %v106
  %v108 = vrot.slane %v103, %v107
  %vm110 = vcmask 523264
  %v112 = vsel %vm110, %v90, 0
  %114 = vmatprep.subr.bf16.mxu0 0
  %115 = vmatpush1.bf16.msra.mxu0 0
  %116 = vmatprep.subr.bf16.mxu0 0
  %117 = vmatpush1.bf16.msra.mxu0 0
  %118 = vmatprep.subr.bf16.mxu0 0
  %119 = vmatpush1.bf16.msra.mxu0 0
  %120 = vmatprep.subr.bf16.mxu0 0
  %121 = vmatpush1.bf16.msra.mxu0 0
  %122 = vmatprep.subr.bf16.mxu0 0
  %123 = vmatpush1.bf16.msra.mxu0 %v102
  %124 = vmatprep.subr.bf16.mxu0 0
  %125 = vmatpush1.bf16.msra.mxu0 %v101
  %126 = vmatprep.subr.bf16.mxu0 0
  %127 = vmatpush1.bf16.msra.mxu0 %v100
  %128 = vmatprep.subr.bf16.mxu0 0
  %129 = vmatpush1.bf16.msra.mxu0 %v99
  %130 = vmatprep.subr.bf16.mxu0 0
  %131 = vmatpush2.bf16.msra.mxu0 0
  %132 = vmatprep.subr.bf16.mxu0 0
  %133 = vmatpush2.bf16.msra.mxu0 0
  %134 = vmatprep.subr.bf16.mxu0 0
  %135 = vmatpush2.bf16.msra.mxu0 0
  %136 = vmatprep.subr.bf16.mxu0 0
  %137 = vmatpush2.bf16.msra.mxu0 0
  %138 = vmatprep.subr.bf16.mxu0 0
  %139 = vmatpush2.bf16.msra.mxu0 0
  %140 = vmatprep.subr.bf16.mxu0 0
  %141 = vmatpush2.bf16.msra.mxu0 0
  %142 = vmatprep.subr.bf16.mxu0 0
  %143 = vmatpush2.bf16.msra.mxu0 0
  %144 = vmatprep.subr.bf16.mxu0 0
  %145 = vmatpush2.bf16.msra.mxu0 0
  %146 = vmatprep.mubr.bf16.mxu0 0
  %147 = vmatmul.mubr.bf16.gmra.mxu0 %v112
  %v148 = vpop.f32.mrf.mxu0
  %v149 = vadd.f32 %v108, %v148
  %v150 = vpop.f32.mrf.mxu0
  %v151 = vpop.f32.mrf.mxu0
  %v152 = vadd.f32 %v108, %v151
  %v153 = vpop.f32.mrf.mxu0
  %154 = vdwg.mxu0
  %v155 = vadd.f32 %v27, %v149
  %v156 = vadd.f32 %v28, %v152
  %v157 = vsel %vm43, %v155, 0.0
  %158 = vadd.xlane.f32.xlu0 %v157
  %v159 = vpop.xlane.xlu0 %158
  %v160 = vsel %vm43, %v156, 0.0
  %161 = vadd.xlane.f32.xlu0 %v160
  %v162 = vpop.xlane.xlu0 %161
  %v163 = vrcp.pop 32.0
  %v164 = vmul.f32 %v159, %v163
  %v165 = vmul.f32 %v162, %v163
  %v166 = vsub.f32 %v155, %v164
  %v167 = vsub.f32 %v156, %v165
  %v168 = vmul.f32 %v166, %v166
  %v169 = vmul.f32 %v167, %v167
  %v170 = vsel %vm43, %v168, 0.0
  %171 = vadd.xlane.f32.xlu0 %v170
  %v172 = vpop.xlane.xlu0 %171
  %v173 = vsel %vm43, %v169, 0.0
  %174 = vadd.xlane.f32.xlu0 %v173
  %v175 = vpop.xlane.xlu0 %174
  %v176 = vmul.f32 %v172, %v163
  %v177 = vmul.f32 %v175, %v163
  %v178 = vadd.f32 %v176, 1e-05
  %v179 = vadd.f32 %v177, 1e-05
  %v180 = vrsqrt.pop %v178
  %v181 = vrsqrt.pop %v179
  %v182 = vmul.f32 %v166, %v180
  %v183 = vmul.f32 %v167, %v181
  %v184 = vld [vmem:[%s5] sm:$0x1]
  %v186 = vlaneseq
  %v187 = vshrl.u32 %v186, 7
  %v188 = vsub.s32 0, %v187
  %v189 = vrot.slane %v184, %v188
  %v191 = vmul.f32 %v182, %v189
  %v192 = vmul.f32 %v183, %v189
  %v193 = vld [vmem:[%s6] sm:$0x1]
  %v195 = vlaneseq
  %v196 = vshrl.u32 %v195, 7
  %v197 = vsub.s32 0, %v196
  %v198 = vrot.slane %v193, %v197
  %v200 = vadd.f32 %v191, %v198
  %v201 = vadd.f32 %v192, %v198
  %202 = vst.msk [vmem:[%s7] sm:$0xff] %vm43, %v200
  %203 = vst.msk [vmem:[%s7 + $0x8] sm:$0xff] %vm43, %v201
  // Predicated region
  $region30: #{transformer_forward.47} parent=0 // pred_check
    _
  $region31: #{transformer_forward.47} parent=0 // pred_check_branch
    %205 = sbr.rel (0) target = $region33
  $region32: #{transformer_forward.47} parent=0 // pred_region
    _
  $region33: #{transformer_forward.47} parent=0 // pred_fallthru
    _
  // Predicated region
  $region34: #{transformer_forward.47} parent=0 // pred_check
    _
  $region35: #{transformer_forward.47} parent=0 // pred_check_branch
    %207 = sbr.rel (0) target = $region37
  $region36: #{transformer_forward.47} parent=0 // pred_region
    _
  $region37: #{transformer_forward.47} parent=0 // pred_fallthru
    _

</llo_original>
